<compile_context>
chip_gen: v7x
topology: tpu7x:2x2x1
jax: 0.10.0
libtpu: 0.0.40
codegen_flags: <defaults>
</compile_context>

<pallas_src>
import jax
import jax.numpy as jnp
from jax.experimental import pallas as pl
from jax.experimental.pallas import tpu as pltpu

TRUE_DIMS = [1000, 750, 500, 40]  # hidden/output dims of the PyTorch module
OUT_DIM = TRUE_DIMS[-1]


def _round_up(x, m):
    return (x + m - 1) // m * m


def _pick_bm(batch):
    """Batch-tile heuristic: big tiles, low padding waste, >=2 blocks when it's cheap."""
    batch8 = _round_up(max(batch, 8), 8)
    if batch8 <= 256:
        # Small batch: a single block; this regime is weight-DMA bound anyway.
        return batch8
    if batch8 <= 2048:
        # Two roughly-equal big blocks: grid >= 2 (both v7x TCs), < 8 rows of waste.
        return _round_up(pl.cdiv(batch8, 2), 8)
    # Large batch: biggest tile in {1024, 512, 256} whose ragged last block wastes
    # <= ~12.5% of the per-tile compute.
    for bm in (1024, 512, 256):
        covered = pl.cdiv(batch8, bm) * bm
        if covered - batch8 <= covered // 8:
            return bm
    return 256


def _mlp_kernel(x_ref,
                w1_ref, b1_ref,
                w2_ref, b2_ref,
                w3_ref, b3_ref,
                w4_ref, b4_ref,
                o_ref):
    # Matmul inputs in bf16 (native MXU), f32 accumulation; bias-add + ReLU in f32
    # on the VPU, then cast once to bf16 for the next layer (same numerics, half the
    # inter-layer VMEM traffic).
    x = x_ref[...].astype(jnp.bfloat16)

    h = jnp.dot(x, w1_ref[...], preferred_element_type=jnp.float32) + b1_ref[...]
    h = jnp.maximum(h, 0.0).astype(jnp.bfloat16)

    h = jnp.dot(h, w2_ref[...], preferred_element_type=jnp.float32) + b2_ref[...]
    h = jnp.maximum(h, 0.0).astype(jnp.bfloat16)

    h = jnp.dot(h, w3_ref[...], preferred_element_type=jnp.float32) + b3_ref[...]
    h = jnp.maximum(h, 0.0).astype(jnp.bfloat16)

    h = jnp.dot(h, w4_ref[...], preferred_element_type=jnp.float32) + b4_ref[...]

    o_ref[...] = h.astype(o_ref.dtype)


def lever_generator_forward(x, params, out_dim=OUT_DIM):
    """x: (batch, latent) f32; params: 4 x (bf16 padded W (in,out), f32 padded b (1,out)).

    Returns (batch, out_dim) f32.
    """
    batch, latent = x.shape
    (w1, b1), (w2, b2), (w3, b3), (w4, b4) = params
    out_pad = w4.shape[1]

    bm = _pick_bm(batch)
    grid = (pl.cdiv(batch, bm),)  # ragged last block: OOB reads unused, OOB writes masked

    def const_spec(arr):
        # Constant index map -> the weight/bias tile is DMA'd once and stays
        # VMEM-resident across all grid steps.
        return pl.BlockSpec(arr.shape, lambda i: (0,) * arr.ndim)

    out = pl.pallas_call(
        _mlp_kernel,
        out_shape=jax.ShapeDtypeStruct((batch, out_pad), jnp.float32),
        grid=grid,
        in_specs=[pl.BlockSpec((bm, latent), lambda i: (i, 0))]
                 + [const_spec(a) for pair in params for a in pair],
        out_specs=pl.BlockSpec((bm, out_pad), lambda i: (i, 0)),
        compiler_params=pltpu.CompilerParams(
            dimension_semantics=("parallel",),
            vmem_limit_bytes=32 << 20,
        ),
    )(x, w1, b1, w2, b2, w3, b3, w4, b4)

    # Lane-dense (128-wide) kernel output; trim the zero-padded columns here.
    return out[:, :out_dim]


def init_params(latent_dimension, key):
    """Deterministic synthetic init matching the module's layer shapes.

    Weights are zero-padded to lane-aligned sizes and stored as bf16;
    biases are zero-padded and kept f32.
    """
    dims = [latent_dimension] + TRUE_DIMS
    padded = [latent_dimension] + [_round_up(d, 128) for d in TRUE_DIMS]
    keys = jax.random.split(key, len(dims) - 1)
    params = []
    for idx, (k, d_in, d_out) in enumerate(zip(keys, dims[:-1], dims[1:])):
        kw, kb = jax.random.split(k)
        # Kaiming-uniform-ish scale (PyTorch default Linear init), deterministic.
        bound = 1.0 / jnp.sqrt(jnp.float32(d_in))
        w = jax.random.uniform(kw, (d_in, d_out), jnp.float32, -bound, bound)
        b = jax.random.uniform(kb, (1, d_out), jnp.float32, -bound, bound)
        p_in, p_out = padded[idx], padded[idx + 1]
        # Zero padding is an identity: padded cols get 0 (ReLU(0)=0), which then
        # multiplies zero rows of the next layer's weight.
        w_pad = jnp.zeros((p_in, p_out), jnp.float32).at[:d_in, :d_out].set(w)
        b_pad = jnp.zeros((1, p_out), jnp.float32).at[:, :d_out].set(b)
        params.append((w_pad.astype(jnp.bfloat16), b_pad))
    return params


def reference_forward(x, params, out_dim=OUT_DIM):
    """Pure-JAX reference using the same bf16 weights / f32 accumulation."""
    h = x
    for i, (w, b) in enumerate(params):
        h = jnp.dot(h.astype(jnp.bfloat16), w,
                    preferred_element_type=jnp.float32) + b
        if i < len(params) - 1:
            h = jnp.maximum(h, 0.0)
    return h[:, :out_dim]


if __name__ == "__main__":
    latent_dimension = 32
    batch = 2

    key = jax.random.PRNGKey(0)
    k_x, k_p = jax.random.split(key)

    x = jax.random.normal(k_x, (batch, latent_dimension), jnp.float32)
    params = init_params(latent_dimension, k_p)

    out = lever_generator_forward(x, params)
    out = jax.block_until_ready(out)

    ref = jax.block_until_ready(reference_forward(x, params))
    assert out.shape == (batch, OUT_DIM), out.shape
    assert jnp.allclose(out, ref, atol=1e-2, rtol=1e-2), "mismatch vs reference"

    print("KERNEL_OK")
</pallas_src>

<mosaic_0001>
module attributes {stable_mosaic.version = 11 : i64} {
  func.func @_mlp_kernel(%arg0: i32, %arg1: memref<8x32xf32, #tpu.memory_space<vmem>>, %arg2: memref<32x1024xbf16, #tpu.memory_space<vmem>>, %arg3: memref<1x1024xf32, #tpu.memory_space<vmem>>, %arg4: memref<1024x768xbf16, #tpu.memory_space<vmem>>, %arg5: memref<1x768xf32, #tpu.memory_space<vmem>>, %arg6: memref<768x512xbf16, #tpu.memory_space<vmem>>, %arg7: memref<1x512xf32, #tpu.memory_space<vmem>>, %arg8: memref<512x128xbf16, #tpu.memory_space<vmem>>, %arg9: memref<1x128xf32, #tpu.memory_space<vmem>>, %arg10: memref<8x128xf32, #tpu.memory_space<vmem>>) attributes {dimension_semantics = [#tpu.dimension_semantics<parallel>], iteration_bounds = array<i64: 1>, scalar_prefetch = 0 : i64, scratch_operands = 0 : i64, tpu.core_type = #tpu.core_type<tc>, window_params = [{transform_indices = @transform_0, window_bounds = array<i64: 8, 32>}, {pipeline_mode = #tpu.pipeline_mode<synchronous>, transform_indices = @transform_1, window_bounds = array<i64: 32, 1024>}, {pipeline_mode = #tpu.pipeline_mode<synchronous>, transform_indices = @transform_2, window_bounds = array<i64: 1, 1024>}, {pipeline_mode = #tpu.pipeline_mode<synchronous>, transform_indices = @transform_3, window_bounds = array<i64: 1024, 768>}, {pipeline_mode = #tpu.pipeline_mode<synchronous>, transform_indices = @transform_4, window_bounds = array<i64: 1, 768>}, {pipeline_mode = #tpu.pipeline_mode<synchronous>, transform_indices = @transform_5, window_bounds = array<i64: 768, 512>}, {pipeline_mode = #tpu.pipeline_mode<synchronous>, transform_indices = @transform_6, window_bounds = array<i64: 1, 512>}, {pipeline_mode = #tpu.pipeline_mode<synchronous>, transform_indices = @transform_7, window_bounds = array<i64: 512, 128>}, {pipeline_mode = #tpu.pipeline_mode<synchronous>, transform_indices = @transform_8, window_bounds = array<i64: 1, 128>}, {transform_indices = @transform_9, window_bounds = array<i64: 8, 128>}]} {
    %c0 = arith.constant 0 : index
    %c0_0 = arith.constant 0 : index
    %0 = vector.load %arg1[%c0, %c0_0] : memref<8x32xf32, #tpu.memory_space<vmem>>, vector<8x32xf32>
    %1 = arith.truncf %0 : vector<8x32xf32> to vector<8x32xbf16>
    %c0_1 = arith.constant 0 : index
    %c0_2 = arith.constant 0 : index
    %2 = vector.load %arg2[%c0_1, %c0_2] : memref<32x1024xbf16, #tpu.memory_space<vmem>>, vector<32x1024xbf16>
    %cst = arith.constant dense<0.000000e+00> : vector<8x1024xf32>
    %3 = tpu.matmul %1, %2, %cst {dimension_numbers = #tpu.dot_dimension_numbers<[1], [0], [0], [1], [0, 0, 1, 1], [], []>} : vector<8x32xbf16>, vector<32x1024xbf16>, vector<8x1024xf32> -> vector<8x1024xf32>
    %c0_3 = arith.constant 0 : index
    %c0_4 = arith.constant 0 : index
    %4 = vector.load %arg3[%c0_3, %c0_4] : memref<1x1024xf32, #tpu.memory_space<vmem>>, vector<1x1024xf32>
    %5 = vector.broadcast %4 : vector<1x1024xf32> to vector<8x1024xf32>
    %6 = arith.addf %3, %5 : vector<8x1024xf32>
    %cst_5 = arith.constant 0.000000e+00 : f32
    %7 = vector.broadcast %cst_5 : f32 to vector<8x1024xf32>
    %8 = arith.maximumf %6, %7 : vector<8x1024xf32>
    %9 = arith.truncf %8 : vector<8x1024xf32> to vector<8x1024xbf16>
    %c0_6 = arith.constant 0 : index
    %c0_7 = arith.constant 0 : index
    %10 = vector.load %arg4[%c0_6, %c0_7] : memref<1024x768xbf16, #tpu.memory_space<vmem>>, vector<1024x768xbf16>
    %cst_8 = arith.constant dense<0.000000e+00> : vector<8x768xf32>
    %11 = tpu.matmul %9, %10, %cst_8 {dimension_numbers = #tpu.dot_dimension_numbers<[1], [0], [0], [1], [0, 0, 1, 1], [], []>} : vector<8x1024xbf16>, vector<1024x768xbf16>, vector<8x768xf32> -> vector<8x768xf32>
    %c0_9 = arith.constant 0 : index
    %c0_10 = arith.constant 0 : index
    %12 = vector.load %arg5[%c0_9, %c0_10] : memref<1x768xf32, #tpu.memory_space<vmem>>, vector<1x768xf32>
    %13 = vector.broadcast %12 : vector<1x768xf32> to vector<8x768xf32>
    %14 = arith.addf %11, %13 : vector<8x768xf32>
    %cst_11 = arith.constant 0.000000e+00 : f32
    %15 = vector.broadcast %cst_11 : f32 to vector<8x768xf32>
    %16 = arith.maximumf %14, %15 : vector<8x768xf32>
    %17 = arith.truncf %16 : vector<8x768xf32> to vector<8x768xbf16>
    %c0_12 = arith.constant 0 : index
    %c0_13 = arith.constant 0 : index
    %18 = vector.load %arg6[%c0_12, %c0_13] : memref<768x512xbf16, #tpu.memory_space<vmem>>, vector<768x512xbf16>
    %cst_14 = arith.constant dense<0.000000e+00> : vector<8x512xf32>
    %19 = tpu.matmul %17, %18, %cst_14 {dimension_numbers = #tpu.dot_dimension_numbers<[1], [0], [0], [1], [0, 0, 1, 1], [], []>} : vector<8x768xbf16>, vector<768x512xbf16>, vector<8x512xf32> -> vector<8x512xf32>
    %c0_15 = arith.constant 0 : index
    %c0_16 = arith.constant 0 : index
    %20 = vector.load %arg7[%c0_15, %c0_16] : memref<1x512xf32, #tpu.memory_space<vmem>>, vector<1x512xf32>
    %21 = vector.broadcast %20 : vector<1x512xf32> to vector<8x512xf32>
    %22 = arith.addf %19, %21 : vector<8x512xf32>
    %cst_17 = arith.constant 0.000000e+00 : f32
    %23 = vector.broadcast %cst_17 : f32 to vector<8x512xf32>
    %24 = arith.maximumf %22, %23 : vector<8x512xf32>
    %25 = arith.truncf %24 : vector<8x512xf32> to vector<8x512xbf16>
    %c0_18 = arith.constant 0 : index
    %c0_19 = arith.constant 0 : index
    %26 = vector.load %arg8[%c0_18, %c0_19] : memref<512x128xbf16, #tpu.memory_space<vmem>>, vector<512x128xbf16>
    %cst_20 = arith.constant dense<0.000000e+00> : vector<8x128xf32>
    %27 = tpu.matmul %25, %26, %cst_20 {dimension_numbers = #tpu.dot_dimension_numbers<[1], [0], [0], [1], [0, 0, 1, 1], [], []>} : vector<8x512xbf16>, vector<512x128xbf16>, vector<8x128xf32> -> vector<8x128xf32>
    %c0_21 = arith.constant 0 : index
    %c0_22 = arith.constant 0 : index
    %28 = vector.load %arg9[%c0_21, %c0_22] : memref<1x128xf32, #tpu.memory_space<vmem>>, vector<1x128xf32>
    %29 = vector.broadcast %28 : vector<1x128xf32> to vector<8x128xf32>
    %30 = arith.addf %27, %29 : vector<8x128xf32>
    %c0_23 = arith.constant 0 : index
    %c0_24 = arith.constant 0 : index
    %31 = vector.load %arg10[%c0_23, %c0_24] : memref<8x128xf32, #tpu.memory_space<vmem>>, vector<8x128xf32>
    tpu.vector_store %arg10[%c0_23, %c0_24], %30 {strides = array<i32>} : memref<8x128xf32, #tpu.memory_space<vmem>>, vector<8x128xf32>,
    return
  }
  func.func @transform_0(%arg0: i32) -> (i32, i32) {
    %c0_i32 = arith.constant 0 : i32
    %c0_i32_0 = arith.constant 0 : i32
    return %arg0, %c0_i32 : i32, i32
  }
  func.func @transform_1(%arg0: i32) -> (i32, i32) {
    %c0_i32 = arith.constant 0 : i32
    %c0_i32_0 = arith.constant 0 : i32
    %c0_i32_1 = arith.constant 0 : i32
    return %c0_i32, %c0_i32_0 : i32, i32
  }
  func.func @transform_2(%arg0: i32) -> (i32, i32) {
    %c0_i32 = arith.constant 0 : i32
    %c0_i32_0 = arith.constant 0 : i32
    %c0_i32_1 = arith.constant 0 : i32
    return %c0_i32, %c0_i32_0 : i32, i32
  }
  func.func @transform_3(%arg0: i32) -> (i32, i32) {
    %c0_i32 = arith.constant 0 : i32
    %c0_i32_0 = arith.constant 0 : i32
    %c0_i32_1 = arith.constant 0 : i32
    return %c0_i32, %c0_i32_0 : i32, i32
  }
  func.func @transform_4(%arg0: i32) -> (i32, i32) {
    %c0_i32 = arith.constant 0 : i32
    %c0_i32_0 = arith.constant 0 : i32
    %c0_i32_1 = arith.constant 0 : i32
    return %c0_i32, %c0_i32_0 : i32, i32
  }
  func.func @transform_5(%arg0: i32) -> (i32, i32) {
    %c0_i32 = arith.constant 0 : i32
    %c0_i32_0 = arith.constant 0 : i32
    %c0_i32_1 = arith.constant 0 : i32
    return %c0_i32, %c0_i32_0 : i32, i32
  }
  func.func @transform_6(%arg0: i32) -> (i32, i32) {
    %c0_i32 = arith.constant 0 : i32
    %c0_i32_0 = arith.constant 0 : i32
    %c0_i32_1 = arith.constant 0 : i32
    return %c0_i32, %c0_i32_0 : i32, i32
  }
  func.func @transform_7(%arg0: i32) -> (i32, i32) {
    %c0_i32 = arith.constant 0 : i32
    %c0_i32_0 = arith.constant 0 : i32
    %c0_i32_1 = arith.constant 0 : i32
    return %c0_i32, %c0_i32_0 : i32, i32
  }
  func.func @transform_8(%arg0: i32) -> (i32, i32) {
    %c0_i32 = arith.constant 0 : i32
    %c0_i32_0 = arith.constant 0 : i32
    %c0_i32_1 = arith.constant 0 : i32
    return %c0_i32, %c0_i32_0 : i32, i32
  }
  func.func @transform_9(%arg0: i32) -> (i32, i32) {
    %c0_i32 = arith.constant 0 : i32
    %c0_i32_0 = arith.constant 0 : i32
    return %arg0, %c0_i32 : i32, i32
  }
}

</mosaic_0001>

<llo_original>
// kernel: tpu_custom_call.1
$region0: #{tpu_custom_call.1}
  #allocation0 [shape = 'u32[]', space=smem, size = 0x4, offset = 0x4, fixed_abs, tag = 'smem constant byte address 0x4 - core index']
  #allocation1 [shape = 'u32[144,128]{1,0:T(1,128)}', space=vmem, size = 0x12000, scoped, tag = 'internal scratch']
  %s0 = inlined_call_operand.hbm [shape: f32[2,32], index: 0, kind: input, shape index: {}]
  %s1 = inlined_call_operand.hbm [shape: bf16[32,1024], index: 1, kind: input, shape index: {}]
  %s2 = inlined_call_operand.hbm [shape: f32[1,1024], index: 2, kind: input, shape index: {}]
  %s3 = inlined_call_operand.hbm [shape: bf16[1024,768], index: 3, kind: input, shape index: {}]
  %s4 = inlined_call_operand.hbm [shape: f32[1,768], index: 4, kind: input, shape index: {}]
  %s5 = inlined_call_operand.hbm [shape: bf16[768,512], index: 5, kind: input, shape index: {}]
  %s6 = inlined_call_operand.hbm [shape: f32[1,512], index: 6, kind: input, shape index: {}]
  %s7 = inlined_call_operand.hbm [shape: bf16[512,128], index: 7, kind: input, shape index: {}]
  %s8 = inlined_call_operand.hbm [shape: f32[1,128], index: 8, kind: input, shape index: {}]
  %s9 = inlined_call_operand.hbm [shape: f32[2,128], index: 9, kind: output, shape index: {}]
  %s10 = sld [smem:[#allocation0]]
  $region82: #{tpu_custom_call.1} parent=0
    _
  %s12 = ssub.s32 1, %s10
  %s13 = scalar_select 0, %s12, %s10
  $region1: #{tpu_custom_call.1} parent=0
    #allocation2 [shape = 'u8[4096]{0}', space=vmem, size = 0x1000, scoped, tag = 'input window, operand 0, single buffered']
    #allocation3 [shape = 's32[1]{0}', space=sflag, size = 0x4, scoped, tag = 'scoped memory for tpu_custom_call.1']
    #allocation4 [shape = 's32[1]{0}', space=sflag, size = 0x4, scoped, tag = 'scoped memory for tpu_custom_call.1']
    #allocation5 [shape = 'u8[65536]{0}', space=vmem, size = 0x10000, scoped, tag = 'input window, operand 1, single buffered']
    #allocation6 [shape = 's32[1]{0}', space=sflag, size = 0x4, scoped, tag = 'scoped memory for tpu_custom_call.1']
    #allocation7 [shape = 'u8[4096]{0}', space=vmem, size = 0x1000, scoped, tag = 'input window, operand 2, single buffered']
    #allocation8 [shape = 'u8[1572864]{0}', space=vmem, size = 0x180000, scoped, tag = 'input window, operand 3, single buffered']
    #allocation9 [shape = 's32[1]{0}', space=sflag, size = 0x4, scoped, tag = 'scoped memory for tpu_custom_call.1']
    #allocation10 [shape = 'u8[3072]{0}', space=vmem, size = 0xc00, scoped, tag = 'input window, operand 4, single buffered']
    #allocation11 [shape = 'u8[786432]{0}', space=vmem, size = 0xc0000, scoped, tag = 'input window, operand 5, single buffered']
    #allocation12 [shape = 's32[1]{0}', space=sflag, size = 0x4, scoped, tag = 'scoped memory for tpu_custom_call.1']
    #allocation13 [shape = 'u8[2048]{0}', space=vmem, size = 0x800, scoped, tag = 'input window, operand 6, single buffered']
    #allocation14 [shape = 'u8[131072]{0}', space=vmem, size = 0x20000, scoped, tag = 'input window, operand 7, single buffered']
    #allocation15 [shape = 's32[1]{0}', space=sflag, size = 0x4, scoped, tag = 'scoped memory for tpu_custom_call.1']
    #allocation16 [shape = 'u8[512]{0}', space=vmem, size = 0x400, scoped, tag = 'input window, operand 8, single buffered']
    #allocation17 [shape = 'u8[4096]{0}', space=vmem, size = 0x1000, scoped, tag = 'output window, operand 0, single buffered']
    %14 = vsyncpa [#allocation3], 0
    %15 = vsyncpa [#allocation6], 0
    %16 = vsyncpa [#allocation9], 0
    %17 = vsyncpa [#allocation12], 0
    %18 = vsyncpa [#allocation15], 0
    %19 = vsyncpa [#allocation4], 0
    // Predicated region
    $region2: #{tpu_custom_call.1} parent=1 // pred_check
      _
    $region3: #{tpu_custom_call.1} parent=1 // pred_check_branch
      %21 = sbr.rel (0) target = $region5
    $region4: #{tpu_custom_call.1} parent=1 // pred_region
      %s23 = ssub.s32 128, 32
      %24 = vsyncadd [#allocation3], %s23
      %s25 = sshll.u32 [#allocation2], 4
      %s26 = int_to_ptr.vmem [resolvable:$true] %s25
      %31 = dma.hbm_to_vmem [thread:$0]  %s0, 32, %s26, [#allocation3], 32, 32, 2
    $region5: #{tpu_custom_call.1} parent=1 // pred_fallthru
      _
    // Predicated region
    $region6: #{tpu_custom_call.1} parent=1 // pred_check
      _
    $region7: #{tpu_custom_call.1} parent=1 // pred_check_branch
      %33 = sbr.rel (0) target = $region9
    $region8: #{tpu_custom_call.1} parent=1 // pred_region
      %s35 = ssub.s32 2048, 2048
      %36 = vsyncadd [#allocation6], %s35
      %s37 = sshll.u32 [#allocation5], 4
      %s38 = int_to_ptr.vmem [resolvable:$true] %s37
      %43 = dma.hbm_to_vmem [thread:$0]  %s1, 2048, %s38, [#allocation6], 512, 512, 32
    $region9: #{tpu_custom_call.1} parent=1 // pred_fallthru
      _
    // Predicated region
    $region10: #{tpu_custom_call.1} parent=1 // pred_check
      _
    $region11: #{tpu_custom_call.1} parent=1 // pred_check_branch
      %45 = sbr.rel (0) target = $region13
    $region12: #{tpu_custom_call.1} parent=1 // pred_region
      %s47 = ssub.s32 128, 128
      %48 = vsyncadd [#allocation6], %s47
      %s50 = sshll.u32 [#allocation7], 4
      %s51 = int_to_ptr.vmem [resolvable:$true] %s50
      %53 = dma.hbm_to_vmem [thread:$0]  %s2, 128, %s51, [#allocation6]
    $region13: #{tpu_custom_call.1} parent=1 // pred_fallthru
      _
    // Predicated region
    $region14: #{tpu_custom_call.1} parent=1 // pred_check
      _
    $region15: #{tpu_custom_call.1} parent=1 // pred_check_branch
      %55 = sbr.rel (0) target = $region17
    $region16: #{tpu_custom_call.1} parent=1 // pred_region
      %s57 = ssub.s32 49152, 49152
      %58 = vsyncadd [#allocation9], %s57
      %s59 = sshll.u32 [#allocation8], 4
      %s60 = int_to_ptr.vmem [resolvable:$true] %s59
      %65 = dma.hbm_to_vmem [thread:$0]  %s3, 49152, %s60, [#allocation9], 384, 384, 24
    $region17: #{tpu_custom_call.1} parent=1 // pred_fallthru
      _
    // Predicated region
    $region18: #{tpu_custom_call.1} parent=1 // pred_check
      _
    $region19: #{tpu_custom_call.1} parent=1 // pred_check_branch
      %67 = sbr.rel (0) target = $region21
    $region20: #{tpu_custom_call.1} parent=1 // pred_region
      %s69 = ssub.s32 96, 96
      %70 = vsyncadd [#allocation9], %s69
      %s72 = sshll.u32 [#allocation10], 4
      %s73 = int_to_ptr.vmem [resolvable:$true] %s72
      %75 = dma.hbm_to_vmem [thread:$0]  %s4, 96, %s73, [#allocation9]
    $region21: #{tpu_custom_call.1} parent=1 // pred_fallthru
      _
    // Predicated region
    $region22: #{tpu_custom_call.1} parent=1 // pred_check
      _
    $region23: #{tpu_custom_call.1} parent=1 // pred_check_branch
      %77 = sbr.rel (0) target = $region25
    $region24: #{tpu_custom_call.1} parent=1 // pred_region
      %s79 = ssub.s32 24576, 24576
      %80 = vsyncadd [#allocation12], %s79
      %s81 = sshll.u32 [#allocation11], 4
      %s82 = int_to_ptr.vmem [resolvable:$true] %s81
      %87 = dma.hbm_to_vmem [thread:$0]  %s5, 24576, %s82, [#allocation12], 256, 256, 16
    $region25: #{tpu_custom_call.1} parent=1 // pred_fallthru
      _
    // Predicated region
    $region26: #{tpu_custom_call.1} parent=1 // pred_check
      _
    $region27: #{tpu_custom_call.1} parent=1 // pred_check_branch
      %89 = sbr.rel (0) target = $region29
    $region28: #{tpu_custom_call.1} parent=1 // pred_region
      %s91 = ssub.s32 64, 64
      %92 = vsyncadd [#allocation12], %s91
      %s94 = sshll.u32 [#allocation13], 4
      %s95 = int_to_ptr.vmem [resolvable:$true] %s94
      %97 = dma.hbm_to_vmem [thread:$0]  %s6, 64, %s95, [#allocation12]
    $region29: #{tpu_custom_call.1} parent=1 // pred_fallthru
      _
    // Predicated region
    $region30: #{tpu_custom_call.1} parent=1 // pred_check
      _
    $region31: #{tpu_custom_call.1} parent=1 // pred_check_branch
      %99 = sbr.rel (0) target = $region33
    $region32: #{tpu_custom_call.1} parent=1 // pred_region
      %s101 = ssub.s32 4096, 4096
      %102 = vsyncadd [#allocation15], %s101
      %s103 = sshll.u32 [#allocation14], 4
      %s104 = int_to_ptr.vmem [resolvable:$true] %s103
      %109 = dma.hbm_to_vmem [thread:$0]  %s7, 4096, %s104, [#allocation15], 64, 64, 4
    $region33: #{tpu_custom_call.1} parent=1 // pred_fallthru
      _
    // Predicated region
    $region34: #{tpu_custom_call.1} parent=1 // pred_check
      _
    $region35: #{tpu_custom_call.1} parent=1 // pred_check_branch
      %111 = sbr.rel (0) target = $region37
    $region36: #{tpu_custom_call.1} parent=1 // pred_region
      %s113 = ssub.s32 16, 16
      %114 = vsyncadd [#allocation15], %s113
      %s116 = sshll.u32 [#allocation16], 4
      %s117 = int_to_ptr.vmem [resolvable:$true] %s116
      %119 = dma.hbm_to_vmem [thread:$0]  %s8, 16, %s117, [#allocation15]
    $region37: #{tpu_custom_call.1} parent=1 // pred_fallthru
      _
    // Predicated region
    $region38: #{tpu_custom_call.1} parent=1 // pred_check
      _
    $region39: #{tpu_custom_call.1} parent=1 // pred_check_branch
      %121 = sbr.rel (0) target = $region41
    $region40: #{tpu_custom_call.1} parent=1 // pred_region
      %122 = dma.done [#allocation3], 128
    $region41: #{tpu_custom_call.1} parent=1 // pred_fallthru
      _
    // Predicated region
    $region42: #{tpu_custom_call.1} parent=1 // pred_check
      _
    $region43: #{tpu_custom_call.1} parent=1 // pred_check_branch
      %124 = sbr.rel (0) target = $region45
    $region44: #{tpu_custom_call.1} parent=1 // pred_region
      %125 = dma.done [#allocation6], 2048
    $region45: #{tpu_custom_call.1} parent=1 // pred_fallthru
      _
    // Predicated region
    $region46: #{tpu_custom_call.1} parent=1 // pred_check
      _
    $region47: #{tpu_custom_call.1} parent=1 // pred_check_branch
      %127 = sbr.rel (0) target = $region49
    $region48: #{tpu_custom_call.1} parent=1 // pred_region
      %128 = dma.done [#allocation6], 128
    $region49: #{tpu_custom_call.1} parent=1 // pred_fallthru
      _
    // Predicated region
    $region50: #{tpu_custom_call.1} parent=1 // pred_check
      _
    $region51: #{tpu_custom_call.1} parent=1 // pred_check_branch
      %130 = sbr.rel (0) target = $region53
    $region52: #{tpu_custom_call.1} parent=1 // pred_region
      %131 = dma.done [#allocation9], 49152
    $region53: #{tpu_custom_call.1} parent=1 // pred_fallthru
      _
    // Predicated region
    $region54: #{tpu_custom_call.1} parent=1 // pred_check
      _
    $region55: #{tpu_custom_call.1} parent=1 // pred_check_branch
      %133 = sbr.rel (0) target = $region57
    $region56: #{tpu_custom_call.1} parent=1 // pred_region
      %134 = dma.done [#allocation9], 96
    $region57: #{tpu_custom_call.1} parent=1 // pred_fallthru
      _
    // Predicated region
    $region58: #{tpu_custom_call.1} parent=1 // pred_check
      _
    $region59: #{tpu_custom_call.1} parent=1 // pred_check_branch
      %136 = sbr.rel (0) target = $region61
    $region60: #{tpu_custom_call.1} parent=1 // pred_region
      %137 = dma.done [#allocation12], 24576
    $region61: #{tpu_custom_call.1} parent=1 // pred_fallthru
      _
    // Predicated region
    $region62: #{tpu_custom_call.1} parent=1 // pred_check
      _
    $region63: #{tpu_custom_call.1} parent=1 // pred_check_branch
      %139 = sbr.rel (0) target = $region65
    $region64: #{tpu_custom_call.1} parent=1 // pred_region
      %140 = dma.done [#allocation12], 64
    $region65: #{tpu_custom_call.1} parent=1 // pred_fallthru
      _
    // Predicated region
    $region66: #{tpu_custom_call.1} parent=1 // pred_check
      _
    $region67: #{tpu_custom_call.1} parent=1 // pred_check_branch
      %142 = sbr.rel (0) target = $region69
    $region68: #{tpu_custom_call.1} parent=1 // pred_region
      %143 = dma.done [#allocation15], 4096
    $region69: #{tpu_custom_call.1} parent=1 // pred_fallthru
      _
    // Predicated region
    $region70: #{tpu_custom_call.1} parent=1 // pred_check
      _
    $region71: #{tpu_custom_call.1} parent=1 // pred_check_branch
      %145 = sbr.rel (0) target = $region73
    $region72: #{tpu_custom_call.1} parent=1 // pred_region
      %146 = dma.done [#allocation15], 16
    $region73: #{tpu_custom_call.1} parent=1 // pred_fallthru
      _
    %v148 = vld [vmem:[#allocation2] sm:$0xff]
    %v149 = vpack.c.bf16 %v148, %v148
    %v150 = vld [vmem:[#allocation5] sm:$0xff]
    %v151 = vld [vmem:[#allocation5 + $0x8] sm:$0xff]
    %v152 = vld [vmem:[#allocation5 + $0x10] sm:$0xff]
    %v153 = vld [vmem:[#allocation5 + $0x18] sm:$0xff]
    %v154 = vld [vmem:[#allocation5 + $0x20] sm:$0xff]
    %v155 = vld [vmem:[#allocation5 + $0x28] sm:$0xff]
    %v156 = vld [vmem:[#allocation5 + $0x30] sm:$0xff]
    %v157 = vld [vmem:[#allocation5 + $0x38] sm:$0xff]
    %v158 = vld [vmem:[#allocation5 + $0x40] sm:$0xff]
    %v159 = vld [vmem:[#allocation5 + $0x48] sm:$0xff]
    %v160 = vld [vmem:[#allocation5 + $0x50] sm:$0xff]
    %v161 = vld [vmem:[#allocation5 + $0x58] sm:$0xff]
    %v162 = vld [vmem:[#allocation5 + $0x60] sm:$0xff]
    %v163 = vld [vmem:[#allocation5 + $0x68] sm:$0xff]
    %v164 = vld [vmem:[#allocation5 + $0x70] sm:$0xff]
    %v165 = vld [vmem:[#allocation5 + $0x78] sm:$0xff]
    %v166 = vld [vmem:[#allocation7] sm:$0xff]
    %v168 = vlaneseq
    %v169 = vshrl.u32 %v168, 7
    %v170 = vsub.s32 0, %v169
    %v171 = vrot.slane %v166, %v170
    %v172 = vlaneseq
    %v173 = vshrl.u32 %v172, 7
    %v174 = vsub.s32 1, %v173
    %v175 = vrot.slane %v166, %v174
    %v176 = vlaneseq
    %v177 = vshrl.u32 %v176, 7
    %v178 = vsub.s32 2, %v177
    %v179 = vrot.slane %v166, %v178
    %v180 = vlaneseq
    %v181 = vshrl.u32 %v180, 7
    %v182 = vsub.s32 3, %v181
    %v183 = vrot.slane %v166, %v182
    %v184 = vlaneseq
    %v185 = vshrl.u32 %v184, 7
    %v186 = vsub.s32 4, %v185
    %v187 = vrot.slane %v166, %v186
    %v188 = vlaneseq
    %v189 = vshrl.u32 %v188, 7
    %v190 = vsub.s32 5, %v189
    %v191 = vrot.slane %v166, %v190
    %v192 = vlaneseq
    %v193 = vshrl.u32 %v192, 7
    %v194 = vsub.s32 6, %v193
    %v195 = vrot.slane %v166, %v194
    %v196 = vlaneseq
    %v197 = vshrl.u32 %v196, 7
    %v198 = vsub.s32 7, %v197
    %v199 = vrot.slane %v166, %v198
    %v224 = vunpack.c.l.b16 %v150
    %v225 = vunpack.c.h.b16 %v150
    %v226 = vunpack.c.l.b16 %v151
    %v227 = vunpack.c.h.b16 %v151
    %v228 = vunpack.c.l.b16 %v152
    %v229 = vunpack.c.h.b16 %v152
    %v230 = vunpack.c.l.b16 %v153
    %v231 = vunpack.c.h.b16 %v153
    %v232 = vunpack.c.l.b16 %v154
    %v233 = vunpack.c.h.b16 %v154
    %v234 = vunpack.c.l.b16 %v155
    %v235 = vunpack.c.h.b16 %v155
    %v236 = vunpack.c.l.b16 %v156
    %v237 = vunpack.c.h.b16 %v156
    %v238 = vunpack.c.l.b16 %v157
    %v239 = vunpack.c.h.b16 %v157
    %v240 = vunpack.c.l.b16 %v158
    %v241 = vunpack.c.h.b16 %v158
    %v242 = vunpack.c.l.b16 %v159
    %v243 = vunpack.c.h.b16 %v159
    %v244 = vunpack.c.l.b16 %v160
    %v245 = vunpack.c.h.b16 %v160
    %v246 = vunpack.c.l.b16 %v161
    %v247 = vunpack.c.h.b16 %v161
    %v248 = vunpack.c.l.b16 %v162
    %v249 = vunpack.c.h.b16 %v162
    %v250 = vunpack.c.l.b16 %v163
    %v251 = vunpack.c.h.b16 %v163
    %v252 = vunpack.c.l.b16 %v164
    %v253 = vunpack.c.h.b16 %v164
    %v254 = vunpack.c.l.b16 %v165
    %v255 = vunpack.c.h.b16 %v165
    %v256 = vpack.c.b16 %v232, %v224
    %v257 = vpack.c.b16 %v233, %v225
    %v258 = vpack.c.b16 %v234, %v226
    %v259 = vpack.c.b16 %v235, %v227
    %v260 = vpack.c.b16 %v236, %v228
    %v261 = vpack.c.b16 %v237, %v229
    %v262 = vpack.c.b16 %v238, %v230
    %v263 = vpack.c.b16 %v239, %v231
    %v264 = vpack.c.b16 %v248, %v240
    %v265 = vpack.c.b16 %v249, %v241
    %v266 = vpack.c.b16 %v250, %v242
    %v267 = vpack.c.b16 %v251, %v243
    %v268 = vpack.c.b16 %v252, %v244
    %v269 = vpack.c.b16 %v253, %v245
    %v270 = vpack.c.b16 %v254, %v246
    %v271 = vpack.c.b16 %v255, %v247
    %vm288 = vcmask 261120
    %v290 = vsel %vm288, %v149, 0
    %292 = vmatprep.subr.bf16.mxu0 %v257
    %293 = vmatpush1.bf16.msra.mxu0 %v256
    %294 = vmatprep.subr.bf16.mxu0 %v265
    %295 = vmatpush1.bf16.msra.mxu0 %v264
    %296 = vmatprep.subr.bf16.mxu0 0
    %297 = vmatpush1.bf16.msra.mxu0 0
    %298 = vmatprep.subr.bf16.mxu0 0
    %299 = vmatpush1.bf16.msra.mxu0 0
    %300 = vmatprep.subr.bf16.mxu0 0
    %301 = vmatpush1.bf16.msra.mxu0 0
    %302 = vmatprep.subr.bf16.mxu0 0
    %303 = vmatpush1.bf16.msra.mxu0 0
    %304 = vmatprep.subr.bf16.mxu0 0
    %305 = vmatpush1.bf16.msra.mxu0 0
    %306 = vmatprep.subr.bf16.mxu0 0
    %307 = vmatpush1.bf16.msra.mxu0 0
    %308 = vmatprep.subr.bf16.mxu0 0
    %309 = vmatpush1.bf16.msra.mxu0 0
    %310 = vmatprep.subr.bf16.mxu0 0
    %311 = vmatpush1.bf16.msra.mxu0 0
    %312 = vmatprep.subr.bf16.mxu0 0
    %313 = vmatpush1.bf16.msra.mxu0 0
    %314 = vmatprep.subr.bf16.mxu0 0
    %315 = vmatpush1.bf16.msra.mxu0 0
    %316 = vmatprep.subr.bf16.mxu0 0
    %317 = vmatpush1.bf16.msra.mxu0 0
    %318 = vmatprep.subr.bf16.mxu0 0
    %319 = vmatpush1.bf16.msra.mxu0 0
    %320 = vmatprep.subr.bf16.mxu0 0
    %321 = vmatpush1.bf16.msra.mxu0 0
    %322 = vmatprep.subr.bf16.mxu0 0
    %323 = vmatpush1.bf16.msra.mxu0 0
    %324 = vmatprep.mubr.bf16.mxu0 0
    %325 = vmatmul.mubr.bf16.gmra.mrb[0].mxu0 %v290
    %v326 = vpop.f32.mrb[0].mxu0
    %v327 = vadd.f32 %v171, %v326
    %v328 = vpop.f32.mrb[0].mxu0
    %v329 = vadd.f32 %v175, %v328
    %v330 = vpop.f32.mrb[0].mxu0
    %v331 = vpop.f32.mrb[0].mxu0
    %332 = vdwg.mxu0
    %333 = vmatprep.subr.bf16.mxu0 %v259
    %334 = vmatpush1.bf16.msra.mxu0 %v258
    %335 = vmatprep.subr.bf16.mxu0 %v267
    %336 = vmatpush1.bf16.msra.mxu0 %v266
    %337 = vmatprep.subr.bf16.mxu0 0
    %338 = vmatpush1.bf16.msra.mxu0 0
    %339 = vmatprep.subr.bf16.mxu0 0
    %340 = vmatpush1.bf16.msra.mxu0 0
    %341 = vmatprep.subr.bf16.mxu0 0
    %342 = vmatpush1.bf16.msra.mxu0 0
    %343 = vmatprep.subr.bf16.mxu0 0
    %344 = vmatpush1.bf16.msra.mxu0 0
    %345 = vmatprep.subr.bf16.mxu0 0
    %346 = vmatpush1.bf16.msra.mxu0 0
    %347 = vmatprep.subr.bf16.mxu0 0
    %348 = vmatpush1.bf16.msra.mxu0 0
    %349 = vmatprep.subr.bf16.mxu0 0
    %350 = vmatpush1.bf16.msra.mxu0 0
    %351 = vmatprep.subr.bf16.mxu0 0
    %352 = vmatpush1.bf16.msra.mxu0 0
    %353 = vmatprep.subr.bf16.mxu0 0
    %354 = vmatpush1.bf16.msra.mxu0 0
    %355 = vmatprep.subr.bf16.mxu0 0
    %356 = vmatpush1.bf16.msra.mxu0 0
    %357 = vmatprep.subr.bf16.mxu0 0
    %358 = vmatpush1.bf16.msra.mxu0 0
    %359 = vmatprep.subr.bf16.mxu0 0
    %360 = vmatpush1.bf16.msra.mxu0 0
    %361 = vmatprep.subr.bf16.mxu0 0
    %362 = vmatpush1.bf16.msra.mxu0 0
    %363 = vmatprep.subr.bf16.mxu0 0
    %364 = vmatpush1.bf16.msra.mxu0 0
    %365 = vmatprep.mubr.bf16.mxu0 0
    %366 = vmatmul.mubr.bf16.gmra.mrb[0].mxu0 %v290
    %v367 = vpop.f32.mrb[0].mxu0
    %v368 = vadd.f32 %v179, %v367
    %v369 = vpop.f32.mrb[0].mxu0
    %v370 = vadd.f32 %v183, %v369
    %v371 = vpop.f32.mrb[0].mxu0
    %v372 = vpop.f32.mrb[0].mxu0
    %373 = vdwg.mxu0
    %374 = vmatprep.subr.bf16.mxu0 %v261
    %375 = vmatpush1.bf16.msra.mxu0 %v260
    %376 = vmatprep.subr.bf16.mxu0 %v269
    %377 = vmatpush1.bf16.msra.mxu0 %v268
    %378 = vmatprep.subr.bf16.mxu0 0
    %379 = vmatpush1.bf16.msra.mxu0 0
    %380 = vmatprep.subr.bf16.mxu0 0
    %381 = vmatpush1.bf16.msra.mxu0 0
    %382 = vmatprep.subr.bf16.mxu0 0
    %383 = vmatpush1.bf16.msra.mxu0 0
    %384 = vmatprep.subr.bf16.mxu0 0
    %385 = vmatpush1.bf16.msra.mxu0 0
    %386 = vmatprep.subr.bf16.mxu0 0
    %387 = vmatpush1.bf16.msra.mxu0 0
    %388 = vmatprep.subr.bf16.mxu0 0
    %389 = vmatpush1.bf16.msra.mxu0 0
    %390 = vmatprep.subr.bf16.mxu0 0
    %391 = vmatpush1.bf16.msra.mxu0 0
    %392 = vmatprep.subr.bf16.mxu0 0
    %393 = vmatpush1.bf16.msra.mxu0 0
    %394 = vmatprep.subr.bf16.mxu0 0
    %395 = vmatpush1.bf16.msra.mxu0 0
    %396 = vmatprep.subr.bf16.mxu0 0
    %397 = vmatpush1.bf16.msra.mxu0 0
    %398 = vmatprep.subr.bf16.mxu0 0
    %399 = vmatpush1.bf16.msra.mxu0 0
    %400 = vmatprep.subr.bf16.mxu0 0
    %401 = vmatpush1.bf16.msra.mxu0 0
    %402 = vmatprep.subr.bf16.mxu0 0
    %403 = vmatpush1.bf16.msra.mxu0 0
    %404 = vmatprep.subr.bf16.mxu0 0
    %405 = vmatpush1.bf16.msra.mxu0 0
    %406 = vmatprep.mubr.bf16.mxu0 0
    %407 = vmatmul.mubr.bf16.gmra.mrb[0].mxu0 %v290
    %v408 = vpop.f32.mrb[0].mxu0
    %v409 = vadd.f32 %v187, %v408
    %v410 = vpop.f32.mrb[0].mxu0
    %v411 = vadd.f32 %v191, %v410
    %v412 = vpop.f32.mrb[0].mxu0
    %v413 = vpop.f32.mrb[0].mxu0
    %414 = vdwg.mxu0
    %415 = vmatprep.subr.bf16.mxu0 %v263
    %416 = vmatpush1.bf16.msra.mxu0 %v262
    %417 = vmatprep.subr.bf16.mxu0 %v271
    %418 = vmatpush1.bf16.msra.mxu0 %v270
    %419 = vmatprep.subr.bf16.mxu0 0
    %420 = vmatpush1.bf16.msra.mxu0 0
    %421 = vmatprep.subr.bf16.mxu0 0
    %422 = vmatpush1.bf16.msra.mxu0 0
    %423 = vmatprep.subr.bf16.mxu0 0
    %424 = vmatpush1.bf16.msra.mxu0 0
    %425 = vmatprep.subr.bf16.mxu0 0
    %426 = vmatpush1.bf16.msra.mxu0 0
    %427 = vmatprep.subr.bf16.mxu0 0
    %428 = vmatpush1.bf16.msra.mxu0 0
    %429 = vmatprep.subr.bf16.mxu0 0
    %430 = vmatpush1.bf16.msra.mxu0 0
    %431 = vmatprep.subr.bf16.mxu0 0
    %432 = vmatpush1.bf16.msra.mxu0 0
    %433 = vmatprep.subr.bf16.mxu0 0
    %434 = vmatpush1.bf16.msra.mxu0 0
    %435 = vmatprep.subr.bf16.mxu0 0
    %436 = vmatpush1.bf16.msra.mxu0 0
    %437 = vmatprep.subr.bf16.mxu0 0
    %438 = vmatpush1.bf16.msra.mxu0 0
    %439 = vmatprep.subr.bf16.mxu0 0
    %440 = vmatpush1.bf16.msra.mxu0 0
    %441 = vmatprep.subr.bf16.mxu0 0
    %442 = vmatpush1.bf16.msra.mxu0 0
    %443 = vmatprep.subr.bf16.mxu0 0
    %444 = vmatpush1.bf16.msra.mxu0 0
    %445 = vmatprep.subr.bf16.mxu0 0
    %446 = vmatpush1.bf16.msra.mxu0 0
    %447 = vmatprep.mubr.bf16.mxu0 0
    %448 = vmatmul.mubr.bf16.gmra.mrb[0].mxu0 %v290
    %v449 = vpop.f32.mrb[0].mxu0
    %v450 = vadd.f32 %v195, %v449
    %v451 = vpop.f32.mrb[0].mxu0
    %v452 = vadd.f32 %v199, %v451
    %v453 = vpop.f32.mrb[0].mxu0
    %v454 = vpop.f32.mrb[0].mxu0
    %455 = vdwg.mxu0
    %v456 = vmax.f32 %v327, 0.0
    %v457 = vmax.f32 %v329, 0.0
    %v458 = vmax.f32 %v368, 0.0
    %v459 = vmax.f32 %v370, 0.0
    %v460 = vmax.f32 %v409, 0.0
    %v461 = vmax.f32 %v411, 0.0
    %v462 = vmax.f32 %v450, 0.0
    %v463 = vmax.f32 %v452, 0.0
    %v464 = vpack.c.bf16 %v456, %v456
    %v465 = vpack.c.bf16 %v457, %v457
    %v466 = vpack.c.bf16 %v458, %v458
    %v467 = vpack.c.bf16 %v459, %v459
    %v468 = vpack.c.bf16 %v460, %v460
    %v469 = vpack.c.bf16 %v461, %v461
    %v470 = vpack.c.bf16 %v462, %v462
    %v471 = vpack.c.bf16 %v463, %v463
    %v472 = vld [vmem:[#allocation8] sm:$0xff]
    %v473 = vld [vmem:[#allocation8 + $0x8] sm:$0xff]
    %v474 = vld [vmem:[#allocation8 + $0x10] sm:$0xff]
    %v475 = vld [vmem:[#allocation8 + $0x18] sm:$0xff]
    %v476 = vld [vmem:[#allocation8 + $0x20] sm:$0xff]
    %v477 = vld [vmem:[#allocation8 + $0x28] sm:$0xff]
    %v478 = vld [vmem:[#allocation8 + $0x30] sm:$0xff]
    %v479 = vld [vmem:[#allocation8 + $0x38] sm:$0xff]
    %v480 = vld [vmem:[#allocation8 + $0x40] sm:$0xff]
    %v481 = vld [vmem:[#allocation8 + $0x48] sm:$0xff]
    %v482 = vld [vmem:[#allocation8 + $0x50] sm:$0xff]
    %v483 = vld [vmem:[#allocation8 + $0x58] sm:$0xff]
    %v484 = vld [vmem:[#allocation8 + $0x60] sm:$0xff]
    %v485 = vld [vmem:[#allocation8 + $0x68] sm:$0xff]
    %v486 = vld [vmem:[#allocation8 + $0x70] sm:$0xff]
    %v487 = vld [vmem:[#allocation8 + $0x78] sm:$0xff]
    %v488 = vld [vmem:[#allocation8 + $0x80] sm:$0xff]
    %v489 = vld [vmem:[#allocation8 + $0x88] sm:$0xff]
    %v490 = vld [vmem:[#allocation8 + $0x90] sm:$0xff]
    %v491 = vld [vmem:[#allocation8 + $0x98] sm:$0xff]
    %v492 = vld [vmem:[#allocation8 + $0xa0] sm:$0xff]
    %v493 = vld [vmem:[#allocation8 + $0xa8] sm:$0xff]
    %v494 = vld [vmem:[#allocation8 + $0xb0] sm:$0xff]
    %v495 = vld [vmem:[#allocation8 + $0xb8] sm:$0xff]
    %v496 = vld [vmem:[#allocation8 + $0xc0] sm:$0xff]
    %v497 = vld [vmem:[#allocation8 + $0xc8] sm:$0xff]
    %v498 = vld [vmem:[#allocation8 + $0xd0] sm:$0xff]
    %v499 = vld [vmem:[#allocation8 + $0xd8] sm:$0xff]
    %v500 = vld [vmem:[#allocation8 + $0xe0] sm:$0xff]
    %v501 = vld [vmem:[#allocation8 + $0xe8] sm:$0xff]
    %v502 = vld [vmem:[#allocation8 + $0xf0] sm:$0xff]
    %v503 = vld [vmem:[#allocation8 + $0xf8] sm:$0xff]
    %v504 = vld [vmem:[#allocation8 + $0x100] sm:$0xff]
    %v505 = vld [vmem:[#allocation8 + $0x108] sm:$0xff]
    %v506 = vld [vmem:[#allocation8 + $0x110] sm:$0xff]
    %v507 = vld [vmem:[#allocation8 + $0x118] sm:$0xff]
    %v508 = vld [vmem:[#allocation8 + $0x120] sm:$0xff]
    %v509 = vld [vmem:[#allocation8 + $0x128] sm:$0xff]
    %v510 = vld [vmem:[#allocation8 + $0x130] sm:$0xff]
    %v511 = vld [vmem:[#allocation8 + $0x138] sm:$0xff]
    %v512 = vld [vmem:[#allocation8 + $0x140] sm:$0xff]
    %v513 = vld [vmem:[#allocation8 + $0x148] sm:$0xff]
    %v514 = vld [vmem:[#allocation8 + $0x150] sm:$0xff]
    %v515 = vld [vmem:[#allocation8 + $0x158] sm:$0xff]
    %v516 = vld [vmem:[#allocation8 + $0x160] sm:$0xff]
    %v517 = vld [vmem:[#allocation8 + $0x168] sm:$0xff]
    %v518 = vld [vmem:[#allocation8 + $0x170] sm:$0xff]
    %v519 = vld [vmem:[#allocation8 + $0x178] sm:$0xff]
    %v520 = vld [vmem:[#allocation8 + $0x180] sm:$0xff]
    %v521 = vld [vmem:[#allocation8 + $0x188] sm:$0xff]
    %v522 = vld [vmem:[#allocation8 + $0x190] sm:$0xff]
    %v523 = vld [vmem:[#allocation8 + $0x198] sm:$0xff]
    %v524 = vld [vmem:[#allocation8 + $0x1a0] sm:$0xff]
    %v525 = vld [vmem:[#allocation8 + $0x1a8] sm:$0xff]
    %v526 = vld [vmem:[#allocation8 + $0x1b0] sm:$0xff]
    %v527 = vld [vmem:[#allocation8 + $0x1b8] sm:$0xff]
    %v528 = vld [vmem:[#allocation8 + $0x1c0] sm:$0xff]
    %v529 = vld [vmem:[#allocation8 + $0x1c8] sm:$0xff]
    %v530 = vld [vmem:[#allocation8 + $0x1d0] sm:$0xff]
    %v531 = vld [vmem:[#allocation8 + $0x1d8] sm:$0xff]
    %v532 = vld [vmem:[#allocation8 + $0x1e0] sm:$0xff]
    %v533 = vld [vmem:[#allocation8 + $0x1e8] sm:$0xff]
    %v534 = vld [vmem:[#allocation8 + $0x1f0] sm:$0xff]
    %v535 = vld [vmem:[#allocation8 + $0x1f8] sm:$0xff]
    %v536 = vld [vmem:[#allocation8 + $0x200] sm:$0xff]
    %v537 = vld [vmem:[#allocation8 + $0x208] sm:$0xff]
    %v538 = vld [vmem:[#allocation8 + $0x210] sm:$0xff]
    %v539 = vld [vmem:[#allocation8 + $0x218] sm:$0xff]
    %v540 = vld [vmem:[#allocation8 + $0x220] sm:$0xff]
    %v541 = vld [vmem:[#allocation8 + $0x228] sm:$0xff]
    %v542 = vld [vmem:[#allocation8 + $0x230] sm:$0xff]
    %v543 = vld [vmem:[#allocation8 + $0x238] sm:$0xff]
    %v544 = vld [vmem:[#allocation8 + $0x240] sm:$0xff]
    %v545 = vld [vmem:[#allocation8 + $0x248] sm:$0xff]
    %v546 = vld [vmem:[#allocation8 + $0x250] sm:$0xff]
    %v547 = vld [vmem:[#allocation8 + $0x258] sm:$0xff]
    %v548 = vld [vmem:[#allocation8 + $0x260] sm:$0xff]
    %v549 = vld [vmem:[#allocation8 + $0x268] sm:$0xff]
    %v550 = vld [vmem:[#allocation8 + $0x270] sm:$0xff]
    %v551 = vld [vmem:[#allocation8 + $0x278] sm:$0xff]
    %v552 = vld [vmem:[#allocation8 + $0x280] sm:$0xff]
    %v553 = vld [vmem:[#allocation8 + $0x288] sm:$0xff]
    %v554 = vld [vmem:[#allocation8 + $0x290] sm:$0xff]
    %v555 = vld [vmem:[#allocation8 + $0x298] sm:$0xff]
    %v556 = vld [vmem:[#allocation8 + $0x2a0] sm:$0xff]
    %v557 = vld [vmem:[#allocation8 + $0x2a8] sm:$0xff]
    %v558 = vld [vmem:[#allocation8 + $0x2b0] sm:$0xff]
    %v559 = vld [vmem:[#allocation8 + $0x2b8] sm:$0xff]
    %v560 = vld [vmem:[#allocation8 + $0x2c0] sm:$0xff]
    %v561 = vld [vmem:[#allocation8 + $0x2c8] sm:$0xff]
    %v562 = vld [vmem:[#allocation8 + $0x2d0] sm:$0xff]
    %v563 = vld [vmem:[#allocation8 + $0x2d8] sm:$0xff]
    %v564 = vld [vmem:[#allocation8 + $0x2e0] sm:$0xff]
    %v565 = vld [vmem:[#allocation8 + $0x2e8] sm:$0xff]
    %v566 = vld [vmem:[#allocation8 + $0x2f0] sm:$0xff]
    %v567 = vld [vmem:[#allocation8 + $0x2f8] sm:$0xff]
    %v568 = vld [vmem:[#allocation8 + $0x300] sm:$0xff]
    %v569 = vld [vmem:[#allocation8 + $0x308] sm:$0xff]
    %v570 = vld [vmem:[#allocation8 + $0x310] sm:$0xff]
    %v571 = vld [vmem:[#allocation8 + $0x318] sm:$0xff]
    %v572 = vld [vmem:[#allocation8 + $0x320] sm:$0xff]
    %v573 = vld [vmem:[#allocation8 + $0x328] sm:$0xff]
    %v574 = vld [vmem:[#allocation8 + $0x330] sm:$0xff]
    %v575 = vld [vmem:[#allocation8 + $0x338] sm:$0xff]
    %v576 = vld [vmem:[#allocation8 + $0x340] sm:$0xff]
    %v577 = vld [vmem:[#allocation8 + $0x348] sm:$0xff]
    %v578 = vld [vmem:[#allocation8 + $0x350] sm:$0xff]
    %v579 = vld [vmem:[#allocation8 + $0x358] sm:$0xff]
    %v580 = vld [vmem:[#allocation8 + $0x360] sm:$0xff]
    %v581 = vld [vmem:[#allocation8 + $0x368] sm:$0xff]
    %v582 = vld [vmem:[#allocation8 + $0x370] sm:$0xff]
    %v583 = vld [vmem:[#allocation8 + $0x378] sm:$0xff]
    %v584 = vld [vmem:[#allocation8 + $0x380] sm:$0xff]
    %v585 = vld [vmem:[#allocation8 + $0x388] sm:$0xff]
    %v586 = vld [vmem:[#allocation8 + $0x390] sm:$0xff]
    %v587 = vld [vmem:[#allocation8 + $0x398] sm:$0xff]
    %v588 = vld [vmem:[#allocation8 + $0x3a0] sm:$0xff]
    %v589 = vld [vmem:[#allocation8 + $0x3a8] sm:$0xff]
    %v590 = vld [vmem:[#allocation8 + $0x3b0] sm:$0xff]
    %v591 = vld [vmem:[#allocation8 + $0x3b8] sm:$0xff]
    %v592 = vld [vmem:[#allocation8 + $0x3c0] sm:$0xff]
    %v593 = vld [vmem:[#allocation8 + $0x3c8] sm:$0xff]
    %v594 = vld [vmem:[#allocation8 + $0x3d0] sm:$0xff]
    %v595 = vld [vmem:[#allocation8 + $0x3d8] sm:$0xff]
    %v596 = vld [vmem:[#allocation8 + $0x3e0] sm:$0xff]
    %v597 = vld [vmem:[#allocation8 + $0x3e8] sm:$0xff]
    %v598 = vld [vmem:[#allocation8 + $0x3f0] sm:$0xff]
    %v599 = vld [vmem:[#allocation8 + $0x3f8] sm:$0xff]
    %v600 = vld [vmem:[#allocation8 + $0x400] sm:$0xff]
    %v601 = vld [vmem:[#allocation8 + $0x408] sm:$0xff]
    %v602 = vld [vmem:[#allocation8 + $0x410] sm:$0xff]
    %v603 = vld [vmem:[#allocation8 + $0x418] sm:$0xff]
    %v604 = vld [vmem:[#allocation8 + $0x420] sm:$0xff]
    %v605 = vld [vmem:[#allocation8 + $0x428] sm:$0xff]
    %v606 = vld [vmem:[#allocation8 + $0x430] sm:$0xff]
    %v607 = vld [vmem:[#allocation8 + $0x438] sm:$0xff]
    %v608 = vld [vmem:[#allocation8 + $0x440] sm:$0xff]
    %v609 = vld [vmem:[#allocation8 + $0x448] sm:$0xff]
    %v610 = vld [vmem:[#allocation8 + $0x450] sm:$0xff]
    %v611 = vld [vmem:[#allocation8 + $0x458] sm:$0xff]
    %v612 = vld [vmem:[#allocation8 + $0x460] sm:$0xff]
    %v613 = vld [vmem:[#allocation8 + $0x468] sm:$0xff]
    %v614 = vld [vmem:[#allocation8 + $0x470] sm:$0xff]
    %v615 = vld [vmem:[#allocation8 + $0x478] sm:$0xff]
    %v616 = vld [vmem:[#allocation8 + $0x480] sm:$0xff]
    %v617 = vld [vmem:[#allocation8 + $0x488] sm:$0xff]
    %v618 = vld [vmem:[#allocation8 + $0x490] sm:$0xff]
    %v619 = vld [vmem:[#allocation8 + $0x498] sm:$0xff]
    %v620 = vld [vmem:[#allocation8 + $0x4a0] sm:$0xff]
    %v621 = vld [vmem:[#allocation8 + $0x4a8] sm:$0xff]
    %v622 = vld [vmem:[#allocation8 + $0x4b0] sm:$0xff]
    %v623 = vld [vmem:[#allocation8 + $0x4b8] sm:$0xff]
    %v624 = vld [vmem:[#allocation8 + $0x4c0] sm:$0xff]
    %v625 = vld [vmem:[#allocation8 + $0x4c8] sm:$0xff]
    %v626 = vld [vmem:[#allocation8 + $0x4d0] sm:$0xff]
    %v627 = vld [vmem:[#allocation8 + $0x4d8] sm:$0xff]
    %v628 = vld [vmem:[#allocation8 + $0x4e0] sm:$0xff]
    %v629 = vld [vmem:[#allocation8 + $0x4e8] sm:$0xff]
    %v630 = vld [vmem:[#allocation8 + $0x4f0] sm:$0xff]
    %v631 = vld [vmem:[#allocation8 + $0x4f8] sm:$0xff]
    %v632 = vld [vmem:[#allocation8 + $0x500] sm:$0xff]
    %v633 = vld [vmem:[#allocation8 + $0x508] sm:$0xff]
    %v634 = vld [vmem:[#allocation8 + $0x510] sm:$0xff]
    %v635 = vld [vmem:[#allocation8 + $0x518] sm:$0xff]
    %v636 = vld [vmem:[#allocation8 + $0x520] sm:$0xff]
    %v637 = vld [vmem:[#allocation8 + $0x528] sm:$0xff]
    %v638 = vld [vmem:[#allocation8 + $0x530] sm:$0xff]
    %v639 = vld [vmem:[#allocation8 + $0x538] sm:$0xff]
    %v640 = vld [vmem:[#allocation8 + $0x540] sm:$0xff]
    %v641 = vld [vmem:[#allocation8 + $0x548] sm:$0xff]
    %v642 = vld [vmem:[#allocation8 + $0x550] sm:$0xff]
    %v643 = vld [vmem:[#allocation8 + $0x558] sm:$0xff]
    %v644 = vld [vmem:[#allocation8 + $0x560] sm:$0xff]
    %v645 = vld [vmem:[#allocation8 + $0x568] sm:$0xff]
    %v646 = vld [vmem:[#allocation8 + $0x570] sm:$0xff]
    %v647 = vld [vmem:[#allocation8 + $0x578] sm:$0xff]
    %v648 = vld [vmem:[#allocation8 + $0x580] sm:$0xff]
    %v649 = vld [vmem:[#allocation8 + $0x588] sm:$0xff]
    %v650 = vld [vmem:[#allocation8 + $0x590] sm:$0xff]
    %v651 = vld [vmem:[#allocation8 + $0x598] sm:$0xff]
    %v652 = vld [vmem:[#allocation8 + $0x5a0] sm:$0xff]
    %v653 = vld [vmem:[#allocation8 + $0x5a8] sm:$0xff]
    %v654 = vld [vmem:[#allocation8 + $0x5b0] sm:$0xff]
    %v655 = vld [vmem:[#allocation8 + $0x5b8] sm:$0xff]
    %v656 = vld [vmem:[#allocation8 + $0x5c0] sm:$0xff]
    %v657 = vld [vmem:[#allocation8 + $0x5c8] sm:$0xff]
    %v658 = vld [vmem:[#allocation8 + $0x5d0] sm:$0xff]
    %v659 = vld [vmem:[#allocation8 + $0x5d8] sm:$0xff]
    %v660 = vld [vmem:[#allocation8 + $0x5e0] sm:$0xff]
    %v661 = vld [vmem:[#allocation8 + $0x5e8] sm:$0xff]
    %v662 = vld [vmem:[#allocation8 + $0x5f0] sm:$0xff]
    %v663 = vld [vmem:[#allocation8 + $0x5f8] sm:$0xff]
    %v664 = vld [vmem:[#allocation8 + $0x600] sm:$0xff]
    %v665 = vld [vmem:[#allocation8 + $0x608] sm:$0xff]
    %v666 = vld [vmem:[#allocation8 + $0x610] sm:$0xff]
    %v667 = vld [vmem:[#allocation8 + $0x618] sm:$0xff]
    %v668 = vld [vmem:[#allocation8 + $0x620] sm:$0xff]
    %v669 = vld [vmem:[#allocation8 + $0x628] sm:$0xff]
    %v670 = vld [vmem:[#allocation8 + $0x630] sm:$0xff]
    %v671 = vld [vmem:[#allocation8 + $0x638] sm:$0xff]
    %v672 = vld [vmem:[#allocation8 + $0x640] sm:$0xff]
    %v673 = vld [vmem:[#allocation8 + $0x648] sm:$0xff]
    %v674 = vld [vmem:[#allocation8 + $0x650] sm:$0xff]
    %v675 = vld [vmem:[#allocation8 + $0x658] sm:$0xff]
    %v676 = vld [vmem:[#allocation8 + $0x660] sm:$0xff]
    %v677 = vld [vmem:[#allocation8 + $0x668] sm:$0xff]
    %v678 = vld [vmem:[#allocation8 + $0x670] sm:$0xff]
    %v679 = vld [vmem:[#allocation8 + $0x678] sm:$0xff]
    %v680 = vld [vmem:[#allocation8 + $0x680] sm:$0xff]
    %v681 = vld [vmem:[#allocation8 + $0x688] sm:$0xff]
    %v682 = vld [vmem:[#allocation8 + $0x690] sm:$0xff]
    %v683 = vld [vmem:[#allocation8 + $0x698] sm:$0xff]
    %v684 = vld [vmem:[#allocation8 + $0x6a0] sm:$0xff]
    %v685 = vld [vmem:[#allocation8 + $0x6a8] sm:$0xff]
    %v686 = vld [vmem:[#allocation8 + $0x6b0] sm:$0xff]
    %v687 = vld [vmem:[#allocation8 + $0x6b8] sm:$0xff]
    %v688 = vld [vmem:[#allocation8 + $0x6c0] sm:$0xff]
    %v689 = vld [vmem:[#allocation8 + $0x6c8] sm:$0xff]
    %v690 = vld [vmem:[#allocation8 + $0x6d0] sm:$0xff]
    %v691 = vld [vmem:[#allocation8 + $0x6d8] sm:$0xff]
    %v692 = vld [vmem:[#allocation8 + $0x6e0] sm:$0xff]
    %v693 = vld [vmem:[#allocation8 + $0x6e8] sm:$0xff]
    %v694 = vld [vmem:[#allocation8 + $0x6f0] sm:$0xff]
    %v695 = vld [vmem:[#allocation8 + $0x6f8] sm:$0xff]
    %v696 = vld [vmem:[#allocation8 + $0x700] sm:$0xff]
    %v697 = vld [vmem:[#allocation8 + $0x708] sm:$0xff]
    %v698 = vld [vmem:[#allocation8 + $0x710] sm:$0xff]
    %v699 = vld [vmem:[#allocation8 + $0x718] sm:$0xff]
    %v700 = vld [vmem:[#allocation8 + $0x720] sm:$0xff]
    %v701 = vld [vmem:[#allocation8 + $0x728] sm:$0xff]
    %v702 = vld [vmem:[#allocation8 + $0x730] sm:$0xff]
    %v703 = vld [vmem:[#allocation8 + $0x738] sm:$0xff]
    %v704 = vld [vmem:[#allocation8 + $0x740] sm:$0xff]
    %v705 = vld [vmem:[#allocation8 + $0x748] sm:$0xff]
    %v706 = vld [vmem:[#allocation8 + $0x750] sm:$0xff]
    %v707 = vld [vmem:[#allocation8 + $0x758] sm:$0xff]
    %v708 = vld [vmem:[#allocation8 + $0x760] sm:$0xff]
    %v709 = vld [vmem:[#allocation8 + $0x768] sm:$0xff]
    %v710 = vld [vmem:[#allocation8 + $0x770] sm:$0xff]
    %v711 = vld [vmem:[#allocation8 + $0x778] sm:$0xff]
    %v712 = vld [vmem:[#allocation8 + $0x780] sm:$0xff]
    %v713 = vld [vmem:[#allocation8 + $0x788] sm:$0xff]
    %v714 = vld [vmem:[#allocation8 + $0x790] sm:$0xff]
    %v715 = vld [vmem:[#allocation8 + $0x798] sm:$0xff]
    %v716 = vld [vmem:[#allocation8 + $0x7a0] sm:$0xff]
    %v717 = vld [vmem:[#allocation8 + $0x7a8] sm:$0xff]
    %v718 = vld [vmem:[#allocation8 + $0x7b0] sm:$0xff]
    %v719 = vld [vmem:[#allocation8 + $0x7b8] sm:$0xff]
    %v720 = vld [vmem:[#allocation8 + $0x7c0] sm:$0xff]
    %v721 = vld [vmem:[#allocation8 + $0x7c8] sm:$0xff]
    %v722 = vld [vmem:[#allocation8 + $0x7d0] sm:$0xff]
    %v723 = vld [vmem:[#allocation8 + $0x7d8] sm:$0xff]
    %v724 = vld [vmem:[#allocation8 + $0x7e0] sm:$0xff]
    %v725 = vld [vmem:[#allocation8 + $0x7e8] sm:$0xff]
    %v726 = vld [vmem:[#allocation8 + $0x7f0] sm:$0xff]
    %v727 = vld [vmem:[#allocation8 + $0x7f8] sm:$0xff]
    %v728 = vld [vmem:[#allocation8 + $0x800] sm:$0xff]
    %v729 = vld [vmem:[#allocation8 + $0x808] sm:$0xff]
    %v730 = vld [vmem:[#allocation8 + $0x810] sm:$0xff]
    %v731 = vld [vmem:[#allocation8 + $0x818] sm:$0xff]
    %v732 = vld [vmem:[#allocation8 + $0x820] sm:$0xff]
    %v733 = vld [vmem:[#allocation8 + $0x828] sm:$0xff]
    %v734 = vld [vmem:[#allocation8 + $0x830] sm:$0xff]
    %v735 = vld [vmem:[#allocation8 + $0x838] sm:$0xff]
    %v736 = vld [vmem:[#allocation8 + $0x840] sm:$0xff]
    %v737 = vld [vmem:[#allocation8 + $0x848] sm:$0xff]
    %v738 = vld [vmem:[#allocation8 + $0x850] sm:$0xff]
    %v739 = vld [vmem:[#allocation8 + $0x858] sm:$0xff]
    %v740 = vld [vmem:[#allocation8 + $0x860] sm:$0xff]
    %v741 = vld [vmem:[#allocation8 + $0x868] sm:$0xff]
    %v742 = vld [vmem:[#allocation8 + $0x870] sm:$0xff]
    %v743 = vld [vmem:[#allocation8 + $0x878] sm:$0xff]
    %v744 = vld [vmem:[#allocation8 + $0x880] sm:$0xff]
    %v745 = vld [vmem:[#allocation8 + $0x888] sm:$0xff]
    %v746 = vld [vmem:[#allocation8 + $0x890] sm:$0xff]
    %v747 = vld [vmem:[#allocation8 + $0x898] sm:$0xff]
    %v748 = vld [vmem:[#allocation8 + $0x8a0] sm:$0xff]
    %v749 = vld [vmem:[#allocation8 + $0x8a8] sm:$0xff]
    %v750 = vld [vmem:[#allocation8 + $0x8b0] sm:$0xff]
    %v751 = vld [vmem:[#allocation8 + $0x8b8] sm:$0xff]
    %v752 = vld [vmem:[#allocation8 + $0x8c0] sm:$0xff]
    %v753 = vld [vmem:[#allocation8 + $0x8c8] sm:$0xff]
    %v754 = vld [vmem:[#allocation8 + $0x8d0] sm:$0xff]
    %v755 = vld [vmem:[#allocation8 + $0x8d8] sm:$0xff]
    %v756 = vld [vmem:[#allocation8 + $0x8e0] sm:$0xff]
    %v757 = vld [vmem:[#allocation8 + $0x8e8] sm:$0xff]
    %v758 = vld [vmem:[#allocation8 + $0x8f0] sm:$0xff]
    %v759 = vld [vmem:[#allocation8 + $0x8f8] sm:$0xff]
    %v760 = vld [vmem:[#allocation8 + $0x900] sm:$0xff]
    %v761 = vld [vmem:[#allocation8 + $0x908] sm:$0xff]
    %v762 = vld [vmem:[#allocation8 + $0x910] sm:$0xff]
    %v763 = vld [vmem:[#allocation8 + $0x918] sm:$0xff]
    %v764 = vld [vmem:[#allocation8 + $0x920] sm:$0xff]
    %v765 = vld [vmem:[#allocation8 + $0x928] sm:$0xff]
    %v766 = vld [vmem:[#allocation8 + $0x930] sm:$0xff]
    %v767 = vld [vmem:[#allocation8 + $0x938] sm:$0xff]
    %v768 = vld [vmem:[#allocation8 + $0x940] sm:$0xff]
    %v769 = vld [vmem:[#allocation8 + $0x948] sm:$0xff]
    %v770 = vld [vmem:[#allocation8 + $0x950] sm:$0xff]
    %v771 = vld [vmem:[#allocation8 + $0x958] sm:$0xff]
    %v772 = vld [vmem:[#allocation8 + $0x960] sm:$0xff]
    %v773 = vld [vmem:[#allocation8 + $0x968] sm:$0xff]
    %v774 = vld [vmem:[#allocation8 + $0x970] sm:$0xff]
    %v775 = vld [vmem:[#allocation8 + $0x978] sm:$0xff]
    %v776 = vld [vmem:[#allocation8 + $0x980] sm:$0xff]
    %v777 = vld [vmem:[#allocation8 + $0x988] sm:$0xff]
    %v778 = vld [vmem:[#allocation8 + $0x990] sm:$0xff]
    %v779 = vld [vmem:[#allocation8 + $0x998] sm:$0xff]
    %v780 = vld [vmem:[#allocation8 + $0x9a0] sm:$0xff]
    %v781 = vld [vmem:[#allocation8 + $0x9a8] sm:$0xff]
    %v782 = vld [vmem:[#allocation8 + $0x9b0] sm:$0xff]
    %v783 = vld [vmem:[#allocation8 + $0x9b8] sm:$0xff]
    %v784 = vld [vmem:[#allocation8 + $0x9c0] sm:$0xff]
    %v785 = vld [vmem:[#allocation8 + $0x9c8] sm:$0xff]
    %v786 = vld [vmem:[#allocation8 + $0x9d0] sm:$0xff]
    %v787 = vld [vmem:[#allocation8 + $0x9d8] sm:$0xff]
    %v788 = vld [vmem:[#allocation8 + $0x9e0] sm:$0xff]
    %v789 = vld [vmem:[#allocation8 + $0x9e8] sm:$0xff]
    %v790 = vld [vmem:[#allocation8 + $0x9f0] sm:$0xff]
    %v791 = vld [vmem:[#allocation8 + $0x9f8] sm:$0xff]
    %v792 = vld [vmem:[#allocation8 + $0xa00] sm:$0xff]
    %v793 = vld [vmem:[#allocation8 + $0xa08] sm:$0xff]
    %v794 = vld [vmem:[#allocation8 + $0xa10] sm:$0xff]
    %v795 = vld [vmem:[#allocation8 + $0xa18] sm:$0xff]
    %v796 = vld [vmem:[#allocation8 + $0xa20] sm:$0xff]
    %v797 = vld [vmem:[#allocation8 + $0xa28] sm:$0xff]
    %v798 = vld [vmem:[#allocation8 + $0xa30] sm:$0xff]
    %v799 = vld [vmem:[#allocation8 + $0xa38] sm:$0xff]
    %v800 = vld [vmem:[#allocation8 + $0xa40] sm:$0xff]
    %v801 = vld [vmem:[#allocation8 + $0xa48] sm:$0xff]
    %v802 = vld [vmem:[#allocation8 + $0xa50] sm:$0xff]
    %v803 = vld [vmem:[#allocation8 + $0xa58] sm:$0xff]
    %v804 = vld [vmem:[#allocation8 + $0xa60] sm:$0xff]
    %v805 = vld [vmem:[#allocation8 + $0xa68] sm:$0xff]
    %v806 = vld [vmem:[#allocation8 + $0xa70] sm:$0xff]
    %v807 = vld [vmem:[#allocation8 + $0xa78] sm:$0xff]
    %v808 = vld [vmem:[#allocation8 + $0xa80] sm:$0xff]
    %v809 = vld [vmem:[#allocation8 + $0xa88] sm:$0xff]
    %v810 = vld [vmem:[#allocation8 + $0xa90] sm:$0xff]
    %v811 = vld [vmem:[#allocation8 + $0xa98] sm:$0xff]
    %v812 = vld [vmem:[#allocation8 + $0xaa0] sm:$0xff]
    %v813 = vld [vmem:[#allocation8 + $0xaa8] sm:$0xff]
    %v814 = vld [vmem:[#allocation8 + $0xab0] sm:$0xff]
    %v815 = vld [vmem:[#allocation8 + $0xab8] sm:$0xff]
    %v816 = vld [vmem:[#allocation8 + $0xac0] sm:$0xff]
    %v817 = vld [vmem:[#allocation8 + $0xac8] sm:$0xff]
    %v818 = vld [vmem:[#allocation8 + $0xad0] sm:$0xff]
    %v819 = vld [vmem:[#allocation8 + $0xad8] sm:$0xff]
    %v820 = vld [vmem:[#allocation8 + $0xae0] sm:$0xff]
    %v821 = vld [vmem:[#allocation8 + $0xae8] sm:$0xff]
    %v822 = vld [vmem:[#allocation8 + $0xaf0] sm:$0xff]
    %v823 = vld [vmem:[#allocation8 + $0xaf8] sm:$0xff]
    %v824 = vld [vmem:[#allocation8 + $0xb00] sm:$0xff]
    %v825 = vld [vmem:[#allocation8 + $0xb08] sm:$0xff]
    %v826 = vld [vmem:[#allocation8 + $0xb10] sm:$0xff]
    %v827 = vld [vmem:[#allocation8 + $0xb18] sm:$0xff]
    %v828 = vld [vmem:[#allocation8 + $0xb20] sm:$0xff]
    %v829 = vld [vmem:[#allocation8 + $0xb28] sm:$0xff]
    %v830 = vld [vmem:[#allocation8 + $0xb30] sm:$0xff]
    %v831 = vld [vmem:[#allocation8 + $0xb38] sm:$0xff]
    %v832 = vld [vmem:[#allocation8 + $0xb40] sm:$0xff]
    %v833 = vld [vmem:[#allocation8 + $0xb48] sm:$0xff]
    %v834 = vld [vmem:[#allocation8 + $0xb50] sm:$0xff]
    %v835 = vld [vmem:[#allocation8 + $0xb58] sm:$0xff]
    %v836 = vld [vmem:[#allocation8 + $0xb60] sm:$0xff]
    %v837 = vld [vmem:[#allocation8 + $0xb68] sm:$0xff]
    %v838 = vld [vmem:[#allocation8 + $0xb70] sm:$0xff]
    %v839 = vld [vmem:[#allocation8 + $0xb78] sm:$0xff]
    %v840 = vld [vmem:[#allocation8 + $0xb80] sm:$0xff]
    %v841 = vld [vmem:[#allocation8 + $0xb88] sm:$0xff]
    %v842 = vld [vmem:[#allocation8 + $0xb90] sm:$0xff]
    %v843 = vld [vmem:[#allocation8 + $0xb98] sm:$0xff]
    %v844 = vld [vmem:[#allocation8 + $0xba0] sm:$0xff]
    %v845 = vld [vmem:[#allocation8 + $0xba8] sm:$0xff]
    %v846 = vld [vmem:[#allocation8 + $0xbb0] sm:$0xff]
    %v847 = vld [vmem:[#allocation8 + $0xbb8] sm:$0xff]
    %v848 = vld [vmem:[#allocation8 + $0xbc0] sm:$0xff]
    %v849 = vld [vmem:[#allocation8 + $0xbc8] sm:$0xff]
    %v850 = vld [vmem:[#allocation8 + $0xbd0] sm:$0xff]
    %v851 = vld [vmem:[#allocation8 + $0xbd8] sm:$0xff]
    %v852 = vld [vmem:[#allocation8 + $0xbe0] sm:$0xff]
    %v853 = vld [vmem:[#allocation8 + $0xbe8] sm:$0xff]
    %v854 = vld [vmem:[#allocation8 + $0xbf0] sm:$0xff]
    %v855 = vld [vmem:[#allocation8 + $0xbf8] sm:$0xff]
    %v856 = vld [vmem:[#allocation10] sm:$0x3f]
    %v858 = vlaneseq
    %v859 = vshrl.u32 %v858, 7
    %v860 = vsub.s32 0, %v859
    %v861 = vrot.slane %v856, %v860
    %v862 = vlaneseq
    %v863 = vshrl.u32 %v862, 7
    %v864 = vsub.s32 1, %v863
    %v865 = vrot.slane %v856, %v864
    %v866 = vlaneseq
    %v867 = vshrl.u32 %v866, 7
    %v868 = vsub.s32 2, %v867
    %v869 = vrot.slane %v856, %v868
    %v870 = vlaneseq
    %v871 = vshrl.u32 %v870, 7
    %v872 = vsub.s32 3, %v871
    %v873 = vrot.slane %v856, %v872
    %v874 = vlaneseq
    %v875 = vshrl.u32 %v874, 7
    %v876 = vsub.s32 4, %v875
    %v877 = vrot.slane %v856, %v876
    %v878 = vlaneseq
    %v879 = vshrl.u32 %v878, 7
    %v880 = vsub.s32 5, %v879
    %v881 = vrot.slane %v856, %v880
    %v1272 = vunpack.c.l.b16 %v472
    %v1273 = vunpack.c.h.b16 %v472
    %v1274 = vunpack.c.l.b16 %v473
    %v1275 = vunpack.c.h.b16 %v473
    %v1276 = vunpack.c.l.b16 %v474
    %v1277 = vunpack.c.h.b16 %v474
    %v1278 = vunpack.c.l.b16 %v475
    %v1279 = vunpack.c.h.b16 %v475
    %v1280 = vunpack.c.l.b16 %v476
    %v1281 = vunpack.c.h.b16 %v476
    %v1282 = vunpack.c.l.b16 %v477
    %v1283 = vunpack.c.h.b16 %v477
    %v1284 = vunpack.c.l.b16 %v478
    %v1285 = vunpack.c.h.b16 %v478
    %v1286 = vunpack.c.l.b16 %v479
    %v1287 = vunpack.c.h.b16 %v479
    %v1288 = vunpack.c.l.b16 %v480
    %v1289 = vunpack.c.h.b16 %v480
    %v1290 = vunpack.c.l.b16 %v481
    %v1291 = vunpack.c.h.b16 %v481
    %v1292 = vunpack.c.l.b16 %v482
    %v1293 = vunpack.c.h.b16 %v482
    %v1294 = vunpack.c.l.b16 %v483
    %v1295 = vunpack.c.h.b16 %v483
    %v1296 = vunpack.c.l.b16 %v484
    %v1297 = vunpack.c.h.b16 %v484
    %v1298 = vunpack.c.l.b16 %v485
    %v1299 = vunpack.c.h.b16 %v485
    %v1300 = vunpack.c.l.b16 %v486
    %v1301 = vunpack.c.h.b16 %v486
    %v1302 = vunpack.c.l.b16 %v487
    %v1303 = vunpack.c.h.b16 %v487
    %v1304 = vunpack.c.l.b16 %v488
    %v1305 = vunpack.c.h.b16 %v488
    %v1306 = vunpack.c.l.b16 %v489
    %v1307 = vunpack.c.h.b16 %v489
    %v1308 = vunpack.c.l.b16 %v490
    %v1309 = vunpack.c.h.b16 %v490
    %v1310 = vunpack.c.l.b16 %v491
    %v1311 = vunpack.c.h.b16 %v491
    %v1312 = vunpack.c.l.b16 %v492
    %v1313 = vunpack.c.h.b16 %v492
    %v1314 = vunpack.c.l.b16 %v493
    %v1315 = vunpack.c.h.b16 %v493
    %v1316 = vunpack.c.l.b16 %v494
    %v1317 = vunpack.c.h.b16 %v494
    %v1318 = vunpack.c.l.b16 %v495
    %v1319 = vunpack.c.h.b16 %v495
    %v1320 = vunpack.c.l.b16 %v496
    %v1321 = vunpack.c.h.b16 %v496
    %v1322 = vunpack.c.l.b16 %v497
    %v1323 = vunpack.c.h.b16 %v497
    %v1324 = vunpack.c.l.b16 %v498
    %v1325 = vunpack.c.h.b16 %v498
    %v1326 = vunpack.c.l.b16 %v499
    %v1327 = vunpack.c.h.b16 %v499
    %v1328 = vunpack.c.l.b16 %v500
    %v1329 = vunpack.c.h.b16 %v500
    %v1330 = vunpack.c.l.b16 %v501
    %v1331 = vunpack.c.h.b16 %v501
    %v1332 = vunpack.c.l.b16 %v502
    %v1333 = vunpack.c.h.b16 %v502
    %v1334 = vunpack.c.l.b16 %v503
    %v1335 = vunpack.c.h.b16 %v503
    %v1336 = vunpack.c.l.b16 %v504
    %v1337 = vunpack.c.h.b16 %v504
    %v1338 = vunpack.c.l.b16 %v505
    %v1339 = vunpack.c.h.b16 %v505
    %v1340 = vunpack.c.l.b16 %v506
    %v1341 = vunpack.c.h.b16 %v506
    %v1342 = vunpack.c.l.b16 %v507
    %v1343 = vunpack.c.h.b16 %v507
    %v1344 = vunpack.c.l.b16 %v508
    %v1345 = vunpack.c.h.b16 %v508
    %v1346 = vunpack.c.l.b16 %v509
    %v1347 = vunpack.c.h.b16 %v509
    %v1348 = vunpack.c.l.b16 %v510
    %v1349 = vunpack.c.h.b16 %v510
    %v1350 = vunpack.c.l.b16 %v511
    %v1351 = vunpack.c.h.b16 %v511
    %v1352 = vunpack.c.l.b16 %v512
    %v1353 = vunpack.c.h.b16 %v512
    %v1354 = vunpack.c.l.b16 %v513
    %v1355 = vunpack.c.h.b16 %v513
    %v1356 = vunpack.c.l.b16 %v514
    %v1357 = vunpack.c.h.b16 %v514
    %v1358 = vunpack.c.l.b16 %v515
    %v1359 = vunpack.c.h.b16 %v515
    %v1360 = vunpack.c.l.b16 %v516
    %v1361 = vunpack.c.h.b16 %v516
    %v1362 = vunpack.c.l.b16 %v517
    %v1363 = vunpack.c.h.b16 %v517
    %v1364 = vunpack.c.l.b16 %v518
    %v1365 = vunpack.c.h.b16 %v518
    %v1366 = vunpack.c.l.b16 %v519
    %v1367 = vunpack.c.h.b16 %v519
    %v1368 = vunpack.c.l.b16 %v520
    %v1369 = vunpack.c.h.b16 %v520
    %v1370 = vunpack.c.l.b16 %v521
    %v1371 = vunpack.c.h.b16 %v521
    %v1372 = vunpack.c.l.b16 %v522
    %v1373 = vunpack.c.h.b16 %v522
    %v1374 = vunpack.c.l.b16 %v523
    %v1375 = vunpack.c.h.b16 %v523
    %v1376 = vunpack.c.l.b16 %v524
    %v1377 = vunpack.c.h.b16 %v524
    %v1378 = vunpack.c.l.b16 %v525
    %v1379 = vunpack.c.h.b16 %v525
    %v1380 = vunpack.c.l.b16 %v526
    %v1381 = vunpack.c.h.b16 %v526
    %v1382 = vunpack.c.l.b16 %v527
    %v1383 = vunpack.c.h.b16 %v527
    %v1384 = vunpack.c.l.b16 %v528
    %v1385 = vunpack.c.h.b16 %v528
    %v1386 = vunpack.c.l.b16 %v529
    %v1387 = vunpack.c.h.b16 %v529
    %v1388 = vunpack.c.l.b16 %v530
    %v1389 = vunpack.c.h.b16 %v530
    %v1390 = vunpack.c.l.b16 %v531
    %v1391 = vunpack.c.h.b16 %v531
    %v1392 = vunpack.c.l.b16 %v532
    %v1393 = vunpack.c.h.b16 %v532
    %v1394 = vunpack.c.l.b16 %v533
    %v1395 = vunpack.c.h.b16 %v533
    %v1396 = vunpack.c.l.b16 %v534
    %v1397 = vunpack.c.h.b16 %v534
    %v1398 = vunpack.c.l.b16 %v535
    %v1399 = vunpack.c.h.b16 %v535
    %v1400 = vunpack.c.l.b16 %v536
    %v1401 = vunpack.c.h.b16 %v536
    %v1402 = vunpack.c.l.b16 %v537
    %v1403 = vunpack.c.h.b16 %v537
    %v1404 = vunpack.c.l.b16 %v538
    %v1405 = vunpack.c.h.b16 %v538
    %v1406 = vunpack.c.l.b16 %v539
    %v1407 = vunpack.c.h.b16 %v539
    %v1408 = vunpack.c.l.b16 %v540
    %v1409 = vunpack.c.h.b16 %v540
    %v1410 = vunpack.c.l.b16 %v541
    %v1411 = vunpack.c.h.b16 %v541
    %v1412 = vunpack.c.l.b16 %v542
    %v1413 = vunpack.c.h.b16 %v542
    %v1414 = vunpack.c.l.b16 %v543
    %v1415 = vunpack.c.h.b16 %v543
    %v1416 = vunpack.c.l.b16 %v544
    %v1417 = vunpack.c.h.b16 %v544
    %v1418 = vunpack.c.l.b16 %v545
    %v1419 = vunpack.c.h.b16 %v545
    %v1420 = vunpack.c.l.b16 %v546
    %v1421 = vunpack.c.h.b16 %v546
    %v1422 = vunpack.c.l.b16 %v547
    %v1423 = vunpack.c.h.b16 %v547
    %v1424 = vunpack.c.l.b16 %v548
    %v1425 = vunpack.c.h.b16 %v548
    %v1426 = vunpack.c.l.b16 %v549
    %v1427 = vunpack.c.h.b16 %v549
    %v1428 = vunpack.c.l.b16 %v550
    %v1429 = vunpack.c.h.b16 %v550
    %v1430 = vunpack.c.l.b16 %v551
    %v1431 = vunpack.c.h.b16 %v551
    %v1432 = vunpack.c.l.b16 %v552
    %v1433 = vunpack.c.h.b16 %v552
    %v1434 = vunpack.c.l.b16 %v553
    %v1435 = vunpack.c.h.b16 %v553
    %v1436 = vunpack.c.l.b16 %v554
    %v1437 = vunpack.c.h.b16 %v554
    %v1438 = vunpack.c.l.b16 %v555
    %v1439 = vunpack.c.h.b16 %v555
    %v1440 = vunpack.c.l.b16 %v556
    %v1441 = vunpack.c.h.b16 %v556
    %v1442 = vunpack.c.l.b16 %v557
    %v1443 = vunpack.c.h.b16 %v557
    %v1444 = vunpack.c.l.b16 %v558
    %v1445 = vunpack.c.h.b16 %v558
    %v1446 = vunpack.c.l.b16 %v559
    %v1447 = vunpack.c.h.b16 %v559
    %v1448 = vunpack.c.l.b16 %v560
    %v1449 = vunpack.c.h.b16 %v560
    %v1450 = vunpack.c.l.b16 %v561
    %v1451 = vunpack.c.h.b16 %v561
    %v1452 = vunpack.c.l.b16 %v562
    %v1453 = vunpack.c.h.b16 %v562
    %v1454 = vunpack.c.l.b16 %v563
    %v1455 = vunpack.c.h.b16 %v563
    %v1456 = vunpack.c.l.b16 %v564
    %v1457 = vunpack.c.h.b16 %v564
    %v1458 = vunpack.c.l.b16 %v565
    %v1459 = vunpack.c.h.b16 %v565
    %v1460 = vunpack.c.l.b16 %v566
    %v1461 = vunpack.c.h.b16 %v566
    %v1462 = vunpack.c.l.b16 %v567
    %v1463 = vunpack.c.h.b16 %v567
    %v1464 = vunpack.c.l.b16 %v568
    %v1465 = vunpack.c.h.b16 %v568
    %v1466 = vunpack.c.l.b16 %v569
    %v1467 = vunpack.c.h.b16 %v569
    %v1468 = vunpack.c.l.b16 %v570
    %v1469 = vunpack.c.h.b16 %v570
    %v1470 = vunpack.c.l.b16 %v571
    %v1471 = vunpack.c.h.b16 %v571
    %v1472 = vunpack.c.l.b16 %v572
    %v1473 = vunpack.c.h.b16 %v572
    %v1474 = vunpack.c.l.b16 %v573
    %v1475 = vunpack.c.h.b16 %v573
    %v1476 = vunpack.c.l.b16 %v574
    %v1477 = vunpack.c.h.b16 %v574
    %v1478 = vunpack.c.l.b16 %v575
    %v1479 = vunpack.c.h.b16 %v575
    %v1480 = vunpack.c.l.b16 %v576
    %v1481 = vunpack.c.h.b16 %v576
    %v1482 = vunpack.c.l.b16 %v577
    %v1483 = vunpack.c.h.b16 %v577
    %v1484 = vunpack.c.l.b16 %v578
    %v1485 = vunpack.c.h.b16 %v578
    %v1486 = vunpack.c.l.b16 %v579
    %v1487 = vunpack.c.h.b16 %v579
    %v1488 = vunpack.c.l.b16 %v580
    %v1489 = vunpack.c.h.b16 %v580
    %v1490 = vunpack.c.l.b16 %v581
    %v1491 = vunpack.c.h.b16 %v581
    %v1492 = vunpack.c.l.b16 %v582
    %v1493 = vunpack.c.h.b16 %v582
    %v1494 = vunpack.c.l.b16 %v583
    %v1495 = vunpack.c.h.b16 %v583
    %v1496 = vunpack.c.l.b16 %v584
    %v1497 = vunpack.c.h.b16 %v584
    %v1498 = vunpack.c.l.b16 %v585
    %v1499 = vunpack.c.h.b16 %v585
    %v1500 = vunpack.c.l.b16 %v586
    %v1501 = vunpack.c.h.b16 %v586
    %v1502 = vunpack.c.l.b16 %v587
    %v1503 = vunpack.c.h.b16 %v587
    %v1504 = vunpack.c.l.b16 %v588
    %v1505 = vunpack.c.h.b16 %v588
    %v1506 = vunpack.c.l.b16 %v589
    %v1507 = vunpack.c.h.b16 %v589
    %v1508 = vunpack.c.l.b16 %v590
    %v1509 = vunpack.c.h.b16 %v590
    %v1510 = vunpack.c.l.b16 %v591
    %v1511 = vunpack.c.h.b16 %v591
    %v1512 = vunpack.c.l.b16 %v592
    %v1513 = vunpack.c.h.b16 %v592
    %v1514 = vunpack.c.l.b16 %v593
    %v1515 = vunpack.c.h.b16 %v593
    %v1516 = vunpack.c.l.b16 %v594
    %v1517 = vunpack.c.h.b16 %v594
    %v1518 = vunpack.c.l.b16 %v595
    %v1519 = vunpack.c.h.b16 %v595
    %v1520 = vunpack.c.l.b16 %v596
    %v1521 = vunpack.c.h.b16 %v596
    %v1522 = vunpack.c.l.b16 %v597
    %v1523 = vunpack.c.h.b16 %v597
    %v1524 = vunpack.c.l.b16 %v598
    %v1525 = vunpack.c.h.b16 %v598
    %v1526 = vunpack.c.l.b16 %v599
    %v1527 = vunpack.c.h.b16 %v599
    %v1528 = vunpack.c.l.b16 %v600
    %v1529 = vunpack.c.h.b16 %v600
    %v1530 = vunpack.c.l.b16 %v601
    %v1531 = vunpack.c.h.b16 %v601
    %v1532 = vunpack.c.l.b16 %v602
    %v1533 = vunpack.c.h.b16 %v602
    %v1534 = vunpack.c.l.b16 %v603
    %v1535 = vunpack.c.h.b16 %v603
    %v1536 = vunpack.c.l.b16 %v604
    %v1537 = vunpack.c.h.b16 %v604
    %v1538 = vunpack.c.l.b16 %v605
    %v1539 = vunpack.c.h.b16 %v605
    %v1540 = vunpack.c.l.b16 %v606
    %v1541 = vunpack.c.h.b16 %v606
    %v1542 = vunpack.c.l.b16 %v607
    %v1543 = vunpack.c.h.b16 %v607
    %v1544 = vunpack.c.l.b16 %v608
    %v1545 = vunpack.c.h.b16 %v608
    %v1546 = vunpack.c.l.b16 %v609
    %v1547 = vunpack.c.h.b16 %v609
    %v1548 = vunpack.c.l.b16 %v610
    %v1549 = vunpack.c.h.b16 %v610
    %v1550 = vunpack.c.l.b16 %v611
    %v1551 = vunpack.c.h.b16 %v611
    %v1552 = vunpack.c.l.b16 %v612
    %v1553 = vunpack.c.h.b16 %v612
    %v1554 = vunpack.c.l.b16 %v613
    %v1555 = vunpack.c.h.b16 %v613
    %v1556 = vunpack.c.l.b16 %v614
    %v1557 = vunpack.c.h.b16 %v614
    %v1558 = vunpack.c.l.b16 %v615
    %v1559 = vunpack.c.h.b16 %v615
    %v1560 = vunpack.c.l.b16 %v616
    %v1561 = vunpack.c.h.b16 %v616
    %v1562 = vunpack.c.l.b16 %v617
    %v1563 = vunpack.c.h.b16 %v617
    %v1564 = vunpack.c.l.b16 %v618
    %v1565 = vunpack.c.h.b16 %v618
    %v1566 = vunpack.c.l.b16 %v619
    %v1567 = vunpack.c.h.b16 %v619
    %v1568 = vunpack.c.l.b16 %v620
    %v1569 = vunpack.c.h.b16 %v620
    %v1570 = vunpack.c.l.b16 %v621
    %v1571 = vunpack.c.h.b16 %v621
    %v1572 = vunpack.c.l.b16 %v622
    %v1573 = vunpack.c.h.b16 %v622
    %v1574 = vunpack.c.l.b16 %v623
    %v1575 = vunpack.c.h.b16 %v623
    %v1576 = vunpack.c.l.b16 %v624
    %v1577 = vunpack.c.h.b16 %v624
    %v1578 = vunpack.c.l.b16 %v625
    %v1579 = vunpack.c.h.b16 %v625
    %v1580 = vunpack.c.l.b16 %v626
    %v1581 = vunpack.c.h.b16 %v626
    %v1582 = vunpack.c.l.b16 %v627
    %v1583 = vunpack.c.h.b16 %v627
    %v1584 = vunpack.c.l.b16 %v628
    %v1585 = vunpack.c.h.b16 %v628
    %v1586 = vunpack.c.l.b16 %v629
    %v1587 = vunpack.c.h.b16 %v629
    %v1588 = vunpack.c.l.b16 %v630
    %v1589 = vunpack.c.h.b16 %v630
    %v1590 = vunpack.c.l.b16 %v631
    %v1591 = vunpack.c.h.b16 %v631
    %v1592 = vunpack.c.l.b16 %v632
    %v1593 = vunpack.c.h.b16 %v632
    %v1594 = vunpack.c.l.b16 %v633
    %v1595 = vunpack.c.h.b16 %v633
    %v1596 = vunpack.c.l.b16 %v634
    %v1597 = vunpack.c.h.b16 %v634
    %v1598 = vunpack.c.l.b16 %v635
    %v1599 = vunpack.c.h.b16 %v635
    %v1600 = vunpack.c.l.b16 %v636
    %v1601 = vunpack.c.h.b16 %v636
    %v1602 = vunpack.c.l.b16 %v637
    %v1603 = vunpack.c.h.b16 %v637
    %v1604 = vunpack.c.l.b16 %v638
    %v1605 = vunpack.c.h.b16 %v638
    %v1606 = vunpack.c.l.b16 %v639
    %v1607 = vunpack.c.h.b16 %v639
    %v1608 = vunpack.c.l.b16 %v640
    %v1609 = vunpack.c.h.b16 %v640
    %v1610 = vunpack.c.l.b16 %v641
    %v1611 = vunpack.c.h.b16 %v641
    %v1612 = vunpack.c.l.b16 %v642
    %v1613 = vunpack.c.h.b16 %v642
    %v1614 = vunpack.c.l.b16 %v643
    %v1615 = vunpack.c.h.b16 %v643
    %v1616 = vunpack.c.l.b16 %v644
    %v1617 = vunpack.c.h.b16 %v644
    %v1618 = vunpack.c.l.b16 %v645
    %v1619 = vunpack.c.h.b16 %v645
    %v1620 = vunpack.c.l.b16 %v646
    %v1621 = vunpack.c.h.b16 %v646
    %v1622 = vunpack.c.l.b16 %v647
    %v1623 = vunpack.c.h.b16 %v647
    %v1624 = vunpack.c.l.b16 %v648
    %v1625 = vunpack.c.h.b16 %v648
    %v1626 = vunpack.c.l.b16 %v649
    %v1627 = vunpack.c.h.b16 %v649
    %v1628 = vunpack.c.l.b16 %v650
    %v1629 = vunpack.c.h.b16 %v650
    %v1630 = vunpack.c.l.b16 %v651
    %v1631 = vunpack.c.h.b16 %v651
    %v1632 = vunpack.c.l.b16 %v652
    %v1633 = vunpack.c.h.b16 %v652
    %v1634 = vunpack.c.l.b16 %v653
    %v1635 = vunpack.c.h.b16 %v653
    %v1636 = vunpack.c.l.b16 %v654
    %v1637 = vunpack.c.h.b16 %v654
    %v1638 = vunpack.c.l.b16 %v655
    %v1639 = vunpack.c.h.b16 %v655
    %v1640 = vunpack.c.l.b16 %v656
    %v1641 = vunpack.c.h.b16 %v656
    %v1642 = vunpack.c.l.b16 %v657
    %v1643 = vunpack.c.h.b16 %v657
    %v1644 = vunpack.c.l.b16 %v658
    %v1645 = vunpack.c.h.b16 %v658
    %v1646 = vunpack.c.l.b16 %v659
    %v1647 = vunpack.c.h.b16 %v659
    %v1648 = vunpack.c.l.b16 %v660
    %v1649 = vunpack.c.h.b16 %v660
    %v1650 = vunpack.c.l.b16 %v661
    %v1651 = vunpack.c.h.b16 %v661
    %v1652 = vunpack.c.l.b16 %v662
    %v1653 = vunpack.c.h.b16 %v662
    %v1654 = vunpack.c.l.b16 %v663
    %v1655 = vunpack.c.h.b16 %v663
    %v1656 = vunpack.c.l.b16 %v664
    %v1657 = vunpack.c.h.b16 %v664
    %v1658 = vunpack.c.l.b16 %v665
    %v1659 = vunpack.c.h.b16 %v665
    %v1660 = vunpack.c.l.b16 %v666
    %v1661 = vunpack.c.h.b16 %v666
    %v1662 = vunpack.c.l.b16 %v667
    %v1663 = vunpack.c.h.b16 %v667
    %v1664 = vunpack.c.l.b16 %v668
    %v1665 = vunpack.c.h.b16 %v668
    %v1666 = vunpack.c.l.b16 %v669
    %v1667 = vunpack.c.h.b16 %v669
    %v1668 = vunpack.c.l.b16 %v670
    %v1669 = vunpack.c.h.b16 %v670
    %v1670 = vunpack.c.l.b16 %v671
    %v1671 = vunpack.c.h.b16 %v671
    %v1672 = vunpack.c.l.b16 %v672
    %v1673 = vunpack.c.h.b16 %v672
    %v1674 = vunpack.c.l.b16 %v673
    %v1675 = vunpack.c.h.b16 %v673
    %v1676 = vunpack.c.l.b16 %v674
    %v1677 = vunpack.c.h.b16 %v674
    %v1678 = vunpack.c.l.b16 %v675
    %v1679 = vunpack.c.h.b16 %v675
    %v1680 = vunpack.c.l.b16 %v676
    %v1681 = vunpack.c.h.b16 %v676
    %v1682 = vunpack.c.l.b16 %v677
    %v1683 = vunpack.c.h.b16 %v677
    %v1684 = vunpack.c.l.b16 %v678
    %v1685 = vunpack.c.h.b16 %v678
    %v1686 = vunpack.c.l.b16 %v679
    %v1687 = vunpack.c.h.b16 %v679
    %v1688 = vunpack.c.l.b16 %v680
    %v1689 = vunpack.c.h.b16 %v680
    %v1690 = vunpack.c.l.b16 %v681
    %v1691 = vunpack.c.h.b16 %v681
    %v1692 = vunpack.c.l.b16 %v682
    %v1693 = vunpack.c.h.b16 %v682
    %v1694 = vunpack.c.l.b16 %v683
    %v1695 = vunpack.c.h.b16 %v683
    %v1696 = vunpack.c.l.b16 %v684
    %v1697 = vunpack.c.h.b16 %v684
    %v1698 = vunpack.c.l.b16 %v685
    %v1699 = vunpack.c.h.b16 %v685
    %v1700 = vunpack.c.l.b16 %v686
    %v1701 = vunpack.c.h.b16 %v686
    %v1702 = vunpack.c.l.b16 %v687
    %v1703 = vunpack.c.h.b16 %v687
    %v1704 = vunpack.c.l.b16 %v688
    %v1705 = vunpack.c.h.b16 %v688
    %v1706 = vunpack.c.l.b16 %v689
    %v1707 = vunpack.c.h.b16 %v689
    %v1708 = vunpack.c.l.b16 %v690
    %v1709 = vunpack.c.h.b16 %v690
    %v1710 = vunpack.c.l.b16 %v691
    %v1711 = vunpack.c.h.b16 %v691
    %v1712 = vunpack.c.l.b16 %v692
    %v1713 = vunpack.c.h.b16 %v692
    %v1714 = vunpack.c.l.b16 %v693
    %v1715 = vunpack.c.h.b16 %v693
    %v1716 = vunpack.c.l.b16 %v694
    %v1717 = vunpack.c.h.b16 %v694
    %v1718 = vunpack.c.l.b16 %v695
    %v1719 = vunpack.c.h.b16 %v695
    %v1720 = vunpack.c.l.b16 %v696
    %v1721 = vunpack.c.h.b16 %v696
    %v1722 = vunpack.c.l.b16 %v697
    %v1723 = vunpack.c.h.b16 %v697
    %v1724 = vunpack.c.l.b16 %v698
    %v1725 = vunpack.c.h.b16 %v698
    %v1726 = vunpack.c.l.b16 %v699
    %v1727 = vunpack.c.h.b16 %v699
    %v1728 = vunpack.c.l.b16 %v700
    %v1729 = vunpack.c.h.b16 %v700
    %v1730 = vunpack.c.l.b16 %v701
    %v1731 = vunpack.c.h.b16 %v701
    %v1732 = vunpack.c.l.b16 %v702
    %v1733 = vunpack.c.h.b16 %v702
    %v1734 = vunpack.c.l.b16 %v703
    %v1735 = vunpack.c.h.b16 %v703
    %v1736 = vunpack.c.l.b16 %v704
    %v1737 = vunpack.c.h.b16 %v704
    %v1738 = vunpack.c.l.b16 %v705
    %v1739 = vunpack.c.h.b16 %v705
    %v1740 = vunpack.c.l.b16 %v706
    %v1741 = vunpack.c.h.b16 %v706
    %v1742 = vunpack.c.l.b16 %v707
    %v1743 = vunpack.c.h.b16 %v707
    %v1744 = vunpack.c.l.b16 %v708
    %v1745 = vunpack.c.h.b16 %v708
    %v1746 = vunpack.c.l.b16 %v709
    %v1747 = vunpack.c.h.b16 %v709
    %v1748 = vunpack.c.l.b16 %v710
    %v1749 = vunpack.c.h.b16 %v710
    %v1750 = vunpack.c.l.b16 %v711
    %v1751 = vunpack.c.h.b16 %v711
    %v1752 = vunpack.c.l.b16 %v712
    %v1753 = vunpack.c.h.b16 %v712
    %v1754 = vunpack.c.l.b16 %v713
    %v1755 = vunpack.c.h.b16 %v713
    %v1756 = vunpack.c.l.b16 %v714
    %v1757 = vunpack.c.h.b16 %v714
    %v1758 = vunpack.c.l.b16 %v715
    %v1759 = vunpack.c.h.b16 %v715
    %v1760 = vunpack.c.l.b16 %v716
    %v1761 = vunpack.c.h.b16 %v716
    %v1762 = vunpack.c.l.b16 %v717
    %v1763 = vunpack.c.h.b16 %v717
    %v1764 = vunpack.c.l.b16 %v718
    %v1765 = vunpack.c.h.b16 %v718
    %v1766 = vunpack.c.l.b16 %v719
    %v1767 = vunpack.c.h.b16 %v719
    %v1768 = vunpack.c.l.b16 %v720
    %v1769 = vunpack.c.h.b16 %v720
    %v1770 = vunpack.c.l.b16 %v721
    %v1771 = vunpack.c.h.b16 %v721
    %v1772 = vunpack.c.l.b16 %v722
    %v1773 = vunpack.c.h.b16 %v722
    %v1774 = vunpack.c.l.b16 %v723
    %v1775 = vunpack.c.h.b16 %v723
    %v1776 = vunpack.c.l.b16 %v724
    %v1777 = vunpack.c.h.b16 %v724
    %v1778 = vunpack.c.l.b16 %v725
    %v1779 = vunpack.c.h.b16 %v725
    %v1780 = vunpack.c.l.b16 %v726
    %v1781 = vunpack.c.h.b16 %v726
    %v1782 = vunpack.c.l.b16 %v727
    %v1783 = vunpack.c.h.b16 %v727
    %v1784 = vunpack.c.l.b16 %v728
    %v1785 = vunpack.c.h.b16 %v728
    %v1786 = vunpack.c.l.b16 %v729
    %v1787 = vunpack.c.h.b16 %v729
    %v1788 = vunpack.c.l.b16 %v730
    %v1789 = vunpack.c.h.b16 %v730
    %v1790 = vunpack.c.l.b16 %v731
    %v1791 = vunpack.c.h.b16 %v731
    %v1792 = vunpack.c.l.b16 %v732
    %v1793 = vunpack.c.h.b16 %v732
    %v1794 = vunpack.c.l.b16 %v733
    %v1795 = vunpack.c.h.b16 %v733
    %v1796 = vunpack.c.l.b16 %v734
    %v1797 = vunpack.c.h.b16 %v734
    %v1798 = vunpack.c.l.b16 %v735
    %v1799 = vunpack.c.h.b16 %v735
    %v1800 = vunpack.c.l.b16 %v736
    %v1801 = vunpack.c.h.b16 %v736
    %v1802 = vunpack.c.l.b16 %v737
    %v1803 = vunpack.c.h.b16 %v737
    %v1804 = vunpack.c.l.b16 %v738
    %v1805 = vunpack.c.h.b16 %v738
    %v1806 = vunpack.c.l.b16 %v739
    %v1807 = vunpack.c.h.b16 %v739
    %v1808 = vunpack.c.l.b16 %v740
    %v1809 = vunpack.c.h.b16 %v740
    %v1810 = vunpack.c.l.b16 %v741
    %v1811 = vunpack.c.h.b16 %v741
    %v1812 = vunpack.c.l.b16 %v742
    %v1813 = vunpack.c.h.b16 %v742
    %v1814 = vunpack.c.l.b16 %v743
    %v1815 = vunpack.c.h.b16 %v743
    %v1816 = vunpack.c.l.b16 %v744
    %v1817 = vunpack.c.h.b16 %v744
    %v1818 = vunpack.c.l.b16 %v745
    %v1819 = vunpack.c.h.b16 %v745
    %v1820 = vunpack.c.l.b16 %v746
    %v1821 = vunpack.c.h.b16 %v746
    %v1822 = vunpack.c.l.b16 %v747
    %v1823 = vunpack.c.h.b16 %v747
    %v1824 = vunpack.c.l.b16 %v748
    %v1825 = vunpack.c.h.b16 %v748
    %v1826 = vunpack.c.l.b16 %v749
    %v1827 = vunpack.c.h.b16 %v749
    %v1828 = vunpack.c.l.b16 %v750
    %v1829 = vunpack.c.h.b16 %v750
    %v1830 = vunpack.c.l.b16 %v751
    %v1831 = vunpack.c.h.b16 %v751
    %v1832 = vunpack.c.l.b16 %v752
    %v1833 = vunpack.c.h.b16 %v752
    %v1834 = vunpack.c.l.b16 %v753
    %v1835 = vunpack.c.h.b16 %v753
    %v1836 = vunpack.c.l.b16 %v754
    %v1837 = vunpack.c.h.b16 %v754
    %v1838 = vunpack.c.l.b16 %v755
    %v1839 = vunpack.c.h.b16 %v755
    %v1840 = vunpack.c.l.b16 %v756
    %v1841 = vunpack.c.h.b16 %v756
    %v1842 = vunpack.c.l.b16 %v757
    %v1843 = vunpack.c.h.b16 %v757
    %v1844 = vunpack.c.l.b16 %v758
    %v1845 = vunpack.c.h.b16 %v758
    %v1846 = vunpack.c.l.b16 %v759
    %v1847 = vunpack.c.h.b16 %v759
    %v1848 = vunpack.c.l.b16 %v760
    %v1849 = vunpack.c.h.b16 %v760
    %v1850 = vunpack.c.l.b16 %v761
    %v1851 = vunpack.c.h.b16 %v761
    %v1852 = vunpack.c.l.b16 %v762
    %v1853 = vunpack.c.h.b16 %v762
    %v1854 = vunpack.c.l.b16 %v763
    %v1855 = vunpack.c.h.b16 %v763
    %v1856 = vunpack.c.l.b16 %v764
    %v1857 = vunpack.c.h.b16 %v764
    %v1858 = vunpack.c.l.b16 %v765
    %v1859 = vunpack.c.h.b16 %v765
    %v1860 = vunpack.c.l.b16 %v766
    %v1861 = vunpack.c.h.b16 %v766
    %v1862 = vunpack.c.l.b16 %v767
    %v1863 = vunpack.c.h.b16 %v767
    %v1864 = vunpack.c.l.b16 %v768
    %v1865 = vunpack.c.h.b16 %v768
    %v1866 = vunpack.c.l.b16 %v769
    %v1867 = vunpack.c.h.b16 %v769
    %v1868 = vunpack.c.l.b16 %v770
    %v1869 = vunpack.c.h.b16 %v770
    %v1870 = vunpack.c.l.b16 %v771
    %v1871 = vunpack.c.h.b16 %v771
    %v1872 = vunpack.c.l.b16 %v772
    %v1873 = vunpack.c.h.b16 %v772
    %v1874 = vunpack.c.l.b16 %v773
    %v1875 = vunpack.c.h.b16 %v773
    %v1876 = vunpack.c.l.b16 %v774
    %v1877 = vunpack.c.h.b16 %v774
    %v1878 = vunpack.c.l.b16 %v775
    %v1879 = vunpack.c.h.b16 %v775
    %v1880 = vunpack.c.l.b16 %v776
    %v1881 = vunpack.c.h.b16 %v776
    %v1882 = vunpack.c.l.b16 %v777
    %v1883 = vunpack.c.h.b16 %v777
    %v1884 = vunpack.c.l.b16 %v778
    %v1885 = vunpack.c.h.b16 %v778
    %v1886 = vunpack.c.l.b16 %v779
    %v1887 = vunpack.c.h.b16 %v779
    %v1888 = vunpack.c.l.b16 %v780
    %v1889 = vunpack.c.h.b16 %v780
    %v1890 = vunpack.c.l.b16 %v781
    %v1891 = vunpack.c.h.b16 %v781
    %v1892 = vunpack.c.l.b16 %v782
    %v1893 = vunpack.c.h.b16 %v782
    %v1894 = vunpack.c.l.b16 %v783
    %v1895 = vunpack.c.h.b16 %v783
    %v1896 = vunpack.c.l.b16 %v784
    %v1897 = vunpack.c.h.b16 %v784
    %v1898 = vunpack.c.l.b16 %v785
    %v1899 = vunpack.c.h.b16 %v785
    %v1900 = vunpack.c.l.b16 %v786
    %v1901 = vunpack.c.h.b16 %v786
    %v1902 = vunpack.c.l.b16 %v787
    %v1903 = vunpack.c.h.b16 %v787
    %v1904 = vunpack.c.l.b16 %v788
    %v1905 = vunpack.c.h.b16 %v788
    %v1906 = vunpack.c.l.b16 %v789
    %v1907 = vunpack.c.h.b16 %v789
    %v1908 = vunpack.c.l.b16 %v790
    %v1909 = vunpack.c.h.b16 %v790
    %v1910 = vunpack.c.l.b16 %v791
    %v1911 = vunpack.c.h.b16 %v791
    %v1912 = vunpack.c.l.b16 %v792
    %v1913 = vunpack.c.h.b16 %v792
    %v1914 = vunpack.c.l.b16 %v793
    %v1915 = vunpack.c.h.b16 %v793
    %v1916 = vunpack.c.l.b16 %v794
    %v1917 = vunpack.c.h.b16 %v794
    %v1918 = vunpack.c.l.b16 %v795
    %v1919 = vunpack.c.h.b16 %v795
    %v1920 = vunpack.c.l.b16 %v796
    %v1921 = vunpack.c.h.b16 %v796
    %v1922 = vunpack.c.l.b16 %v797
    %v1923 = vunpack.c.h.b16 %v797
    %v1924 = vunpack.c.l.b16 %v798
    %v1925 = vunpack.c.h.b16 %v798
    %v1926 = vunpack.c.l.b16 %v799
    %v1927 = vunpack.c.h.b16 %v799
    %v1928 = vunpack.c.l.b16 %v800
    %v1929 = vunpack.c.h.b16 %v800
    %v1930 = vunpack.c.l.b16 %v801
    %v1931 = vunpack.c.h.b16 %v801
    %v1932 = vunpack.c.l.b16 %v802
    %v1933 = vunpack.c.h.b16 %v802
    %v1934 = vunpack.c.l.b16 %v803
    %v1935 = vunpack.c.h.b16 %v803
    %v1936 = vunpack.c.l.b16 %v804
    %v1937 = vunpack.c.h.b16 %v804
    %v1938 = vunpack.c.l.b16 %v805
    %v1939 = vunpack.c.h.b16 %v805
    %v1940 = vunpack.c.l.b16 %v806
    %v1941 = vunpack.c.h.b16 %v806
    %v1942 = vunpack.c.l.b16 %v807
    %v1943 = vunpack.c.h.b16 %v807
    %v1944 = vunpack.c.l.b16 %v808
    %v1945 = vunpack.c.h.b16 %v808
    %v1946 = vunpack.c.l.b16 %v809
    %v1947 = vunpack.c.h.b16 %v809
    %v1948 = vunpack.c.l.b16 %v810
    %v1949 = vunpack.c.h.b16 %v810
    %v1950 = vunpack.c.l.b16 %v811
    %v1951 = vunpack.c.h.b16 %v811
    %v1952 = vunpack.c.l.b16 %v812
    %v1953 = vunpack.c.h.b16 %v812
    %v1954 = vunpack.c.l.b16 %v813
    %v1955 = vunpack.c.h.b16 %v813
    %v1956 = vunpack.c.l.b16 %v814
    %v1957 = vunpack.c.h.b16 %v814
    %v1958 = vunpack.c.l.b16 %v815
    %v1959 = vunpack.c.h.b16 %v815
    %v1960 = vunpack.c.l.b16 %v816
    %v1961 = vunpack.c.h.b16 %v816
    %v1962 = vunpack.c.l.b16 %v817
    %v1963 = vunpack.c.h.b16 %v817
    %v1964 = vunpack.c.l.b16 %v818
    %v1965 = vunpack.c.h.b16 %v818
    %v1966 = vunpack.c.l.b16 %v819
    %v1967 = vunpack.c.h.b16 %v819
    %v1968 = vunpack.c.l.b16 %v820
    %v1969 = vunpack.c.h.b16 %v820
    %v1970 = vunpack.c.l.b16 %v821
    %v1971 = vunpack.c.h.b16 %v821
    %v1972 = vunpack.c.l.b16 %v822
    %v1973 = vunpack.c.h.b16 %v822
    %v1974 = vunpack.c.l.b16 %v823
    %v1975 = vunpack.c.h.b16 %v823
    %v1976 = vunpack.c.l.b16 %v824
    %v1977 = vunpack.c.h.b16 %v824
    %v1978 = vunpack.c.l.b16 %v825
    %v1979 = vunpack.c.h.b16 %v825
    %v1980 = vunpack.c.l.b16 %v826
    %v1981 = vunpack.c.h.b16 %v826
    %v1982 = vunpack.c.l.b16 %v827
    %v1983 = vunpack.c.h.b16 %v827
    %v1984 = vunpack.c.l.b16 %v828
    %v1985 = vunpack.c.h.b16 %v828
    %v1986 = vunpack.c.l.b16 %v829
    %v1987 = vunpack.c.h.b16 %v829
    %v1988 = vunpack.c.l.b16 %v830
    %v1989 = vunpack.c.h.b16 %v830
    %v1990 = vunpack.c.l.b16 %v831
    %v1991 = vunpack.c.h.b16 %v831
    %v1992 = vunpack.c.l.b16 %v832
    %v1993 = vunpack.c.h.b16 %v832
    %v1994 = vunpack.c.l.b16 %v833
    %v1995 = vunpack.c.h.b16 %v833
    %v1996 = vunpack.c.l.b16 %v834
    %v1997 = vunpack.c.h.b16 %v834
    %v1998 = vunpack.c.l.b16 %v835
    %v1999 = vunpack.c.h.b16 %v835
    %v2000 = vunpack.c.l.b16 %v836
    %v2001 = vunpack.c.h.b16 %v836
    %v2002 = vunpack.c.l.b16 %v837
    %v2003 = vunpack.c.h.b16 %v837
    %v2004 = vunpack.c.l.b16 %v838
    %v2005 = vunpack.c.h.b16 %v838
    %v2006 = vunpack.c.l.b16 %v839
    %v2007 = vunpack.c.h.b16 %v839
    %v2008 = vunpack.c.l.b16 %v840
    %v2009 = vunpack.c.h.b16 %v840
    %v2010 = vunpack.c.l.b16 %v841
    %v2011 = vunpack.c.h.b16 %v841
    %v2012 = vunpack.c.l.b16 %v842
    %v2013 = vunpack.c.h.b16 %v842
    %v2014 = vunpack.c.l.b16 %v843
    %v2015 = vunpack.c.h.b16 %v843
    %v2016 = vunpack.c.l.b16 %v844
    %v2017 = vunpack.c.h.b16 %v844
    %v2018 = vunpack.c.l.b16 %v845
    %v2019 = vunpack.c.h.b16 %v845
    %v2020 = vunpack.c.l.b16 %v846
    %v2021 = vunpack.c.h.b16 %v846
    %v2022 = vunpack.c.l.b16 %v847
    %v2023 = vunpack.c.h.b16 %v847
    %v2024 = vunpack.c.l.b16 %v848
    %v2025 = vunpack.c.h.b16 %v848
    %v2026 = vunpack.c.l.b16 %v849
    %v2027 = vunpack.c.h.b16 %v849
    %v2028 = vunpack.c.l.b16 %v850
    %v2029 = vunpack.c.h.b16 %v850
    %v2030 = vunpack.c.l.b16 %v851
    %v2031 = vunpack.c.h.b16 %v851
    %v2032 = vunpack.c.l.b16 %v852
    %v2033 = vunpack.c.h.b16 %v852
    %v2034 = vunpack.c.l.b16 %v853
    %v2035 = vunpack.c.h.b16 %v853
    %v2036 = vunpack.c.l.b16 %v854
    %v2037 = vunpack.c.h.b16 %v854
    %v2038 = vunpack.c.l.b16 %v855
    %v2039 = vunpack.c.h.b16 %v855
    %v2040 = vpack.c.b16 %v1278, %v1272
    %v2041 = vpack.c.b16 %v1279, %v1273
    %v2042 = vpack.c.b16 %v1280, %v1274
    %v2043 = vpack.c.b16 %v1281, %v1275
    %v2044 = vpack.c.b16 %v1282, %v1276
    %v2045 = vpack.c.b16 %v1283, %v1277
    %v2046 = vpack.c.b16 %v1290, %v1284
    %v2047 = vpack.c.b16 %v1291, %v1285
    %v2048 = vpack.c.b16 %v1292, %v1286
    %v2049 = vpack.c.b16 %v1293, %v1287
    %v2050 = vpack.c.b16 %v1294, %v1288
    %v2051 = vpack.c.b16 %v1295, %v1289
    %v2052 = vpack.c.b16 %v1302, %v1296
    %v2053 = vpack.c.b16 %v1303, %v1297
    %v2054 = vpack.c.b16 %v1304, %v1298
    %v2055 = vpack.c.b16 %v1305, %v1299
    %v2056 = vpack.c.b16 %v1306, %v1300
    %v2057 = vpack.c.b16 %v1307, %v1301
    %v2058 = vpack.c.b16 %v1314, %v1308
    %v2059 = vpack.c.b16 %v1315, %v1309
    %v2060 = vpack.c.b16 %v1316, %v1310
    %v2061 = vpack.c.b16 %v1317, %v1311
    %v2062 = vpack.c.b16 %v1318, %v1312
    %v2063 = vpack.c.b16 %v1319, %v1313
    %v2064 = vpack.c.b16 %v1326, %v1320
    %v2065 = vpack.c.b16 %v1327, %v1321
    %v2066 = vpack.c.b16 %v1328, %v1322
    %v2067 = vpack.c.b16 %v1329, %v1323
    %v2068 = vpack.c.b16 %v1330, %v1324
    %v2069 = vpack.c.b16 %v1331, %v1325
    %v2070 = vpack.c.b16 %v1338, %v1332
    %v2071 = vpack.c.b16 %v1339, %v1333
    %v2072 = vpack.c.b16 %v1340, %v1334
    %v2073 = vpack.c.b16 %v1341, %v1335
    %v2074 = vpack.c.b16 %v1342, %v1336
    %v2075 = vpack.c.b16 %v1343, %v1337
    %v2076 = vpack.c.b16 %v1350, %v1344
    %v2077 = vpack.c.b16 %v1351, %v1345
    %v2078 = vpack.c.b16 %v1352, %v1346
    %v2079 = vpack.c.b16 %v1353, %v1347
    %v2080 = vpack.c.b16 %v1354, %v1348
    %v2081 = vpack.c.b16 %v1355, %v1349
    %v2082 = vpack.c.b16 %v1362, %v1356
    %v2083 = vpack.c.b16 %v1363, %v1357
    %v2084 = vpack.c.b16 %v1364, %v1358
    %v2085 = vpack.c.b16 %v1365, %v1359
    %v2086 = vpack.c.b16 %v1366, %v1360
    %v2087 = vpack.c.b16 %v1367, %v1361
    %v2088 = vpack.c.b16 %v1374, %v1368
    %v2089 = vpack.c.b16 %v1375, %v1369
    %v2090 = vpack.c.b16 %v1376, %v1370
    %v2091 = vpack.c.b16 %v1377, %v1371
    %v2092 = vpack.c.b16 %v1378, %v1372
    %v2093 = vpack.c.b16 %v1379, %v1373
    %v2094 = vpack.c.b16 %v1386, %v1380
    %v2095 = vpack.c.b16 %v1387, %v1381
    %v2096 = vpack.c.b16 %v1388, %v1382
    %v2097 = vpack.c.b16 %v1389, %v1383
    %v2098 = vpack.c.b16 %v1390, %v1384
    %v2099 = vpack.c.b16 %v1391, %v1385
    %v2100 = vpack.c.b16 %v1398, %v1392
    %v2101 = vpack.c.b16 %v1399, %v1393
    %v2102 = vpack.c.b16 %v1400, %v1394
    %v2103 = vpack.c.b16 %v1401, %v1395
    %v2104 = vpack.c.b16 %v1402, %v1396
    %v2105 = vpack.c.b16 %v1403, %v1397
    %v2106 = vpack.c.b16 %v1410, %v1404
    %v2107 = vpack.c.b16 %v1411, %v1405
    %v2108 = vpack.c.b16 %v1412, %v1406
    %v2109 = vpack.c.b16 %v1413, %v1407
    %v2110 = vpack.c.b16 %v1414, %v1408
    %v2111 = vpack.c.b16 %v1415, %v1409
    %v2112 = vpack.c.b16 %v1422, %v1416
    %v2113 = vpack.c.b16 %v1423, %v1417
    %v2114 = vpack.c.b16 %v1424, %v1418
    %v2115 = vpack.c.b16 %v1425, %v1419
    %v2116 = vpack.c.b16 %v1426, %v1420
    %v2117 = vpack.c.b16 %v1427, %v1421
    %v2118 = vpack.c.b16 %v1434, %v1428
    %v2119 = vpack.c.b16 %v1435, %v1429
    %v2120 = vpack.c.b16 %v1436, %v1430
    %v2121 = vpack.c.b16 %v1437, %v1431
    %v2122 = vpack.c.b16 %v1438, %v1432
    %v2123 = vpack.c.b16 %v1439, %v1433
    %v2124 = vpack.c.b16 %v1446, %v1440
    %v2125 = vpack.c.b16 %v1447, %v1441
    %v2126 = vpack.c.b16 %v1448, %v1442
    %v2127 = vpack.c.b16 %v1449, %v1443
    %v2128 = vpack.c.b16 %v1450, %v1444
    %v2129 = vpack.c.b16 %v1451, %v1445
    %v2130 = vpack.c.b16 %v1458, %v1452
    %v2131 = vpack.c.b16 %v1459, %v1453
    %v2132 = vpack.c.b16 %v1460, %v1454
    %v2133 = vpack.c.b16 %v1461, %v1455
    %v2134 = vpack.c.b16 %v1462, %v1456
    %v2135 = vpack.c.b16 %v1463, %v1457
    %v2136 = vpack.c.b16 %v1470, %v1464
    %v2137 = vpack.c.b16 %v1471, %v1465
    %v2138 = vpack.c.b16 %v1472, %v1466
    %v2139 = vpack.c.b16 %v1473, %v1467
    %v2140 = vpack.c.b16 %v1474, %v1468
    %v2141 = vpack.c.b16 %v1475, %v1469
    %v2142 = vpack.c.b16 %v1482, %v1476
    %v2143 = vpack.c.b16 %v1483, %v1477
    %v2144 = vpack.c.b16 %v1484, %v1478
    %v2145 = vpack.c.b16 %v1485, %v1479
    %v2146 = vpack.c.b16 %v1486, %v1480
    %v2147 = vpack.c.b16 %v1487, %v1481
    %v2148 = vpack.c.b16 %v1494, %v1488
    %v2149 = vpack.c.b16 %v1495, %v1489
    %v2150 = vpack.c.b16 %v1496, %v1490
    %v2151 = vpack.c.b16 %v1497, %v1491
    %v2152 = vpack.c.b16 %v1498, %v1492
    %v2153 = vpack.c.b16 %v1499, %v1493
    %v2154 = vpack.c.b16 %v1506, %v1500
    %v2155 = vpack.c.b16 %v1507, %v1501
    %v2156 = vpack.c.b16 %v1508, %v1502
    %v2157 = vpack.c.b16 %v1509, %v1503
    %v2158 = vpack.c.b16 %v1510, %v1504
    %v2159 = vpack.c.b16 %v1511, %v1505
    %v2160 = vpack.c.b16 %v1518, %v1512
    %v2161 = vpack.c.b16 %v1519, %v1513
    %v2162 = vpack.c.b16 %v1520, %v1514
    %v2163 = vpack.c.b16 %v1521, %v1515
    %v2164 = vpack.c.b16 %v1522, %v1516
    %v2165 = vpack.c.b16 %v1523, %v1517
    %v2166 = vpack.c.b16 %v1530, %v1524
    %v2167 = vpack.c.b16 %v1531, %v1525
    %v2168 = vpack.c.b16 %v1532, %v1526
    %v2169 = vpack.c.b16 %v1533, %v1527
    %v2170 = vpack.c.b16 %v1534, %v1528
    %v2171 = vpack.c.b16 %v1535, %v1529
    %v2172 = vpack.c.b16 %v1542, %v1536
    %v2173 = vpack.c.b16 %v1543, %v1537
    %v2174 = vpack.c.b16 %v1544, %v1538
    %v2175 = vpack.c.b16 %v1545, %v1539
    %v2176 = vpack.c.b16 %v1546, %v1540
    %v2177 = vpack.c.b16 %v1547, %v1541
    %v2178 = vpack.c.b16 %v1554, %v1548
    %v2179 = vpack.c.b16 %v1555, %v1549
    %v2180 = vpack.c.b16 %v1556, %v1550
    %v2181 = vpack.c.b16 %v1557, %v1551
    %v2182 = vpack.c.b16 %v1558, %v1552
    %v2183 = vpack.c.b16 %v1559, %v1553
    %v2184 = vpack.c.b16 %v1566, %v1560
    %v2185 = vpack.c.b16 %v1567, %v1561
    %v2186 = vpack.c.b16 %v1568, %v1562
    %v2187 = vpack.c.b16 %v1569, %v1563
    %v2188 = vpack.c.b16 %v1570, %v1564
    %v2189 = vpack.c.b16 %v1571, %v1565
    %v2190 = vpack.c.b16 %v1578, %v1572
    %v2191 = vpack.c.b16 %v1579, %v1573
    %v2192 = vpack.c.b16 %v1580, %v1574
    %v2193 = vpack.c.b16 %v1581, %v1575
    %v2194 = vpack.c.b16 %v1582, %v1576
    %v2195 = vpack.c.b16 %v1583, %v1577
    %v2196 = vpack.c.b16 %v1590, %v1584
    %v2197 = vpack.c.b16 %v1591, %v1585
    %v2198 = vpack.c.b16 %v1592, %v1586
    %v2199 = vpack.c.b16 %v1593, %v1587
    %v2200 = vpack.c.b16 %v1594, %v1588
    %v2201 = vpack.c.b16 %v1595, %v1589
    %v2202 = vpack.c.b16 %v1602, %v1596
    %v2203 = vpack.c.b16 %v1603, %v1597
    %v2204 = vpack.c.b16 %v1604, %v1598
    %v2205 = vpack.c.b16 %v1605, %v1599
    %v2206 = vpack.c.b16 %v1606, %v1600
    %v2207 = vpack.c.b16 %v1607, %v1601
    %v2208 = vpack.c.b16 %v1614, %v1608
    %v2209 = vpack.c.b16 %v1615, %v1609
    %v2210 = vpack.c.b16 %v1616, %v1610
    %v2211 = vpack.c.b16 %v1617, %v1611
    %v2212 = vpack.c.b16 %v1618, %v1612
    %v2213 = vpack.c.b16 %v1619, %v1613
    %v2214 = vpack.c.b16 %v1626, %v1620
    %v2215 = vpack.c.b16 %v1627, %v1621
    %v2216 = vpack.c.b16 %v1628, %v1622
    %v2217 = vpack.c.b16 %v1629, %v1623
    %v2218 = vpack.c.b16 %v1630, %v1624
    %v2219 = vpack.c.b16 %v1631, %v1625
    %v2220 = vpack.c.b16 %v1638, %v1632
    %v2221 = vpack.c.b16 %v1639, %v1633
    %v2222 = vpack.c.b16 %v1640, %v1634
    %v2223 = vpack.c.b16 %v1641, %v1635
    %v2224 = vpack.c.b16 %v1642, %v1636
    %v2225 = vpack.c.b16 %v1643, %v1637
    %v2226 = vpack.c.b16 %v1650, %v1644
    %v2227 = vpack.c.b16 %v1651, %v1645
    %v2228 = vpack.c.b16 %v1652, %v1646
    %v2229 = vpack.c.b16 %v1653, %v1647
    %v2230 = vpack.c.b16 %v1654, %v1648
    %v2231 = vpack.c.b16 %v1655, %v1649
    %v2232 = vpack.c.b16 %v1662, %v1656
    %v2233 = vpack.c.b16 %v1663, %v1657
    %v2234 = vpack.c.b16 %v1664, %v1658
    %v2235 = vpack.c.b16 %v1665, %v1659
    %v2236 = vpack.c.b16 %v1666, %v1660
    %v2237 = vpack.c.b16 %v1667, %v1661
    %v2238 = vpack.c.b16 %v1674, %v1668
    %v2239 = vpack.c.b16 %v1675, %v1669
    %v2240 = vpack.c.b16 %v1676, %v1670
    %v2241 = vpack.c.b16 %v1677, %v1671
    %v2242 = vpack.c.b16 %v1678, %v1672
    %v2243 = vpack.c.b16 %v1679, %v1673
    %v2244 = vpack.c.b16 %v1686, %v1680
    %v2245 = vpack.c.b16 %v1687, %v1681
    %v2246 = vpack.c.b16 %v1688, %v1682
    %v2247 = vpack.c.b16 %v1689, %v1683
    %v2248 = vpack.c.b16 %v1690, %v1684
    %v2249 = vpack.c.b16 %v1691, %v1685
    %v2250 = vpack.c.b16 %v1698, %v1692
    %v2251 = vpack.c.b16 %v1699, %v1693
    %v2252 = vpack.c.b16 %v1700, %v1694
    %v2253 = vpack.c.b16 %v1701, %v1695
    %v2254 = vpack.c.b16 %v1702, %v1696
    %v2255 = vpack.c.b16 %v1703, %v1697
    %v2256 = vpack.c.b16 %v1710, %v1704
    %v2257 = vpack.c.b16 %v1711, %v1705
    %v2258 = vpack.c.b16 %v1712, %v1706
    %v2259 = vpack.c.b16 %v1713, %v1707
    %v2260 = vpack.c.b16 %v1714, %v1708
    %v2261 = vpack.c.b16 %v1715, %v1709
    %v2262 = vpack.c.b16 %v1722, %v1716
    %v2263 = vpack.c.b16 %v1723, %v1717
    %v2264 = vpack.c.b16 %v1724, %v1718
    %v2265 = vpack.c.b16 %v1725, %v1719
    %v2266 = vpack.c.b16 %v1726, %v1720
    %v2267 = vpack.c.b16 %v1727, %v1721
    %v2268 = vpack.c.b16 %v1734, %v1728
    %v2269 = vpack.c.b16 %v1735, %v1729
    %v2270 = vpack.c.b16 %v1736, %v1730
    %v2271 = vpack.c.b16 %v1737, %v1731
    %v2272 = vpack.c.b16 %v1738, %v1732
    %v2273 = vpack.c.b16 %v1739, %v1733
    %v2274 = vpack.c.b16 %v1746, %v1740
    %v2275 = vpack.c.b16 %v1747, %v1741
    %v2276 = vpack.c.b16 %v1748, %v1742
    %v2277 = vpack.c.b16 %v1749, %v1743
    %v2278 = vpack.c.b16 %v1750, %v1744
    %v2279 = vpack.c.b16 %v1751, %v1745
    %v2280 = vpack.c.b16 %v1758, %v1752
    %v2281 = vpack.c.b16 %v1759, %v1753
    %v2282 = vpack.c.b16 %v1760, %v1754
    %v2283 = vpack.c.b16 %v1761, %v1755
    %v2284 = vpack.c.b16 %v1762, %v1756
    %v2285 = vpack.c.b16 %v1763, %v1757
    %v2286 = vpack.c.b16 %v1770, %v1764
    %v2287 = vpack.c.b16 %v1771, %v1765
    %v2288 = vpack.c.b16 %v1772, %v1766
    %v2289 = vpack.c.b16 %v1773, %v1767
    %v2290 = vpack.c.b16 %v1774, %v1768
    %v2291 = vpack.c.b16 %v1775, %v1769
    %v2292 = vpack.c.b16 %v1782, %v1776
    %v2293 = vpack.c.b16 %v1783, %v1777
    %v2294 = vpack.c.b16 %v1784, %v1778
    %v2295 = vpack.c.b16 %v1785, %v1779
    %v2296 = vpack.c.b16 %v1786, %v1780
    %v2297 = vpack.c.b16 %v1787, %v1781
    %v2298 = vpack.c.b16 %v1794, %v1788
    %v2299 = vpack.c.b16 %v1795, %v1789
    %v2300 = vpack.c.b16 %v1796, %v1790
    %v2301 = vpack.c.b16 %v1797, %v1791
    %v2302 = vpack.c.b16 %v1798, %v1792
    %v2303 = vpack.c.b16 %v1799, %v1793
    %v2304 = vpack.c.b16 %v1806, %v1800
    %v2305 = vpack.c.b16 %v1807, %v1801
    %v2306 = vpack.c.b16 %v1808, %v1802
    %v2307 = vpack.c.b16 %v1809, %v1803
    %v2308 = vpack.c.b16 %v1810, %v1804
    %v2309 = vpack.c.b16 %v1811, %v1805
    %v2310 = vpack.c.b16 %v1818, %v1812
    %v2311 = vpack.c.b16 %v1819, %v1813
    %v2312 = vpack.c.b16 %v1820, %v1814
    %v2313 = vpack.c.b16 %v1821, %v1815
    %v2314 = vpack.c.b16 %v1822, %v1816
    %v2315 = vpack.c.b16 %v1823, %v1817
    %v2316 = vpack.c.b16 %v1830, %v1824
    %v2317 = vpack.c.b16 %v1831, %v1825
    %v2318 = vpack.c.b16 %v1832, %v1826
    %v2319 = vpack.c.b16 %v1833, %v1827
    %v2320 = vpack.c.b16 %v1834, %v1828
    %v2321 = vpack.c.b16 %v1835, %v1829
    %v2322 = vpack.c.b16 %v1842, %v1836
    %v2323 = vpack.c.b16 %v1843, %v1837
    %v2324 = vpack.c.b16 %v1844, %v1838
    %v2325 = vpack.c.b16 %v1845, %v1839
    %v2326 = vpack.c.b16 %v1846, %v1840
    %v2327 = vpack.c.b16 %v1847, %v1841
    %v2328 = vpack.c.b16 %v1854, %v1848
    %v2329 = vpack.c.b16 %v1855, %v1849
    %v2330 = vpack.c.b16 %v1856, %v1850
    %v2331 = vpack.c.b16 %v1857, %v1851
    %v2332 = vpack.c.b16 %v1858, %v1852
    %v2333 = vpack.c.b16 %v1859, %v1853
    %v2334 = vpack.c.b16 %v1866, %v1860
    %v2335 = vpack.c.b16 %v1867, %v1861
    %v2336 = vpack.c.b16 %v1868, %v1862
    %v2337 = vpack.c.b16 %v1869, %v1863
    %v2338 = vpack.c.b16 %v1870, %v1864
    %v2339 = vpack.c.b16 %v1871, %v1865
    %v2340 = vpack.c.b16 %v1878, %v1872
    %v2341 = vpack.c.b16 %v1879, %v1873
    %v2342 = vpack.c.b16 %v1880, %v1874
    %v2343 = vpack.c.b16 %v1881, %v1875
    %v2344 = vpack.c.b16 %v1882, %v1876
    %v2345 = vpack.c.b16 %v1883, %v1877
    %v2346 = vpack.c.b16 %v1890, %v1884
    %v2347 = vpack.c.b16 %v1891, %v1885
    %v2348 = vpack.c.b16 %v1892, %v1886
    %v2349 = vpack.c.b16 %v1893, %v1887
    %v2350 = vpack.c.b16 %v1894, %v1888
    %v2351 = vpack.c.b16 %v1895, %v1889
    %v2352 = vpack.c.b16 %v1902, %v1896
    %v2353 = vpack.c.b16 %v1903, %v1897
    %v2354 = vpack.c.b16 %v1904, %v1898
    %v2355 = vpack.c.b16 %v1905, %v1899
    %v2356 = vpack.c.b16 %v1906, %v1900
    %v2357 = vpack.c.b16 %v1907, %v1901
    %v2358 = vpack.c.b16 %v1914, %v1908
    %v2359 = vpack.c.b16 %v1915, %v1909
    %v2360 = vpack.c.b16 %v1916, %v1910
    %v2361 = vpack.c.b16 %v1917, %v1911
    %v2362 = vpack.c.b16 %v1918, %v1912
    %v2363 = vpack.c.b16 %v1919, %v1913
    %v2364 = vpack.c.b16 %v1926, %v1920
    %v2365 = vpack.c.b16 %v1927, %v1921
    %v2366 = vpack.c.b16 %v1928, %v1922
    %v2367 = vpack.c.b16 %v1929, %v1923
    %v2368 = vpack.c.b16 %v1930, %v1924
    %v2369 = vpack.c.b16 %v1931, %v1925
    %v2370 = vpack.c.b16 %v1938, %v1932
    %v2371 = vpack.c.b16 %v1939, %v1933
    %v2372 = vpack.c.b16 %v1940, %v1934
    %v2373 = vpack.c.b16 %v1941, %v1935
    %v2374 = vpack.c.b16 %v1942, %v1936
    %v2375 = vpack.c.b16 %v1943, %v1937
    %v2376 = vpack.c.b16 %v1950, %v1944
    %v2377 = vpack.c.b16 %v1951, %v1945
    %v2378 = vpack.c.b16 %v1952, %v1946
    %v2379 = vpack.c.b16 %v1953, %v1947
    %v2380 = vpack.c.b16 %v1954, %v1948
    %v2381 = vpack.c.b16 %v1955, %v1949
    %v2382 = vpack.c.b16 %v1962, %v1956
    %v2383 = vpack.c.b16 %v1963, %v1957
    %v2384 = vpack.c.b16 %v1964, %v1958
    %v2385 = vpack.c.b16 %v1965, %v1959
    %v2386 = vpack.c.b16 %v1966, %v1960
    %v2387 = vpack.c.b16 %v1967, %v1961
    %v2388 = vpack.c.b16 %v1974, %v1968
    %v2389 = vpack.c.b16 %v1975, %v1969
    %v2390 = vpack.c.b16 %v1976, %v1970
    %v2391 = vpack.c.b16 %v1977, %v1971
    %v2392 = vpack.c.b16 %v1978, %v1972
    %v2393 = vpack.c.b16 %v1979, %v1973
    %v2394 = vpack.c.b16 %v1986, %v1980
    %v2395 = vpack.c.b16 %v1987, %v1981
    %v2396 = vpack.c.b16 %v1988, %v1982
    %v2397 = vpack.c.b16 %v1989, %v1983
    %v2398 = vpack.c.b16 %v1990, %v1984
    %v2399 = vpack.c.b16 %v1991, %v1985
    %v2400 = vpack.c.b16 %v1998, %v1992
    %v2401 = vpack.c.b16 %v1999, %v1993
    %v2402 = vpack.c.b16 %v2000, %v1994
    %v2403 = vpack.c.b16 %v2001, %v1995
    %v2404 = vpack.c.b16 %v2002, %v1996
    %v2405 = vpack.c.b16 %v2003, %v1997
    %v2406 = vpack.c.b16 %v2010, %v2004
    %v2407 = vpack.c.b16 %v2011, %v2005
    %v2408 = vpack.c.b16 %v2012, %v2006
    %v2409 = vpack.c.b16 %v2013, %v2007
    %v2410 = vpack.c.b16 %v2014, %v2008
    %v2411 = vpack.c.b16 %v2015, %v2009
    %v2412 = vpack.c.b16 %v2022, %v2016
    %v2413 = vpack.c.b16 %v2023, %v2017
    %v2414 = vpack.c.b16 %v2024, %v2018
    %v2415 = vpack.c.b16 %v2025, %v2019
    %v2416 = vpack.c.b16 %v2026, %v2020
    %v2417 = vpack.c.b16 %v2027, %v2021
    %v2418 = vpack.c.b16 %v2034, %v2028
    %v2419 = vpack.c.b16 %v2035, %v2029
    %v2420 = vpack.c.b16 %v2036, %v2030
    %v2421 = vpack.c.b16 %v2037, %v2031
    %v2422 = vpack.c.b16 %v2038, %v2032
    %v2423 = vpack.c.b16 %v2039, %v2033
    %2808 = vmatprep.subr.bf16.mxu0 %v2041
    %2809 = vmatpush1.bf16.msra.mxu0 %v2040
    %2810 = vmatprep.subr.bf16.mxu0 %v2047
    %2811 = vmatpush1.bf16.msra.mxu0 %v2046
    %2812 = vmatprep.subr.bf16.mxu0 %v2053
    %2813 = vmatpush1.bf16.msra.mxu0 %v2052
    %2814 = vmatprep.subr.bf16.mxu0 %v2059
    %2815 = vmatpush1.bf16.msra.mxu0 %v2058
    %2816 = vmatprep.subr.bf16.mxu0 %v2065
    %2817 = vmatpush1.bf16.msra.mxu0 %v2064
    %2818 = vmatprep.subr.bf16.mxu0 %v2071
    %2819 = vmatpush1.bf16.msra.mxu0 %v2070
    %2820 = vmatprep.subr.bf16.mxu0 %v2077
    %2821 = vmatpush1.bf16.msra.mxu0 %v2076
    %2822 = vmatprep.subr.bf16.mxu0 %v2083
    %2823 = vmatpush1.bf16.msra.mxu0 %v2082
    %2824 = vmatprep.subr.bf16.mxu0 %v2089
    %2825 = vmatpush1.bf16.msra.mxu0 %v2088
    %2826 = vmatprep.subr.bf16.mxu0 %v2095
    %2827 = vmatpush1.bf16.msra.mxu0 %v2094
    %2828 = vmatprep.subr.bf16.mxu0 %v2101
    %2829 = vmatpush1.bf16.msra.mxu0 %v2100
    %2830 = vmatprep.subr.bf16.mxu0 %v2107
    %2831 = vmatpush1.bf16.msra.mxu0 %v2106
    %2832 = vmatprep.subr.bf16.mxu0 %v2113
    %2833 = vmatpush1.bf16.msra.mxu0 %v2112
    %2834 = vmatprep.subr.bf16.mxu0 %v2119
    %2835 = vmatpush1.bf16.msra.mxu0 %v2118
    %2836 = vmatprep.subr.bf16.mxu0 %v2125
    %2837 = vmatpush1.bf16.msra.mxu0 %v2124
    %2838 = vmatprep.subr.bf16.mxu0 %v2131
    %2839 = vmatpush1.bf16.msra.mxu0 %v2130
    %2840 = vmatprep.mubr.bf16.mxu0 %v465
    %2841 = vmatmul.mubr.bf16.gmra.mrb[0].mxu0 %v464
    %v2842 = vpop.f32.mrb[0].mxu0
    %v2843 = vadd.f32 %v861, %v2842
    %v2844 = vpop.f32.mrb[0].mxu0
    %v2845 = vadd.f32 %v865, %v2844
    %v2846 = vpop.f32.mrb[0].mxu0
    %v2847 = vpop.f32.mrb[0].mxu0
    %2848 = vdwg.mxu0
    %2849 = vmatprep.subr.bf16.mxu0 %v2137
    %2850 = vmatpush1.bf16.msra.mxu0 %v2136
    %2851 = vmatprep.subr.bf16.mxu0 %v2143
    %2852 = vmatpush1.bf16.msra.mxu0 %v2142
    %2853 = vmatprep.subr.bf16.mxu0 %v2149
    %2854 = vmatpush1.bf16.msra.mxu0 %v2148
    %2855 = vmatprep.subr.bf16.mxu0 %v2155
    %2856 = vmatpush1.bf16.msra.mxu0 %v2154
    %2857 = vmatprep.subr.bf16.mxu0 %v2161
    %2858 = vmatpush1.bf16.msra.mxu0 %v2160
    %2859 = vmatprep.subr.bf16.mxu0 %v2167
    %2860 = vmatpush1.bf16.msra.mxu0 %v2166
    %2861 = vmatprep.subr.bf16.mxu0 %v2173
    %2862 = vmatpush1.bf16.msra.mxu0 %v2172
    %2863 = vmatprep.subr.bf16.mxu0 %v2179
    %2864 = vmatpush1.bf16.msra.mxu0 %v2178
    %2865 = vmatprep.subr.bf16.mxu0 %v2185
    %2866 = vmatpush1.bf16.msra.mxu0 %v2184
    %2867 = vmatprep.subr.bf16.mxu0 %v2191
    %2868 = vmatpush1.bf16.msra.mxu0 %v2190
    %2869 = vmatprep.subr.bf16.mxu0 %v2197
    %2870 = vmatpush1.bf16.msra.mxu0 %v2196
    %2871 = vmatprep.subr.bf16.mxu0 %v2203
    %2872 = vmatpush1.bf16.msra.mxu0 %v2202
    %2873 = vmatprep.subr.bf16.mxu0 %v2209
    %2874 = vmatpush1.bf16.msra.mxu0 %v2208
    %2875 = vmatprep.subr.bf16.mxu0 %v2215
    %2876 = vmatpush1.bf16.msra.mxu0 %v2214
    %2877 = vmatprep.subr.bf16.mxu0 %v2221
    %2878 = vmatpush1.bf16.msra.mxu0 %v2220
    %2879 = vmatprep.subr.bf16.mxu0 %v2227
    %2880 = vmatpush1.bf16.msra.mxu0 %v2226
    %2881 = vmatprep.mubr.bf16.mxu0 %v467
    %2882 = vmatmul.mubr.bf16.gmra.mrb[0].mxu0 %v466
    %v2883 = vpop.f32.mrb[0].mxu0
    %v2884 = vadd.f32 %v2843, %v2883
    %v2885 = vpop.f32.mrb[0].mxu0
    %v2886 = vadd.f32 %v2845, %v2885
    %v2887 = vpop.f32.mrb[0].mxu0
    %v2888 = vpop.f32.mrb[0].mxu0
    %2889 = vdwg.mxu0
    %2890 = vmatprep.subr.bf16.mxu0 %v2233
    %2891 = vmatpush1.bf16.msra.mxu0 %v2232
    %2892 = vmatprep.subr.bf16.mxu0 %v2239
    %2893 = vmatpush1.bf16.msra.mxu0 %v2238
    %2894 = vmatprep.subr.bf16.mxu0 %v2245
    %2895 = vmatpush1.bf16.msra.mxu0 %v2244
    %2896 = vmatprep.subr.bf16.mxu0 %v2251
    %2897 = vmatpush1.bf16.msra.mxu0 %v2250
    %2898 = vmatprep.subr.bf16.mxu0 %v2257
    %2899 = vmatpush1.bf16.msra.mxu0 %v2256
    %2900 = vmatprep.subr.bf16.mxu0 %v2263
    %2901 = vmatpush1.bf16.msra.mxu0 %v2262
    %2902 = vmatprep.subr.bf16.mxu0 %v2269
    %2903 = vmatpush1.bf16.msra.mxu0 %v2268
    %2904 = vmatprep.subr.bf16.mxu0 %v2275
    %2905 = vmatpush1.bf16.msra.mxu0 %v2274
    %2906 = vmatprep.subr.bf16.mxu0 %v2281
    %2907 = vmatpush1.bf16.msra.mxu0 %v2280
    %2908 = vmatprep.subr.bf16.mxu0 %v2287
    %2909 = vmatpush1.bf16.msra.mxu0 %v2286
    %2910 = vmatprep.subr.bf16.mxu0 %v2293
    %2911 = vmatpush1.bf16.msra.mxu0 %v2292
    %2912 = vmatprep.subr.bf16.mxu0 %v2299
    %2913 = vmatpush1.bf16.msra.mxu0 %v2298
    %2914 = vmatprep.subr.bf16.mxu0 %v2305
    %2915 = vmatpush1.bf16.msra.mxu0 %v2304
    %2916 = vmatprep.subr.bf16.mxu0 %v2311
    %2917 = vmatpush1.bf16.msra.mxu0 %v2310
    %2918 = vmatprep.subr.bf16.mxu0 %v2317
    %2919 = vmatpush1.bf16.msra.mxu0 %v2316
    %2920 = vmatprep.subr.bf16.mxu0 %v2323
    %2921 = vmatpush1.bf16.msra.mxu0 %v2322
    %2922 = vmatprep.mubr.bf16.mxu0 %v469
    %2923 = vmatmul.mubr.bf16.gmra.mrb[0].mxu0 %v468
    %v2924 = vpop.f32.mrb[0].mxu0
    %v2925 = vadd.f32 %v2884, %v2924
    %v2926 = vpop.f32.mrb[0].mxu0
    %v2927 = vadd.f32 %v2886, %v2926
    %v2928 = vpop.f32.mrb[0].mxu0
    %v2929 = vpop.f32.mrb[0].mxu0
    %2930 = vdwg.mxu0
    %2931 = vmatprep.subr.bf16.mxu0 %v2329
    %2932 = vmatpush1.bf16.msra.mxu0 %v2328
    %2933 = vmatprep.subr.bf16.mxu0 %v2335
    %2934 = vmatpush1.bf16.msra.mxu0 %v2334
    %2935 = vmatprep.subr.bf16.mxu0 %v2341
    %2936 = vmatpush1.bf16.msra.mxu0 %v2340
    %2937 = vmatprep.subr.bf16.mxu0 %v2347
    %2938 = vmatpush1.bf16.msra.mxu0 %v2346
    %2939 = vmatprep.subr.bf16.mxu0 %v2353
    %2940 = vmatpush1.bf16.msra.mxu0 %v2352
    %2941 = vmatprep.subr.bf16.mxu0 %v2359
    %2942 = vmatpush1.bf16.msra.mxu0 %v2358
    %2943 = vmatprep.subr.bf16.mxu0 %v2365
    %2944 = vmatpush1.bf16.msra.mxu0 %v2364
    %2945 = vmatprep.subr.bf16.mxu0 %v2371
    %2946 = vmatpush1.bf16.msra.mxu0 %v2370
    %2947 = vmatprep.subr.bf16.mxu0 %v2377
    %2948 = vmatpush1.bf16.msra.mxu0 %v2376
    %2949 = vmatprep.subr.bf16.mxu0 %v2383
    %2950 = vmatpush1.bf16.msra.mxu0 %v2382
    %2951 = vmatprep.subr.bf16.mxu0 %v2389
    %2952 = vmatpush1.bf16.msra.mxu0 %v2388
    %2953 = vmatprep.subr.bf16.mxu0 %v2395
    %2954 = vmatpush1.bf16.msra.mxu0 %v2394
    %2955 = vmatprep.subr.bf16.mxu0 %v2401
    %2956 = vmatpush1.bf16.msra.mxu0 %v2400
    %2957 = vmatprep.subr.bf16.mxu0 %v2407
    %2958 = vmatpush1.bf16.msra.mxu0 %v2406
    %2959 = vmatprep.subr.bf16.mxu0 %v2413
    %2960 = vmatpush1.bf16.msra.mxu0 %v2412
    %2961 = vmatprep.subr.bf16.mxu0 %v2419
    %2962 = vmatpush1.bf16.msra.mxu0 %v2418
    %2963 = vmatprep.mubr.bf16.mxu0 %v471
    %2964 = vmatmul.mubr.bf16.gmra.mrb[0].mxu0 %v470
    %v2965 = vpop.f32.mrb[0].mxu0
    %v2966 = vadd.f32 %v2925, %v2965
    %v2967 = vpop.f32.mrb[0].mxu0
    %v2968 = vadd.f32 %v2927, %v2967
    %v2969 = vpop.f32.mrb[0].mxu0
    %v2970 = vpop.f32.mrb[0].mxu0
    %2971 = vdwg.mxu0
    %2972 = vmatprep.subr.bf16.mxu0 %v2043
    %2973 = vmatpush1.bf16.msra.mxu0 %v2042
    %2974 = vmatprep.subr.bf16.mxu0 %v2049
    %2975 = vmatpush1.bf16.msra.mxu0 %v2048
    %2976 = vmatprep.subr.bf16.mxu0 %v2055
    %2977 = vmatpush1.bf16.msra.mxu0 %v2054
    %2978 = vmatprep.subr.bf16.mxu0 %v2061
    %2979 = vmatpush1.bf16.msra.mxu0 %v2060
    %2980 = vmatprep.subr.bf16.mxu0 %v2067
    %2981 = vmatpush1.bf16.msra.mxu0 %v2066
    %2982 = vmatprep.subr.bf16.mxu0 %v2073
    %2983 = vmatpush1.bf16.msra.mxu0 %v2072
    %2984 = vmatprep.subr.bf16.mxu0 %v2079
    %2985 = vmatpush1.bf16.msra.mxu0 %v2078
    %2986 = vmatprep.subr.bf16.mxu0 %v2085
    %2987 = vmatpush1.bf16.msra.mxu0 %v2084
    %2988 = vmatprep.subr.bf16.mxu0 %v2091
    %2989 = vmatpush1.bf16.msra.mxu0 %v2090
    %2990 = vmatprep.subr.bf16.mxu0 %v2097
    %2991 = vmatpush1.bf16.msra.mxu0 %v2096
    %2992 = vmatprep.subr.bf16.mxu0 %v2103
    %2993 = vmatpush1.bf16.msra.mxu0 %v2102
    %2994 = vmatprep.subr.bf16.mxu0 %v2109
    %2995 = vmatpush1.bf16.msra.mxu0 %v2108
    %2996 = vmatprep.subr.bf16.mxu0 %v2115
    %2997 = vmatpush1.bf16.msra.mxu0 %v2114
    %2998 = vmatprep.subr.bf16.mxu0 %v2121
    %2999 = vmatpush1.bf16.msra.mxu0 %v2120
    %3000 = vmatprep.subr.bf16.mxu0 %v2127
    %3001 = vmatpush1.bf16.msra.mxu0 %v2126
    %3002 = vmatprep.subr.bf16.mxu0 %v2133
    %3003 = vmatpush1.bf16.msra.mxu0 %v2132
    %3004 = vmatprep.mubr.bf16.mxu0 %v465
    %3005 = vmatmul.mubr.bf16.gmra.mrb[0].mxu0 %v464
    %v3006 = vpop.f32.mrb[0].mxu0
    %v3007 = vadd.f32 %v869, %v3006
    %v3008 = vpop.f32.mrb[0].mxu0
    %v3009 = vadd.f32 %v873, %v3008
    %v3010 = vpop.f32.mrb[0].mxu0
    %v3011 = vpop.f32.mrb[0].mxu0
    %3012 = vdwg.mxu0
    %3013 = vmatprep.subr.bf16.mxu0 %v2139
    %3014 = vmatpush1.bf16.msra.mxu0 %v2138
    %3015 = vmatprep.subr.bf16.mxu0 %v2145
    %3016 = vmatpush1.bf16.msra.mxu0 %v2144
    %3017 = vmatprep.subr.bf16.mxu0 %v2151
    %3018 = vmatpush1.bf16.msra.mxu0 %v2150
    %3019 = vmatprep.subr.bf16.mxu0 %v2157
    %3020 = vmatpush1.bf16.msra.mxu0 %v2156
    %3021 = vmatprep.subr.bf16.mxu0 %v2163
    %3022 = vmatpush1.bf16.msra.mxu0 %v2162
    %3023 = vmatprep.subr.bf16.mxu0 %v2169
    %3024 = vmatpush1.bf16.msra.mxu0 %v2168
    %3025 = vmatprep.subr.bf16.mxu0 %v2175
    %3026 = vmatpush1.bf16.msra.mxu0 %v2174
    %3027 = vmatprep.subr.bf16.mxu0 %v2181
    %3028 = vmatpush1.bf16.msra.mxu0 %v2180
    %3029 = vmatprep.subr.bf16.mxu0 %v2187
    %3030 = vmatpush1.bf16.msra.mxu0 %v2186
    %3031 = vmatprep.subr.bf16.mxu0 %v2193
    %3032 = vmatpush1.bf16.msra.mxu0 %v2192
    %3033 = vmatprep.subr.bf16.mxu0 %v2199
    %3034 = vmatpush1.bf16.msra.mxu0 %v2198
    %3035 = vmatprep.subr.bf16.mxu0 %v2205
    %3036 = vmatpush1.bf16.msra.mxu0 %v2204
    %3037 = vmatprep.subr.bf16.mxu0 %v2211
    %3038 = vmatpush1.bf16.msra.mxu0 %v2210
    %3039 = vmatprep.subr.bf16.mxu0 %v2217
    %3040 = vmatpush1.bf16.msra.mxu0 %v2216
    %3041 = vmatprep.subr.bf16.mxu0 %v2223
    %3042 = vmatpush1.bf16.msra.mxu0 %v2222
    %3043 = vmatprep.subr.bf16.mxu0 %v2229
    %3044 = vmatpush1.bf16.msra.mxu0 %v2228
    %3045 = vmatprep.mubr.bf16.mxu0 %v467
    %3046 = vmatmul.mubr.bf16.gmra.mrb[0].mxu0 %v466
    %v3047 = vpop.f32.mrb[0].mxu0
    %v3048 = vadd.f32 %v3007, %v3047
    %v3049 = vpop.f32.mrb[0].mxu0
    %v3050 = vadd.f32 %v3009, %v3049
    %v3051 = vpop.f32.mrb[0].mxu0
    %v3052 = vpop.f32.mrb[0].mxu0
    %3053 = vdwg.mxu0
    %3054 = vmatprep.subr.bf16.mxu0 %v2235
    %3055 = vmatpush1.bf16.msra.mxu0 %v2234
    %3056 = vmatprep.subr.bf16.mxu0 %v2241
    %3057 = vmatpush1.bf16.msra.mxu0 %v2240
    %3058 = vmatprep.subr.bf16.mxu0 %v2247
    %3059 = vmatpush1.bf16.msra.mxu0 %v2246
    %3060 = vmatprep.subr.bf16.mxu0 %v2253
    %3061 = vmatpush1.bf16.msra.mxu0 %v2252
    %3062 = vmatprep.subr.bf16.mxu0 %v2259
    %3063 = vmatpush1.bf16.msra.mxu0 %v2258
    %3064 = vmatprep.subr.bf16.mxu0 %v2265
    %3065 = vmatpush1.bf16.msra.mxu0 %v2264
    %3066 = vmatprep.subr.bf16.mxu0 %v2271
    %3067 = vmatpush1.bf16.msra.mxu0 %v2270
    %3068 = vmatprep.subr.bf16.mxu0 %v2277
    %3069 = vmatpush1.bf16.msra.mxu0 %v2276
    %3070 = vmatprep.subr.bf16.mxu0 %v2283
    %3071 = vmatpush1.bf16.msra.mxu0 %v2282
    %3072 = vmatprep.subr.bf16.mxu0 %v2289
    %3073 = vmatpush1.bf16.msra.mxu0 %v2288
    %3074 = vmatprep.subr.bf16.mxu0 %v2295
    %3075 = vmatpush1.bf16.msra.mxu0 %v2294
    %3076 = vmatprep.subr.bf16.mxu0 %v2301
    %3077 = vmatpush1.bf16.msra.mxu0 %v2300
    %3078 = vmatprep.subr.bf16.mxu0 %v2307
    %3079 = vmatpush1.bf16.msra.mxu0 %v2306
    %3080 = vmatprep.subr.bf16.mxu0 %v2313
    %3081 = vmatpush1.bf16.msra.mxu0 %v2312
    %3082 = vmatprep.subr.bf16.mxu0 %v2319
    %3083 = vmatpush1.bf16.msra.mxu0 %v2318
    %3084 = vmatprep.subr.bf16.mxu0 %v2325
    %3085 = vmatpush1.bf16.msra.mxu0 %v2324
    %3086 = vmatprep.mubr.bf16.mxu0 %v469
    %3087 = vmatmul.mubr.bf16.gmra.mrb[0].mxu0 %v468
    %v3088 = vpop.f32.mrb[0].mxu0
    %v3089 = vadd.f32 %v3048, %v3088
    %v3090 = vpop.f32.mrb[0].mxu0
    %v3091 = vadd.f32 %v3050, %v3090
    %v3092 = vpop.f32.mrb[0].mxu0
    %v3093 = vpop.f32.mrb[0].mxu0
    %3094 = vdwg.mxu0
    %3095 = vmatprep.subr.bf16.mxu0 %v2331
    %3096 = vmatpush1.bf16.msra.mxu0 %v2330
    %3097 = vmatprep.subr.bf16.mxu0 %v2337
    %3098 = vmatpush1.bf16.msra.mxu0 %v2336
    %3099 = vmatprep.subr.bf16.mxu0 %v2343
    %3100 = vmatpush1.bf16.msra.mxu0 %v2342
    %3101 = vmatprep.subr.bf16.mxu0 %v2349
    %3102 = vmatpush1.bf16.msra.mxu0 %v2348
    %3103 = vmatprep.subr.bf16.mxu0 %v2355
    %3104 = vmatpush1.bf16.msra.mxu0 %v2354
    %3105 = vmatprep.subr.bf16.mxu0 %v2361
    %3106 = vmatpush1.bf16.msra.mxu0 %v2360
    %3107 = vmatprep.subr.bf16.mxu0 %v2367
    %3108 = vmatpush1.bf16.msra.mxu0 %v2366
    %3109 = vmatprep.subr.bf16.mxu0 %v2373
    %3110 = vmatpush1.bf16.msra.mxu0 %v2372
    %3111 = vmatprep.subr.bf16.mxu0 %v2379
    %3112 = vmatpush1.bf16.msra.mxu0 %v2378
    %3113 = vmatprep.subr.bf16.mxu0 %v2385
    %3114 = vmatpush1.bf16.msra.mxu0 %v2384
    %3115 = vmatprep.subr.bf16.mxu0 %v2391
    %3116 = vmatpush1.bf16.msra.mxu0 %v2390
    %3117 = vmatprep.subr.bf16.mxu0 %v2397
    %3118 = vmatpush1.bf16.msra.mxu0 %v2396
    %3119 = vmatprep.subr.bf16.mxu0 %v2403
    %3120 = vmatpush1.bf16.msra.mxu0 %v2402
    %3121 = vmatprep.subr.bf16.mxu0 %v2409
    %3122 = vmatpush1.bf16.msra.mxu0 %v2408
    %3123 = vmatprep.subr.bf16.mxu0 %v2415
    %3124 = vmatpush1.bf16.msra.mxu0 %v2414
    %3125 = vmatprep.subr.bf16.mxu0 %v2421
    %3126 = vmatpush1.bf16.msra.mxu0 %v2420
    %3127 = vmatprep.mubr.bf16.mxu0 %v471
    %3128 = vmatmul.mubr.bf16.gmra.mrb[0].mxu0 %v470
    %v3129 = vpop.f32.mrb[0].mxu0
    %v3130 = vadd.f32 %v3089, %v3129
    %v3131 = vpop.f32.mrb[0].mxu0
    %v3132 = vadd.f32 %v3091, %v3131
    %v3133 = vpop.f32.mrb[0].mxu0
    %v3134 = vpop.f32.mrb[0].mxu0
    %3135 = vdwg.mxu0
    %3136 = vmatprep.subr.bf16.mxu0 %v2045
    %3137 = vmatpush1.bf16.msra.mxu0 %v2044
    %3138 = vmatprep.subr.bf16.mxu0 %v2051
    %3139 = vmatpush1.bf16.msra.mxu0 %v2050
    %3140 = vmatprep.subr.bf16.mxu0 %v2057
    %3141 = vmatpush1.bf16.msra.mxu0 %v2056
    %3142 = vmatprep.subr.bf16.mxu0 %v2063
    %3143 = vmatpush1.bf16.msra.mxu0 %v2062
    %3144 = vmatprep.subr.bf16.mxu0 %v2069
    %3145 = vmatpush1.bf16.msra.mxu0 %v2068
    %3146 = vmatprep.subr.bf16.mxu0 %v2075
    %3147 = vmatpush1.bf16.msra.mxu0 %v2074
    %3148 = vmatprep.subr.bf16.mxu0 %v2081
    %3149 = vmatpush1.bf16.msra.mxu0 %v2080
    %3150 = vmatprep.subr.bf16.mxu0 %v2087
    %3151 = vmatpush1.bf16.msra.mxu0 %v2086
    %3152 = vmatprep.subr.bf16.mxu0 %v2093
    %3153 = vmatpush1.bf16.msra.mxu0 %v2092
    %3154 = vmatprep.subr.bf16.mxu0 %v2099
    %3155 = vmatpush1.bf16.msra.mxu0 %v2098
    %3156 = vmatprep.subr.bf16.mxu0 %v2105
    %3157 = vmatpush1.bf16.msra.mxu0 %v2104
    %3158 = vmatprep.subr.bf16.mxu0 %v2111
    %3159 = vmatpush1.bf16.msra.mxu0 %v2110
    %3160 = vmatprep.subr.bf16.mxu0 %v2117
    %3161 = vmatpush1.bf16.msra.mxu0 %v2116
    %3162 = vmatprep.subr.bf16.mxu0 %v2123
    %3163 = vmatpush1.bf16.msra.mxu0 %v2122
    %3164 = vmatprep.subr.bf16.mxu0 %v2129
    %3165 = vmatpush1.bf16.msra.mxu0 %v2128
    %3166 = vmatprep.subr.bf16.mxu0 %v2135
    %3167 = vmatpush1.bf16.msra.mxu0 %v2134
    %3168 = vmatprep.mubr.bf16.mxu0 %v465
    %3169 = vmatmul.mubr.bf16.gmra.mrb[0].mxu0 %v464
    %v3170 = vpop.f32.mrb[0].mxu0
    %v3171 = vadd.f32 %v877, %v3170
    %v3172 = vpop.f32.mrb[0].mxu0
    %v3173 = vadd.f32 %v881, %v3172
    %v3174 = vpop.f32.mrb[0].mxu0
    %v3175 = vpop.f32.mrb[0].mxu0
    %3176 = vdwg.mxu0
    %3177 = vmatprep.subr.bf16.mxu0 %v2141
    %3178 = vmatpush1.bf16.msra.mxu0 %v2140
    %3179 = vmatprep.subr.bf16.mxu0 %v2147
    %3180 = vmatpush1.bf16.msra.mxu0 %v2146
    %3181 = vmatprep.subr.bf16.mxu0 %v2153
    %3182 = vmatpush1.bf16.msra.mxu0 %v2152
    %3183 = vmatprep.subr.bf16.mxu0 %v2159
    %3184 = vmatpush1.bf16.msra.mxu0 %v2158
    %3185 = vmatprep.subr.bf16.mxu0 %v2165
    %3186 = vmatpush1.bf16.msra.mxu0 %v2164
    %3187 = vmatprep.subr.bf16.mxu0 %v2171
    %3188 = vmatpush1.bf16.msra.mxu0 %v2170
    %3189 = vmatprep.subr.bf16.mxu0 %v2177
    %3190 = vmatpush1.bf16.msra.mxu0 %v2176
    %3191 = vmatprep.subr.bf16.mxu0 %v2183
    %3192 = vmatpush1.bf16.msra.mxu0 %v2182
    %3193 = vmatprep.subr.bf16.mxu0 %v2189
    %3194 = vmatpush1.bf16.msra.mxu0 %v2188
    %3195 = vmatprep.subr.bf16.mxu0 %v2195
    %3196 = vmatpush1.bf16.msra.mxu0 %v2194
    %3197 = vmatprep.subr.bf16.mxu0 %v2201
    %3198 = vmatpush1.bf16.msra.mxu0 %v2200
    %3199 = vmatprep.subr.bf16.mxu0 %v2207
    %3200 = vmatpush1.bf16.msra.mxu0 %v2206
    %3201 = vmatprep.subr.bf16.mxu0 %v2213
    %3202 = vmatpush1.bf16.msra.mxu0 %v2212
    %3203 = vmatprep.subr.bf16.mxu0 %v2219
    %3204 = vmatpush1.bf16.msra.mxu0 %v2218
    %3205 = vmatprep.subr.bf16.mxu0 %v2225
    %3206 = vmatpush1.bf16.msra.mxu0 %v2224
    %3207 = vmatprep.subr.bf16.mxu0 %v2231
    %3208 = vmatpush1.bf16.msra.mxu0 %v2230
    %3209 = vmatprep.mubr.bf16.mxu0 %v467
    %3210 = vmatmul.mubr.bf16.gmra.mrb[0].mxu0 %v466
    %v3211 = vpop.f32.mrb[0].mxu0
    %v3212 = vadd.f32 %v3171, %v3211
    %v3213 = vpop.f32.mrb[0].mxu0
    %v3214 = vadd.f32 %v3173, %v3213
    %v3215 = vpop.f32.mrb[0].mxu0
    %v3216 = vpop.f32.mrb[0].mxu0
    %3217 = vdwg.mxu0
    %3218 = vmatprep.subr.bf16.mxu0 %v2237
    %3219 = vmatpush1.bf16.msra.mxu0 %v2236
    %3220 = vmatprep.subr.bf16.mxu0 %v2243
    %3221 = vmatpush1.bf16.msra.mxu0 %v2242
    %3222 = vmatprep.subr.bf16.mxu0 %v2249
    %3223 = vmatpush1.bf16.msra.mxu0 %v2248
    %3224 = vmatprep.subr.bf16.mxu0 %v2255
    %3225 = vmatpush1.bf16.msra.mxu0 %v2254
    %3226 = vmatprep.subr.bf16.mxu0 %v2261
    %3227 = vmatpush1.bf16.msra.mxu0 %v2260
    %3228 = vmatprep.subr.bf16.mxu0 %v2267
    %3229 = vmatpush1.bf16.msra.mxu0 %v2266
    %3230 = vmatprep.subr.bf16.mxu0 %v2273
    %3231 = vmatpush1.bf16.msra.mxu0 %v2272
    %3232 = vmatprep.subr.bf16.mxu0 %v2279
    %3233 = vmatpush1.bf16.msra.mxu0 %v2278
    %3234 = vmatprep.subr.bf16.mxu0 %v2285
    %3235 = vmatpush1.bf16.msra.mxu0 %v2284
    %3236 = vmatprep.subr.bf16.mxu0 %v2291
    %3237 = vmatpush1.bf16.msra.mxu0 %v2290
    %3238 = vmatprep.subr.bf16.mxu0 %v2297
    %3239 = vmatpush1.bf16.msra.mxu0 %v2296
    %3240 = vmatprep.subr.bf16.mxu0 %v2303
    %3241 = vmatpush1.bf16.msra.mxu0 %v2302
    %3242 = vmatprep.subr.bf16.mxu0 %v2309
    %3243 = vmatpush1.bf16.msra.mxu0 %v2308
    %3244 = vmatprep.subr.bf16.mxu0 %v2315
    %3245 = vmatpush1.bf16.msra.mxu0 %v2314
    %3246 = vmatprep.subr.bf16.mxu0 %v2321
    %3247 = vmatpush1.bf16.msra.mxu0 %v2320
    %3248 = vmatprep.subr.bf16.mxu0 %v2327
    %3249 = vmatpush1.bf16.msra.mxu0 %v2326
    %3250 = vmatprep.mubr.bf16.mxu0 %v469
    %3251 = vmatmul.mubr.bf16.gmra.mrb[0].mxu0 %v468
    %v3252 = vpop.f32.mrb[0].mxu0
    %v3253 = vadd.f32 %v3212, %v3252
    %v3254 = vpop.f32.mrb[0].mxu0
    %v3255 = vadd.f32 %v3214, %v3254
    %v3256 = vpop.f32.mrb[0].mxu0
    %v3257 = vpop.f32.mrb[0].mxu0
    %3258 = vdwg.mxu0
    %3259 = vmatprep.subr.bf16.mxu0 %v2333
    %3260 = vmatpush1.bf16.msra.mxu0 %v2332
    %3261 = vmatprep.subr.bf16.mxu0 %v2339
    %3262 = vmatpush1.bf16.msra.mxu0 %v2338
    %3263 = vmatprep.subr.bf16.mxu0 %v2345
    %3264 = vmatpush1.bf16.msra.mxu0 %v2344
    %3265 = vmatprep.subr.bf16.mxu0 %v2351
    %3266 = vmatpush1.bf16.msra.mxu0 %v2350
    %3267 = vmatprep.subr.bf16.mxu0 %v2357
    %3268 = vmatpush1.bf16.msra.mxu0 %v2356
    %3269 = vmatprep.subr.bf16.mxu0 %v2363
    %3270 = vmatpush1.bf16.msra.mxu0 %v2362
    %3271 = vmatprep.subr.bf16.mxu0 %v2369
    %3272 = vmatpush1.bf16.msra.mxu0 %v2368
    %3273 = vmatprep.subr.bf16.mxu0 %v2375
    %3274 = vmatpush1.bf16.msra.mxu0 %v2374
    %3275 = vmatprep.subr.bf16.mxu0 %v2381
    %3276 = vmatpush1.bf16.msra.mxu0 %v2380
    %3277 = vmatprep.subr.bf16.mxu0 %v2387
    %3278 = vmatpush1.bf16.msra.mxu0 %v2386
    %3279 = vmatprep.subr.bf16.mxu0 %v2393
    %3280 = vmatpush1.bf16.msra.mxu0 %v2392
    %3281 = vmatprep.subr.bf16.mxu0 %v2399
    %3282 = vmatpush1.bf16.msra.mxu0 %v2398
    %3283 = vmatprep.subr.bf16.mxu0 %v2405
    %3284 = vmatpush1.bf16.msra.mxu0 %v2404
    %3285 = vmatprep.subr.bf16.mxu0 %v2411
    %3286 = vmatpush1.bf16.msra.mxu0 %v2410
    %3287 = vmatprep.subr.bf16.mxu0 %v2417
    %3288 = vmatpush1.bf16.msra.mxu0 %v2416
    %3289 = vmatprep.subr.bf16.mxu0 %v2423
    %3290 = vmatpush1.bf16.msra.mxu0 %v2422
    %3291 = vmatprep.mubr.bf16.mxu0 %v471
    %3292 = vmatmul.mubr.bf16.gmra.mrb[0].mxu0 %v470
    %v3293 = vpop.f32.mrb[0].mxu0
    %v3294 = vadd.f32 %v3253, %v3293
    %v3295 = vpop.f32.mrb[0].mxu0
    %v3296 = vadd.f32 %v3255, %v3295
    %v3297 = vpop.f32.mrb[0].mxu0
    %v3298 = vpop.f32.mrb[0].mxu0
    %3299 = vdwg.mxu0
    %v3300 = vmax.f32 %v2966, 0.0
    %v3301 = vmax.f32 %v2968, 0.0
    %v3302 = vmax.f32 %v3130, 0.0
    %v3303 = vmax.f32 %v3132, 0.0
    %v3304 = vmax.f32 %v3294, 0.0
    %v3305 = vmax.f32 %v3296, 0.0
    %v3306 = vpack.c.bf16 %v3300, %v3300
    %v3307 = vpack.c.bf16 %v3301, %v3301
    %v3308 = vpack.c.bf16 %v3302, %v3302
    %v3309 = vpack.c.bf16 %v3303, %v3303
    %v3310 = vpack.c.bf16 %v3304, %v3304
    %v3311 = vpack.c.bf16 %v3305, %v3305
    %v3312 = vld [vmem:[#allocation11] sm:$0xff]
    %v3313 = vld [vmem:[#allocation11 + $0x8] sm:$0xff]
    %v3314 = vld [vmem:[#allocation11 + $0x10] sm:$0xff]
    %v3315 = vld [vmem:[#allocation11 + $0x18] sm:$0xff]
    %v3316 = vld [vmem:[#allocation11 + $0x20] sm:$0xff]
    %v3317 = vld [vmem:[#allocation11 + $0x28] sm:$0xff]
    %v3318 = vld [vmem:[#allocation11 + $0x30] sm:$0xff]
    %v3319 = vld [vmem:[#allocation11 + $0x38] sm:$0xff]
    %v3320 = vld [vmem:[#allocation11 + $0x40] sm:$0xff]
    %v3321 = vld [vmem:[#allocation11 + $0x48] sm:$0xff]
    %v3322 = vld [vmem:[#allocation11 + $0x50] sm:$0xff]
    %v3323 = vld [vmem:[#allocation11 + $0x58] sm:$0xff]
    %v3324 = vld [vmem:[#allocation11 + $0x60] sm:$0xff]
    %v3325 = vld [vmem:[#allocation11 + $0x68] sm:$0xff]
    %v3326 = vld [vmem:[#allocation11 + $0x70] sm:$0xff]
    %v3327 = vld [vmem:[#allocation11 + $0x78] sm:$0xff]
    %v3328 = vld [vmem:[#allocation11 + $0x80] sm:$0xff]
    %v3329 = vld [vmem:[#allocation11 + $0x88] sm:$0xff]
    %v3330 = vld [vmem:[#allocation11 + $0x90] sm:$0xff]
    %v3331 = vld [vmem:[#allocation11 + $0x98] sm:$0xff]
    %v3332 = vld [vmem:[#allocation11 + $0xa0] sm:$0xff]
    %v3333 = vld [vmem:[#allocation11 + $0xa8] sm:$0xff]
    %v3334 = vld [vmem:[#allocation11 + $0xb0] sm:$0xff]
    %v3335 = vld [vmem:[#allocation11 + $0xb8] sm:$0xff]
    %v3336 = vld [vmem:[#allocation11 + $0xc0] sm:$0xff]
    %v3337 = vld [vmem:[#allocation11 + $0xc8] sm:$0xff]
    %v3338 = vld [vmem:[#allocation11 + $0xd0] sm:$0xff]
    %v3339 = vld [vmem:[#allocation11 + $0xd8] sm:$0xff]
    %v3340 = vld [vmem:[#allocation11 + $0xe0] sm:$0xff]
    %v3341 = vld [vmem:[#allocation11 + $0xe8] sm:$0xff]
    %v3342 = vld [vmem:[#allocation11 + $0xf0] sm:$0xff]
    %v3343 = vld [vmem:[#allocation11 + $0xf8] sm:$0xff]
    %v3344 = vld [vmem:[#allocation11 + $0x100] sm:$0xff]
    %v3345 = vld [vmem:[#allocation11 + $0x108] sm:$0xff]
    %v3346 = vld [vmem:[#allocation11 + $0x110] sm:$0xff]
    %v3347 = vld [vmem:[#allocation11 + $0x118] sm:$0xff]
    %v3348 = vld [vmem:[#allocation11 + $0x120] sm:$0xff]
    %v3349 = vld [vmem:[#allocation11 + $0x128] sm:$0xff]
    %v3350 = vld [vmem:[#allocation11 + $0x130] sm:$0xff]
    %v3351 = vld [vmem:[#allocation11 + $0x138] sm:$0xff]
    %v3352 = vld [vmem:[#allocation11 + $0x140] sm:$0xff]
    %v3353 = vld [vmem:[#allocation11 + $0x148] sm:$0xff]
    %v3354 = vld [vmem:[#allocation11 + $0x150] sm:$0xff]
    %v3355 = vld [vmem:[#allocation11 + $0x158] sm:$0xff]
    %v3356 = vld [vmem:[#allocation11 + $0x160] sm:$0xff]
    %v3357 = vld [vmem:[#allocation11 + $0x168] sm:$0xff]
    %v3358 = vld [vmem:[#allocation11 + $0x170] sm:$0xff]
    %v3359 = vld [vmem:[#allocation11 + $0x178] sm:$0xff]
    %v3360 = vld [vmem:[#allocation11 + $0x180] sm:$0xff]
    %v3361 = vld [vmem:[#allocation11 + $0x188] sm:$0xff]
    %v3362 = vld [vmem:[#allocation11 + $0x190] sm:$0xff]
    %v3363 = vld [vmem:[#allocation11 + $0x198] sm:$0xff]
    %v3364 = vld [vmem:[#allocation11 + $0x1a0] sm:$0xff]
    %v3365 = vld [vmem:[#allocation11 + $0x1a8] sm:$0xff]
    %v3366 = vld [vmem:[#allocation11 + $0x1b0] sm:$0xff]
    %v3367 = vld [vmem:[#allocation11 + $0x1b8] sm:$0xff]
    %v3368 = vld [vmem:[#allocation11 + $0x1c0] sm:$0xff]
    %v3369 = vld [vmem:[#allocation11 + $0x1c8] sm:$0xff]
    %v3370 = vld [vmem:[#allocation11 + $0x1d0] sm:$0xff]
    %v3371 = vld [vmem:[#allocation11 + $0x1d8] sm:$0xff]
    %v3372 = vld [vmem:[#allocation11 + $0x1e0] sm:$0xff]
    %v3373 = vld [vmem:[#allocation11 + $0x1e8] sm:$0xff]
    %v3374 = vld [vmem:[#allocation11 + $0x1f0] sm:$0xff]
    %v3375 = vld [vmem:[#allocation11 + $0x1f8] sm:$0xff]
    %v3376 = vld [vmem:[#allocation11 + $0x200] sm:$0xff]
    %v3377 = vld [vmem:[#allocation11 + $0x208] sm:$0xff]
    %v3378 = vld [vmem:[#allocation11 + $0x210] sm:$0xff]
    %v3379 = vld [vmem:[#allocation11 + $0x218] sm:$0xff]
    %v3380 = vld [vmem:[#allocation11 + $0x220] sm:$0xff]
    %v3381 = vld [vmem:[#allocation11 + $0x228] sm:$0xff]
    %v3382 = vld [vmem:[#allocation11 + $0x230] sm:$0xff]
    %v3383 = vld [vmem:[#allocation11 + $0x238] sm:$0xff]
    %v3384 = vld [vmem:[#allocation11 + $0x240] sm:$0xff]
    %v3385 = vld [vmem:[#allocation11 + $0x248] sm:$0xff]
    %v3386 = vld [vmem:[#allocation11 + $0x250] sm:$0xff]
    %v3387 = vld [vmem:[#allocation11 + $0x258] sm:$0xff]
    %v3388 = vld [vmem:[#allocation11 + $0x260] sm:$0xff]
    %v3389 = vld [vmem:[#allocation11 + $0x268] sm:$0xff]
    %v3390 = vld [vmem:[#allocation11 + $0x270] sm:$0xff]
    %v3391 = vld [vmem:[#allocation11 + $0x278] sm:$0xff]
    %v3392 = vld [vmem:[#allocation11 + $0x280] sm:$0xff]
    %v3393 = vld [vmem:[#allocation11 + $0x288] sm:$0xff]
    %v3394 = vld [vmem:[#allocation11 + $0x290] sm:$0xff]
    %v3395 = vld [vmem:[#allocation11 + $0x298] sm:$0xff]
    %v3396 = vld [vmem:[#allocation11 + $0x2a0] sm:$0xff]
    %v3397 = vld [vmem:[#allocation11 + $0x2a8] sm:$0xff]
    %v3398 = vld [vmem:[#allocation11 + $0x2b0] sm:$0xff]
    %v3399 = vld [vmem:[#allocation11 + $0x2b8] sm:$0xff]
    %v3400 = vld [vmem:[#allocation11 + $0x2c0] sm:$0xff]
    %v3401 = vld [vmem:[#allocation11 + $0x2c8] sm:$0xff]
    %v3402 = vld [vmem:[#allocation11 + $0x2d0] sm:$0xff]
    %v3403 = vld [vmem:[#allocation11 + $0x2d8] sm:$0xff]
    %v3404 = vld [vmem:[#allocation11 + $0x2e0] sm:$0xff]
    %v3405 = vld [vmem:[#allocation11 + $0x2e8] sm:$0xff]
    %v3406 = vld [vmem:[#allocation11 + $0x2f0] sm:$0xff]
    %v3407 = vld [vmem:[#allocation11 + $0x2f8] sm:$0xff]
    %v3408 = vld [vmem:[#allocation11 + $0x300] sm:$0xff]
    %v3409 = vld [vmem:[#allocation11 + $0x308] sm:$0xff]
    %v3410 = vld [vmem:[#allocation11 + $0x310] sm:$0xff]
    %v3411 = vld [vmem:[#allocation11 + $0x318] sm:$0xff]
    %v3412 = vld [vmem:[#allocation11 + $0x320] sm:$0xff]
    %v3413 = vld [vmem:[#allocation11 + $0x328] sm:$0xff]
    %v3414 = vld [vmem:[#allocation11 + $0x330] sm:$0xff]
    %v3415 = vld [vmem:[#allocation11 + $0x338] sm:$0xff]
    %v3416 = vld [vmem:[#allocation11 + $0x340] sm:$0xff]
    %v3417 = vld [vmem:[#allocation11 + $0x348] sm:$0xff]
    %v3418 = vld [vmem:[#allocation11 + $0x350] sm:$0xff]
    %v3419 = vld [vmem:[#allocation11 + $0x358] sm:$0xff]
    %v3420 = vld [vmem:[#allocation11 + $0x360] sm:$0xff]
    %v3421 = vld [vmem:[#allocation11 + $0x368] sm:$0xff]
    %v3422 = vld [vmem:[#allocation11 + $0x370] sm:$0xff]
    %v3423 = vld [vmem:[#allocation11 + $0x378] sm:$0xff]
    %v3424 = vld [vmem:[#allocation11 + $0x380] sm:$0xff]
    %v3425 = vld [vmem:[#allocation11 + $0x388] sm:$0xff]
    %v3426 = vld [vmem:[#allocation11 + $0x390] sm:$0xff]
    %v3427 = vld [vmem:[#allocation11 + $0x398] sm:$0xff]
    %v3428 = vld [vmem:[#allocation11 + $0x3a0] sm:$0xff]
    %v3429 = vld [vmem:[#allocation11 + $0x3a8] sm:$0xff]
    %v3430 = vld [vmem:[#allocation11 + $0x3b0] sm:$0xff]
    %v3431 = vld [vmem:[#allocation11 + $0x3b8] sm:$0xff]
    %v3432 = vld [vmem:[#allocation11 + $0x3c0] sm:$0xff]
    %v3433 = vld [vmem:[#allocation11 + $0x3c8] sm:$0xff]
    %v3434 = vld [vmem:[#allocation11 + $0x3d0] sm:$0xff]
    %v3435 = vld [vmem:[#allocation11 + $0x3d8] sm:$0xff]
    %v3436 = vld [vmem:[#allocation11 + $0x3e0] sm:$0xff]
    %v3437 = vld [vmem:[#allocation11 + $0x3e8] sm:$0xff]
    %v3438 = vld [vmem:[#allocation11 + $0x3f0] sm:$0xff]
    %v3439 = vld [vmem:[#allocation11 + $0x3f8] sm:$0xff]
    %v3440 = vld [vmem:[#allocation11 + $0x400] sm:$0xff]
    %v3441 = vld [vmem:[#allocation11 + $0x408] sm:$0xff]
    %v3442 = vld [vmem:[#allocation11 + $0x410] sm:$0xff]
    %v3443 = vld [vmem:[#allocation11 + $0x418] sm:$0xff]
    %v3444 = vld [vmem:[#allocation11 + $0x420] sm:$0xff]
    %v3445 = vld [vmem:[#allocation11 + $0x428] sm:$0xff]
    %v3446 = vld [vmem:[#allocation11 + $0x430] sm:$0xff]
    %v3447 = vld [vmem:[#allocation11 + $0x438] sm:$0xff]
    %v3448 = vld [vmem:[#allocation11 + $0x440] sm:$0xff]
    %v3449 = vld [vmem:[#allocation11 + $0x448] sm:$0xff]
    %v3450 = vld [vmem:[#allocation11 + $0x450] sm:$0xff]
    %v3451 = vld [vmem:[#allocation11 + $0x458] sm:$0xff]
    %v3452 = vld [vmem:[#allocation11 + $0x460] sm:$0xff]
    %v3453 = vld [vmem:[#allocation11 + $0x468] sm:$0xff]
    %v3454 = vld [vmem:[#allocation11 + $0x470] sm:$0xff]
    %v3455 = vld [vmem:[#allocation11 + $0x478] sm:$0xff]
    %v3456 = vld [vmem:[#allocation11 + $0x480] sm:$0xff]
    %v3457 = vld [vmem:[#allocation11 + $0x488] sm:$0xff]
    %v3458 = vld [vmem:[#allocation11 + $0x490] sm:$0xff]
    %v3459 = vld [vmem:[#allocation11 + $0x498] sm:$0xff]
    %v3460 = vld [vmem:[#allocation11 + $0x4a0] sm:$0xff]
    %v3461 = vld [vmem:[#allocation11 + $0x4a8] sm:$0xff]
    %v3462 = vld [vmem:[#allocation11 + $0x4b0] sm:$0xff]
    %v3463 = vld [vmem:[#allocation11 + $0x4b8] sm:$0xff]
    %v3464 = vld [vmem:[#allocation11 + $0x4c0] sm:$0xff]
    %v3465 = vld [vmem:[#allocation11 + $0x4c8] sm:$0xff]
    %v3466 = vld [vmem:[#allocation11 + $0x4d0] sm:$0xff]
    %v3467 = vld [vmem:[#allocation11 + $0x4d8] sm:$0xff]
    %v3468 = vld [vmem:[#allocation11 + $0x4e0] sm:$0xff]
    %v3469 = vld [vmem:[#allocation11 + $0x4e8] sm:$0xff]
    %v3470 = vld [vmem:[#allocation11 + $0x4f0] sm:$0xff]
    %v3471 = vld [vmem:[#allocation11 + $0x4f8] sm:$0xff]
    %v3472 = vld [vmem:[#allocation11 + $0x500] sm:$0xff]
    %v3473 = vld [vmem:[#allocation11 + $0x508] sm:$0xff]
    %v3474 = vld [vmem:[#allocation11 + $0x510] sm:$0xff]
    %v3475 = vld [vmem:[#allocation11 + $0x518] sm:$0xff]
    %v3476 = vld [vmem:[#allocation11 + $0x520] sm:$0xff]
    %v3477 = vld [vmem:[#allocation11 + $0x528] sm:$0xff]
    %v3478 = vld [vmem:[#allocation11 + $0x530] sm:$0xff]
    %v3479 = vld [vmem:[#allocation11 + $0x538] sm:$0xff]
    %v3480 = vld [vmem:[#allocation11 + $0x540] sm:$0xff]
    %v3481 = vld [vmem:[#allocation11 + $0x548] sm:$0xff]
    %v3482 = vld [vmem:[#allocation11 + $0x550] sm:$0xff]
    %v3483 = vld [vmem:[#allocation11 + $0x558] sm:$0xff]
    %v3484 = vld [vmem:[#allocation11 + $0x560] sm:$0xff]
    %v3485 = vld [vmem:[#allocation11 + $0x568] sm:$0xff]
    %v3486 = vld [vmem:[#allocation11 + $0x570] sm:$0xff]
    %v3487 = vld [vmem:[#allocation11 + $0x578] sm:$0xff]
    %v3488 = vld [vmem:[#allocation11 + $0x580] sm:$0xff]
    %v3489 = vld [vmem:[#allocation11 + $0x588] sm:$0xff]
    %v3490 = vld [vmem:[#allocation11 + $0x590] sm:$0xff]
    %v3491 = vld [vmem:[#allocation11 + $0x598] sm:$0xff]
    %v3492 = vld [vmem:[#allocation11 + $0x5a0] sm:$0xff]
    %v3493 = vld [vmem:[#allocation11 + $0x5a8] sm:$0xff]
    %v3494 = vld [vmem:[#allocation11 + $0x5b0] sm:$0xff]
    %v3495 = vld [vmem:[#allocation11 + $0x5b8] sm:$0xff]
    %v3496 = vld [vmem:[#allocation11 + $0x5c0] sm:$0xff]
    %v3497 = vld [vmem:[#allocation11 + $0x5c8] sm:$0xff]
    %v3498 = vld [vmem:[#allocation11 + $0x5d0] sm:$0xff]
    %v3499 = vld [vmem:[#allocation11 + $0x5d8] sm:$0xff]
    %v3500 = vld [vmem:[#allocation11 + $0x5e0] sm:$0xff]
    %v3501 = vld [vmem:[#allocation11 + $0x5e8] sm:$0xff]
    %v3502 = vld [vmem:[#allocation11 + $0x5f0] sm:$0xff]
    %v3503 = vld [vmem:[#allocation11 + $0x5f8] sm:$0xff]
    %v3504 = vld [vmem:[#allocation13] sm:$0xf]
    %v3506 = vlaneseq
    %v3507 = vshrl.u32 %v3506, 7
    %v3508 = vsub.s32 0, %v3507
    %v3509 = vrot.slane %v3504, %v3508
    %v3510 = vlaneseq
    %v3511 = vshrl.u32 %v3510, 7
    %v3512 = vsub.s32 1, %v3511
    %v3513 = vrot.slane %v3504, %v3512
    %v3514 = vlaneseq
    %v3515 = vshrl.u32 %v3514, 7
    %v3516 = vsub.s32 2, %v3515
    %v3517 = vrot.slane %v3504, %v3516
    %v3518 = vlaneseq
    %v3519 = vshrl.u32 %v3518, 7
    %v3520 = vsub.s32 3, %v3519
    %v3521 = vrot.slane %v3504, %v3520
    %v3718 = vunpack.c.l.b16 %v3312
    %v3719 = vunpack.c.h.b16 %v3312
    %v3720 = vunpack.c.l.b16 %v3313
    %v3721 = vunpack.c.h.b16 %v3313
    %v3722 = vunpack.c.l.b16 %v3314
    %v3723 = vunpack.c.h.b16 %v3314
    %v3724 = vunpack.c.l.b16 %v3315
    %v3725 = vunpack.c.h.b16 %v3315
    %v3726 = vunpack.c.l.b16 %v3316
    %v3727 = vunpack.c.h.b16 %v3316
    %v3728 = vunpack.c.l.b16 %v3317
    %v3729 = vunpack.c.h.b16 %v3317
    %v3730 = vunpack.c.l.b16 %v3318
    %v3731 = vunpack.c.h.b16 %v3318
    %v3732 = vunpack.c.l.b16 %v3319
    %v3733 = vunpack.c.h.b16 %v3319
    %v3734 = vunpack.c.l.b16 %v3320
    %v3735 = vunpack.c.h.b16 %v3320
    %v3736 = vunpack.c.l.b16 %v3321
    %v3737 = vunpack.c.h.b16 %v3321
    %v3738 = vunpack.c.l.b16 %v3322
    %v3739 = vunpack.c.h.b16 %v3322
    %v3740 = vunpack.c.l.b16 %v3323
    %v3741 = vunpack.c.h.b16 %v3323
    %v3742 = vunpack.c.l.b16 %v3324
    %v3743 = vunpack.c.h.b16 %v3324
    %v3744 = vunpack.c.l.b16 %v3325
    %v3745 = vunpack.c.h.b16 %v3325
    %v3746 = vunpack.c.l.b16 %v3326
    %v3747 = vunpack.c.h.b16 %v3326
    %v3748 = vunpack.c.l.b16 %v3327
    %v3749 = vunpack.c.h.b16 %v3327
    %v3750 = vunpack.c.l.b16 %v3328
    %v3751 = vunpack.c.h.b16 %v3328
    %v3752 = vunpack.c.l.b16 %v3329
    %v3753 = vunpack.c.h.b16 %v3329
    %v3754 = vunpack.c.l.b16 %v3330
    %v3755 = vunpack.c.h.b16 %v3330
    %v3756 = vunpack.c.l.b16 %v3331
    %v3757 = vunpack.c.h.b16 %v3331
    %v3758 = vunpack.c.l.b16 %v3332
    %v3759 = vunpack.c.h.b16 %v3332
    %v3760 = vunpack.c.l.b16 %v3333
    %v3761 = vunpack.c.h.b16 %v3333
    %v3762 = vunpack.c.l.b16 %v3334
    %v3763 = vunpack.c.h.b16 %v3334
    %v3764 = vunpack.c.l.b16 %v3335
    %v3765 = vunpack.c.h.b16 %v3335
    %v3766 = vunpack.c.l.b16 %v3336
    %v3767 = vunpack.c.h.b16 %v3336
    %v3768 = vunpack.c.l.b16 %v3337
    %v3769 = vunpack.c.h.b16 %v3337
    %v3770 = vunpack.c.l.b16 %v3338
    %v3771 = vunpack.c.h.b16 %v3338
    %v3772 = vunpack.c.l.b16 %v3339
    %v3773 = vunpack.c.h.b16 %v3339
    %v3774 = vunpack.c.l.b16 %v3340
    %v3775 = vunpack.c.h.b16 %v3340
    %v3776 = vunpack.c.l.b16 %v3341
    %v3777 = vunpack.c.h.b16 %v3341
    %v3778 = vunpack.c.l.b16 %v3342
    %v3779 = vunpack.c.h.b16 %v3342
    %v3780 = vunpack.c.l.b16 %v3343
    %v3781 = vunpack.c.h.b16 %v3343
    %v3782 = vunpack.c.l.b16 %v3344
    %v3783 = vunpack.c.h.b16 %v3344
    %v3784 = vunpack.c.l.b16 %v3345
    %v3785 = vunpack.c.h.b16 %v3345
    %v3786 = vunpack.c.l.b16 %v3346
    %v3787 = vunpack.c.h.b16 %v3346
    %v3788 = vunpack.c.l.b16 %v3347
    %v3789 = vunpack.c.h.b16 %v3347
    %v3790 = vunpack.c.l.b16 %v3348
    %v3791 = vunpack.c.h.b16 %v3348
    %v3792 = vunpack.c.l.b16 %v3349
    %v3793 = vunpack.c.h.b16 %v3349
    %v3794 = vunpack.c.l.b16 %v3350
    %v3795 = vunpack.c.h.b16 %v3350
    %v3796 = vunpack.c.l.b16 %v3351
    %v3797 = vunpack.c.h.b16 %v3351
    %v3798 = vunpack.c.l.b16 %v3352
    %v3799 = vunpack.c.h.b16 %v3352
    %v3800 = vunpack.c.l.b16 %v3353
    %v3801 = vunpack.c.h.b16 %v3353
    %v3802 = vunpack.c.l.b16 %v3354
    %v3803 = vunpack.c.h.b16 %v3354
    %v3804 = vunpack.c.l.b16 %v3355
    %v3805 = vunpack.c.h.b16 %v3355
    %v3806 = vunpack.c.l.b16 %v3356
    %v3807 = vunpack.c.h.b16 %v3356
    %v3808 = vunpack.c.l.b16 %v3357
    %v3809 = vunpack.c.h.b16 %v3357
    %v3810 = vunpack.c.l.b16 %v3358
    %v3811 = vunpack.c.h.b16 %v3358
    %v3812 = vunpack.c.l.b16 %v3359
    %v3813 = vunpack.c.h.b16 %v3359
    %v3814 = vunpack.c.l.b16 %v3360
    %v3815 = vunpack.c.h.b16 %v3360
    %v3816 = vunpack.c.l.b16 %v3361
    %v3817 = vunpack.c.h.b16 %v3361
    %v3818 = vunpack.c.l.b16 %v3362
    %v3819 = vunpack.c.h.b16 %v3362
    %v3820 = vunpack.c.l.b16 %v3363
    %v3821 = vunpack.c.h.b16 %v3363
    %v3822 = vunpack.c.l.b16 %v3364
    %v3823 = vunpack.c.h.b16 %v3364
    %v3824 = vunpack.c.l.b16 %v3365
    %v3825 = vunpack.c.h.b16 %v3365
    %v3826 = vunpack.c.l.b16 %v3366
    %v3827 = vunpack.c.h.b16 %v3366
    %v3828 = vunpack.c.l.b16 %v3367
    %v3829 = vunpack.c.h.b16 %v3367
    %v3830 = vunpack.c.l.b16 %v3368
    %v3831 = vunpack.c.h.b16 %v3368
    %v3832 = vunpack.c.l.b16 %v3369
    %v3833 = vunpack.c.h.b16 %v3369
    %v3834 = vunpack.c.l.b16 %v3370
    %v3835 = vunpack.c.h.b16 %v3370
    %v3836 = vunpack.c.l.b16 %v3371
    %v3837 = vunpack.c.h.b16 %v3371
    %v3838 = vunpack.c.l.b16 %v3372
    %v3839 = vunpack.c.h.b16 %v3372
    %v3840 = vunpack.c.l.b16 %v3373
    %v3841 = vunpack.c.h.b16 %v3373
    %v3842 = vunpack.c.l.b16 %v3374
    %v3843 = vunpack.c.h.b16 %v3374
    %v3844 = vunpack.c.l.b16 %v3375
    %v3845 = vunpack.c.h.b16 %v3375
    %v3846 = vunpack.c.l.b16 %v3376
    %v3847 = vunpack.c.h.b16 %v3376
    %v3848 = vunpack.c.l.b16 %v3377
    %v3849 = vunpack.c.h.b16 %v3377
    %v3850 = vunpack.c.l.b16 %v3378
    %v3851 = vunpack.c.h.b16 %v3378
    %v3852 = vunpack.c.l.b16 %v3379
    %v3853 = vunpack.c.h.b16 %v3379
    %v3854 = vunpack.c.l.b16 %v3380
    %v3855 = vunpack.c.h.b16 %v3380
    %v3856 = vunpack.c.l.b16 %v3381
    %v3857 = vunpack.c.h.b16 %v3381
    %v3858 = vunpack.c.l.b16 %v3382
    %v3859 = vunpack.c.h.b16 %v3382
    %v3860 = vunpack.c.l.b16 %v3383
    %v3861 = vunpack.c.h.b16 %v3383
    %v3862 = vunpack.c.l.b16 %v3384
    %v3863 = vunpack.c.h.b16 %v3384
    %v3864 = vunpack.c.l.b16 %v3385
    %v3865 = vunpack.c.h.b16 %v3385
    %v3866 = vunpack.c.l.b16 %v3386
    %v3867 = vunpack.c.h.b16 %v3386
    %v3868 = vunpack.c.l.b16 %v3387
    %v3869 = vunpack.c.h.b16 %v3387
    %v3870 = vunpack.c.l.b16 %v3388
    %v3871 = vunpack.c.h.b16 %v3388
    %v3872 = vunpack.c.l.b16 %v3389
    %v3873 = vunpack.c.h.b16 %v3389
    %v3874 = vunpack.c.l.b16 %v3390
    %v3875 = vunpack.c.h.b16 %v3390
    %v3876 = vunpack.c.l.b16 %v3391
    %v3877 = vunpack.c.h.b16 %v3391
    %v3878 = vunpack.c.l.b16 %v3392
    %v3879 = vunpack.c.h.b16 %v3392
    %v3880 = vunpack.c.l.b16 %v3393
    %v3881 = vunpack.c.h.b16 %v3393
    %v3882 = vunpack.c.l.b16 %v3394
    %v3883 = vunpack.c.h.b16 %v3394
    %v3884 = vunpack.c.l.b16 %v3395
    %v3885 = vunpack.c.h.b16 %v3395
    %v3886 = vunpack.c.l.b16 %v3396
    %v3887 = vunpack.c.h.b16 %v3396
    %v3888 = vunpack.c.l.b16 %v3397
    %v3889 = vunpack.c.h.b16 %v3397
    %v3890 = vunpack.c.l.b16 %v3398
    %v3891 = vunpack.c.h.b16 %v3398
    %v3892 = vunpack.c.l.b16 %v3399
    %v3893 = vunpack.c.h.b16 %v3399
    %v3894 = vunpack.c.l.b16 %v3400
    %v3895 = vunpack.c.h.b16 %v3400
    %v3896 = vunpack.c.l.b16 %v3401
    %v3897 = vunpack.c.h.b16 %v3401
    %v3898 = vunpack.c.l.b16 %v3402
    %v3899 = vunpack.c.h.b16 %v3402
    %v3900 = vunpack.c.l.b16 %v3403
    %v3901 = vunpack.c.h.b16 %v3403
    %v3902 = vunpack.c.l.b16 %v3404
    %v3903 = vunpack.c.h.b16 %v3404
    %v3904 = vunpack.c.l.b16 %v3405
    %v3905 = vunpack.c.h.b16 %v3405
    %v3906 = vunpack.c.l.b16 %v3406
    %v3907 = vunpack.c.h.b16 %v3406
    %v3908 = vunpack.c.l.b16 %v3407
    %v3909 = vunpack.c.h.b16 %v3407
    %v3910 = vunpack.c.l.b16 %v3408
    %v3911 = vunpack.c.h.b16 %v3408
    %v3912 = vunpack.c.l.b16 %v3409
    %v3913 = vunpack.c.h.b16 %v3409
    %v3914 = vunpack.c.l.b16 %v3410
    %v3915 = vunpack.c.h.b16 %v3410
    %v3916 = vunpack.c.l.b16 %v3411
    %v3917 = vunpack.c.h.b16 %v3411
    %v3918 = vunpack.c.l.b16 %v3412
    %v3919 = vunpack.c.h.b16 %v3412
    %v3920 = vunpack.c.l.b16 %v3413
    %v3921 = vunpack.c.h.b16 %v3413
    %v3922 = vunpack.c.l.b16 %v3414
    %v3923 = vunpack.c.h.b16 %v3414
    %v3924 = vunpack.c.l.b16 %v3415
    %v3925 = vunpack.c.h.b16 %v3415
    %v3926 = vunpack.c.l.b16 %v3416
    %v3927 = vunpack.c.h.b16 %v3416
    %v3928 = vunpack.c.l.b16 %v3417
    %v3929 = vunpack.c.h.b16 %v3417
    %v3930 = vunpack.c.l.b16 %v3418
    %v3931 = vunpack.c.h.b16 %v3418
    %v3932 = vunpack.c.l.b16 %v3419
    %v3933 = vunpack.c.h.b16 %v3419
    %v3934 = vunpack.c.l.b16 %v3420
    %v3935 = vunpack.c.h.b16 %v3420
    %v3936 = vunpack.c.l.b16 %v3421
    %v3937 = vunpack.c.h.b16 %v3421
    %v3938 = vunpack.c.l.b16 %v3422
    %v3939 = vunpack.c.h.b16 %v3422
    %v3940 = vunpack.c.l.b16 %v3423
    %v3941 = vunpack.c.h.b16 %v3423
    %v3942 = vunpack.c.l.b16 %v3424
    %v3943 = vunpack.c.h.b16 %v3424
    %v3944 = vunpack.c.l.b16 %v3425
    %v3945 = vunpack.c.h.b16 %v3425
    %v3946 = vunpack.c.l.b16 %v3426
    %v3947 = vunpack.c.h.b16 %v3426
    %v3948 = vunpack.c.l.b16 %v3427
    %v3949 = vunpack.c.h.b16 %v3427
    %v3950 = vunpack.c.l.b16 %v3428
    %v3951 = vunpack.c.h.b16 %v3428
    %v3952 = vunpack.c.l.b16 %v3429
    %v3953 = vunpack.c.h.b16 %v3429
    %v3954 = vunpack.c.l.b16 %v3430
    %v3955 = vunpack.c.h.b16 %v3430
    %v3956 = vunpack.c.l.b16 %v3431
    %v3957 = vunpack.c.h.b16 %v3431
    %v3958 = vunpack.c.l.b16 %v3432
    %v3959 = vunpack.c.h.b16 %v3432
    %v3960 = vunpack.c.l.b16 %v3433
    %v3961 = vunpack.c.h.b16 %v3433
    %v3962 = vunpack.c.l.b16 %v3434
    %v3963 = vunpack.c.h.b16 %v3434
    %v3964 = vunpack.c.l.b16 %v3435
    %v3965 = vunpack.c.h.b16 %v3435
    %v3966 = vunpack.c.l.b16 %v3436
    %v3967 = vunpack.c.h.b16 %v3436
    %v3968 = vunpack.c.l.b16 %v3437
    %v3969 = vunpack.c.h.b16 %v3437
    %v3970 = vunpack.c.l.b16 %v3438
    %v3971 = vunpack.c.h.b16 %v3438
    %v3972 = vunpack.c.l.b16 %v3439
    %v3973 = vunpack.c.h.b16 %v3439
    %v3974 = vunpack.c.l.b16 %v3440
    %v3975 = vunpack.c.h.b16 %v3440
    %v3976 = vunpack.c.l.b16 %v3441
    %v3977 = vunpack.c.h.b16 %v3441
    %v3978 = vunpack.c.l.b16 %v3442
    %v3979 = vunpack.c.h.b16 %v3442
    %v3980 = vunpack.c.l.b16 %v3443
    %v3981 = vunpack.c.h.b16 %v3443
    %v3982 = vunpack.c.l.b16 %v3444
    %v3983 = vunpack.c.h.b16 %v3444
    %v3984 = vunpack.c.l.b16 %v3445
    %v3985 = vunpack.c.h.b16 %v3445
    %v3986 = vunpack.c.l.b16 %v3446
    %v3987 = vunpack.c.h.b16 %v3446
    %v3988 = vunpack.c.l.b16 %v3447
    %v3989 = vunpack.c.h.b16 %v3447
    %v3990 = vunpack.c.l.b16 %v3448
    %v3991 = vunpack.c.h.b16 %v3448
    %v3992 = vunpack.c.l.b16 %v3449
    %v3993 = vunpack.c.h.b16 %v3449
    %v3994 = vunpack.c.l.b16 %v3450
    %v3995 = vunpack.c.h.b16 %v3450
    %v3996 = vunpack.c.l.b16 %v3451
    %v3997 = vunpack.c.h.b16 %v3451
    %v3998 = vunpack.c.l.b16 %v3452
    %v3999 = vunpack.c.h.b16 %v3452
    %v4000 = vunpack.c.l.b16 %v3453
    %v4001 = vunpack.c.h.b16 %v3453
    %v4002 = vunpack.c.l.b16 %v3454
    %v4003 = vunpack.c.h.b16 %v3454
    %v4004 = vunpack.c.l.b16 %v3455
    %v4005 = vunpack.c.h.b16 %v3455
    %v4006 = vunpack.c.l.b16 %v3456
    %v4007 = vunpack.c.h.b16 %v3456
    %v4008 = vunpack.c.l.b16 %v3457
    %v4009 = vunpack.c.h.b16 %v3457
    %v4010 = vunpack.c.l.b16 %v3458
    %v4011 = vunpack.c.h.b16 %v3458
    %v4012 = vunpack.c.l.b16 %v3459
    %v4013 = vunpack.c.h.b16 %v3459
    %v4014 = vunpack.c.l.b16 %v3460
    %v4015 = vunpack.c.h.b16 %v3460
    %v4016 = vunpack.c.l.b16 %v3461
    %v4017 = vunpack.c.h.b16 %v3461
    %v4018 = vunpack.c.l.b16 %v3462
    %v4019 = vunpack.c.h.b16 %v3462
    %v4020 = vunpack.c.l.b16 %v3463
    %v4021 = vunpack.c.h.b16 %v3463
    %v4022 = vunpack.c.l.b16 %v3464
    %v4023 = vunpack.c.h.b16 %v3464
    %v4024 = vunpack.c.l.b16 %v3465
    %v4025 = vunpack.c.h.b16 %v3465
    %v4026 = vunpack.c.l.b16 %v3466
    %v4027 = vunpack.c.h.b16 %v3466
    %v4028 = vunpack.c.l.b16 %v3467
    %v4029 = vunpack.c.h.b16 %v3467
    %v4030 = vunpack.c.l.b16 %v3468
    %v4031 = vunpack.c.h.b16 %v3468
    %v4032 = vunpack.c.l.b16 %v3469
    %v4033 = vunpack.c.h.b16 %v3469
    %v4034 = vunpack.c.l.b16 %v3470
    %v4035 = vunpack.c.h.b16 %v3470
    %v4036 = vunpack.c.l.b16 %v3471
    %v4037 = vunpack.c.h.b16 %v3471
    %v4038 = vunpack.c.l.b16 %v3472
    %v4039 = vunpack.c.h.b16 %v3472
    %v4040 = vunpack.c.l.b16 %v3473
    %v4041 = vunpack.c.h.b16 %v3473
    %v4042 = vunpack.c.l.b16 %v3474
    %v4043 = vunpack.c.h.b16 %v3474
    %v4044 = vunpack.c.l.b16 %v3475
    %v4045 = vunpack.c.h.b16 %v3475
    %v4046 = vunpack.c.l.b16 %v3476
    %v4047 = vunpack.c.h.b16 %v3476
    %v4048 = vunpack.c.l.b16 %v3477
    %v4049 = vunpack.c.h.b16 %v3477
    %v4050 = vunpack.c.l.b16 %v3478
    %v4051 = vunpack.c.h.b16 %v3478
    %v4052 = vunpack.c.l.b16 %v3479
    %v4053 = vunpack.c.h.b16 %v3479
    %v4054 = vunpack.c.l.b16 %v3480
    %v4055 = vunpack.c.h.b16 %v3480
    %v4056 = vunpack.c.l.b16 %v3481
    %v4057 = vunpack.c.h.b16 %v3481
    %v4058 = vunpack.c.l.b16 %v3482
    %v4059 = vunpack.c.h.b16 %v3482
    %v4060 = vunpack.c.l.b16 %v3483
    %v4061 = vunpack.c.h.b16 %v3483
    %v4062 = vunpack.c.l.b16 %v3484
    %v4063 = vunpack.c.h.b16 %v3484
    %v4064 = vunpack.c.l.b16 %v3485
    %v4065 = vunpack.c.h.b16 %v3485
    %v4066 = vunpack.c.l.b16 %v3486
    %v4067 = vunpack.c.h.b16 %v3486
    %v4068 = vunpack.c.l.b16 %v3487
    %v4069 = vunpack.c.h.b16 %v3487
    %v4070 = vunpack.c.l.b16 %v3488
    %v4071 = vunpack.c.h.b16 %v3488
    %v4072 = vunpack.c.l.b16 %v3489
    %v4073 = vunpack.c.h.b16 %v3489
    %v4074 = vunpack.c.l.b16 %v3490
    %v4075 = vunpack.c.h.b16 %v3490
    %v4076 = vunpack.c.l.b16 %v3491
    %v4077 = vunpack.c.h.b16 %v3491
    %v4078 = vunpack.c.l.b16 %v3492
    %v4079 = vunpack.c.h.b16 %v3492
    %v4080 = vunpack.c.l.b16 %v3493
    %v4081 = vunpack.c.h.b16 %v3493
    %v4082 = vunpack.c.l.b16 %v3494
    %v4083 = vunpack.c.h.b16 %v3494
    %v4084 = vunpack.c.l.b16 %v3495
    %v4085 = vunpack.c.h.b16 %v3495
    %v4086 = vunpack.c.l.b16 %v3496
    %v4087 = vunpack.c.h.b16 %v3496
    %v4088 = vunpack.c.l.b16 %v3497
    %v4089 = vunpack.c.h.b16 %v3497
    %v4090 = vunpack.c.l.b16 %v3498
    %v4091 = vunpack.c.h.b16 %v3498
    %v4092 = vunpack.c.l.b16 %v3499
    %v4093 = vunpack.c.h.b16 %v3499
    %v4094 = vunpack.c.l.b16 %v3500
    %v4095 = vunpack.c.h.b16 %v3500
    %v4096 = vunpack.c.l.b16 %v3501
    %v4097 = vunpack.c.h.b16 %v3501
    %v4098 = vunpack.c.l.b16 %v3502
    %v4099 = vunpack.c.h.b16 %v3502
    %v4100 = vunpack.c.l.b16 %v3503
    %v4101 = vunpack.c.h.b16 %v3503
    %v4102 = vpack.c.b16 %v3722, %v3718
    %v4103 = vpack.c.b16 %v3723, %v3719
    %v4104 = vpack.c.b16 %v3724, %v3720
    %v4105 = vpack.c.b16 %v3725, %v3721
    %v4106 = vpack.c.b16 %v3730, %v3726
    %v4107 = vpack.c.b16 %v3731, %v3727
    %v4108 = vpack.c.b16 %v3732, %v3728
    %v4109 = vpack.c.b16 %v3733, %v3729
    %v4110 = vpack.c.b16 %v3738, %v3734
    %v4111 = vpack.c.b16 %v3739, %v3735
    %v4112 = vpack.c.b16 %v3740, %v3736
    %v4113 = vpack.c.b16 %v3741, %v3737
    %v4114 = vpack.c.b16 %v3746, %v3742
    %v4115 = vpack.c.b16 %v3747, %v3743
    %v4116 = vpack.c.b16 %v3748, %v3744
    %v4117 = vpack.c.b16 %v3749, %v3745
    %v4118 = vpack.c.b16 %v3754, %v3750
    %v4119 = vpack.c.b16 %v3755, %v3751
    %v4120 = vpack.c.b16 %v3756, %v3752
    %v4121 = vpack.c.b16 %v3757, %v3753
    %v4122 = vpack.c.b16 %v3762, %v3758
    %v4123 = vpack.c.b16 %v3763, %v3759
    %v4124 = vpack.c.b16 %v3764, %v3760
    %v4125 = vpack.c.b16 %v3765, %v3761
    %v4126 = vpack.c.b16 %v3770, %v3766
    %v4127 = vpack.c.b16 %v3771, %v3767
    %v4128 = vpack.c.b16 %v3772, %v3768
    %v4129 = vpack.c.b16 %v3773, %v3769
    %v4130 = vpack.c.b16 %v3778, %v3774
    %v4131 = vpack.c.b16 %v3779, %v3775
    %v4132 = vpack.c.b16 %v3780, %v3776
    %v4133 = vpack.c.b16 %v3781, %v3777
    %v4134 = vpack.c.b16 %v3786, %v3782
    %v4135 = vpack.c.b16 %v3787, %v3783
    %v4136 = vpack.c.b16 %v3788, %v3784
    %v4137 = vpack.c.b16 %v3789, %v3785
    %v4138 = vpack.c.b16 %v3794, %v3790
    %v4139 = vpack.c.b16 %v3795, %v3791
    %v4140 = vpack.c.b16 %v3796, %v3792
    %v4141 = vpack.c.b16 %v3797, %v3793
    %v4142 = vpack.c.b16 %v3802, %v3798
    %v4143 = vpack.c.b16 %v3803, %v3799
    %v4144 = vpack.c.b16 %v3804, %v3800
    %v4145 = vpack.c.b16 %v3805, %v3801
    %v4146 = vpack.c.b16 %v3810, %v3806
    %v4147 = vpack.c.b16 %v3811, %v3807
    %v4148 = vpack.c.b16 %v3812, %v3808
    %v4149 = vpack.c.b16 %v3813, %v3809
    %v4150 = vpack.c.b16 %v3818, %v3814
    %v4151 = vpack.c.b16 %v3819, %v3815
    %v4152 = vpack.c.b16 %v3820, %v3816
    %v4153 = vpack.c.b16 %v3821, %v3817
    %v4154 = vpack.c.b16 %v3826, %v3822
    %v4155 = vpack.c.b16 %v3827, %v3823
    %v4156 = vpack.c.b16 %v3828, %v3824
    %v4157 = vpack.c.b16 %v3829, %v3825
    %v4158 = vpack.c.b16 %v3834, %v3830
    %v4159 = vpack.c.b16 %v3835, %v3831
    %v4160 = vpack.c.b16 %v3836, %v3832
    %v4161 = vpack.c.b16 %v3837, %v3833
    %v4162 = vpack.c.b16 %v3842, %v3838
    %v4163 = vpack.c.b16 %v3843, %v3839
    %v4164 = vpack.c.b16 %v3844, %v3840
    %v4165 = vpack.c.b16 %v3845, %v3841
    %v4166 = vpack.c.b16 %v3850, %v3846
    %v4167 = vpack.c.b16 %v3851, %v3847
    %v4168 = vpack.c.b16 %v3852, %v3848
    %v4169 = vpack.c.b16 %v3853, %v3849
    %v4170 = vpack.c.b16 %v3858, %v3854
    %v4171 = vpack.c.b16 %v3859, %v3855
    %v4172 = vpack.c.b16 %v3860, %v3856
    %v4173 = vpack.c.b16 %v3861, %v3857
    %v4174 = vpack.c.b16 %v3866, %v3862
    %v4175 = vpack.c.b16 %v3867, %v3863
    %v4176 = vpack.c.b16 %v3868, %v3864
    %v4177 = vpack.c.b16 %v3869, %v3865
    %v4178 = vpack.c.b16 %v3874, %v3870
    %v4179 = vpack.c.b16 %v3875, %v3871
    %v4180 = vpack.c.b16 %v3876, %v3872
    %v4181 = vpack.c.b16 %v3877, %v3873
    %v4182 = vpack.c.b16 %v3882, %v3878
    %v4183 = vpack.c.b16 %v3883, %v3879
    %v4184 = vpack.c.b16 %v3884, %v3880
    %v4185 = vpack.c.b16 %v3885, %v3881
    %v4186 = vpack.c.b16 %v3890, %v3886
    %v4187 = vpack.c.b16 %v3891, %v3887
    %v4188 = vpack.c.b16 %v3892, %v3888
    %v4189 = vpack.c.b16 %v3893, %v3889
    %v4190 = vpack.c.b16 %v3898, %v3894
    %v4191 = vpack.c.b16 %v3899, %v3895
    %v4192 = vpack.c.b16 %v3900, %v3896
    %v4193 = vpack.c.b16 %v3901, %v3897
    %v4194 = vpack.c.b16 %v3906, %v3902
    %v4195 = vpack.c.b16 %v3907, %v3903
    %v4196 = vpack.c.b16 %v3908, %v3904
    %v4197 = vpack.c.b16 %v3909, %v3905
    %v4198 = vpack.c.b16 %v3914, %v3910
    %v4199 = vpack.c.b16 %v3915, %v3911
    %v4200 = vpack.c.b16 %v3916, %v3912
    %v4201 = vpack.c.b16 %v3917, %v3913
    %v4202 = vpack.c.b16 %v3922, %v3918
    %v4203 = vpack.c.b16 %v3923, %v3919
    %v4204 = vpack.c.b16 %v3924, %v3920
    %v4205 = vpack.c.b16 %v3925, %v3921
    %v4206 = vpack.c.b16 %v3930, %v3926
    %v4207 = vpack.c.b16 %v3931, %v3927
    %v4208 = vpack.c.b16 %v3932, %v3928
    %v4209 = vpack.c.b16 %v3933, %v3929
    %v4210 = vpack.c.b16 %v3938, %v3934
    %v4211 = vpack.c.b16 %v3939, %v3935
    %v4212 = vpack.c.b16 %v3940, %v3936
    %v4213 = vpack.c.b16 %v3941, %v3937
    %v4214 = vpack.c.b16 %v3946, %v3942
    %v4215 = vpack.c.b16 %v3947, %v3943
    %v4216 = vpack.c.b16 %v3948, %v3944
    %v4217 = vpack.c.b16 %v3949, %v3945
    %v4218 = vpack.c.b16 %v3954, %v3950
    %v4219 = vpack.c.b16 %v3955, %v3951
    %v4220 = vpack.c.b16 %v3956, %v3952
    %v4221 = vpack.c.b16 %v3957, %v3953
    %v4222 = vpack.c.b16 %v3962, %v3958
    %v4223 = vpack.c.b16 %v3963, %v3959
    %v4224 = vpack.c.b16 %v3964, %v3960
    %v4225 = vpack.c.b16 %v3965, %v3961
    %v4226 = vpack.c.b16 %v3970, %v3966
    %v4227 = vpack.c.b16 %v3971, %v3967
    %v4228 = vpack.c.b16 %v3972, %v3968
    %v4229 = vpack.c.b16 %v3973, %v3969
    %v4230 = vpack.c.b16 %v3978, %v3974
    %v4231 = vpack.c.b16 %v3979, %v3975
    %v4232 = vpack.c.b16 %v3980, %v3976
    %v4233 = vpack.c.b16 %v3981, %v3977
    %v4234 = vpack.c.b16 %v3986, %v3982
    %v4235 = vpack.c.b16 %v3987, %v3983
    %v4236 = vpack.c.b16 %v3988, %v3984
    %v4237 = vpack.c.b16 %v3989, %v3985
    %v4238 = vpack.c.b16 %v3994, %v3990
    %v4239 = vpack.c.b16 %v3995, %v3991
    %v4240 = vpack.c.b16 %v3996, %v3992
    %v4241 = vpack.c.b16 %v3997, %v3993
    %v4242 = vpack.c.b16 %v4002, %v3998
    %v4243 = vpack.c.b16 %v4003, %v3999
    %v4244 = vpack.c.b16 %v4004, %v4000
    %v4245 = vpack.c.b16 %v4005, %v4001
    %v4246 = vpack.c.b16 %v4010, %v4006
    %v4247 = vpack.c.b16 %v4011, %v4007
    %v4248 = vpack.c.b16 %v4012, %v4008
    %v4249 = vpack.c.b16 %v4013, %v4009
    %v4250 = vpack.c.b16 %v4018, %v4014
    %v4251 = vpack.c.b16 %v4019, %v4015
    %v4252 = vpack.c.b16 %v4020, %v4016
    %v4253 = vpack.c.b16 %v4021, %v4017
    %v4254 = vpack.c.b16 %v4026, %v4022
    %v4255 = vpack.c.b16 %v4027, %v4023
    %v4256 = vpack.c.b16 %v4028, %v4024
    %v4257 = vpack.c.b16 %v4029, %v4025
    %v4258 = vpack.c.b16 %v4034, %v4030
    %v4259 = vpack.c.b16 %v4035, %v4031
    %v4260 = vpack.c.b16 %v4036, %v4032
    %v4261 = vpack.c.b16 %v4037, %v4033
    %v4262 = vpack.c.b16 %v4042, %v4038
    %v4263 = vpack.c.b16 %v4043, %v4039
    %v4264 = vpack.c.b16 %v4044, %v4040
    %v4265 = vpack.c.b16 %v4045, %v4041
    %v4266 = vpack.c.b16 %v4050, %v4046
    %v4267 = vpack.c.b16 %v4051, %v4047
    %v4268 = vpack.c.b16 %v4052, %v4048
    %v4269 = vpack.c.b16 %v4053, %v4049
    %v4270 = vpack.c.b16 %v4058, %v4054
    %v4271 = vpack.c.b16 %v4059, %v4055
    %v4272 = vpack.c.b16 %v4060, %v4056
    %v4273 = vpack.c.b16 %v4061, %v4057
    %v4274 = vpack.c.b16 %v4066, %v4062
    %v4275 = vpack.c.b16 %v4067, %v4063
    %v4276 = vpack.c.b16 %v4068, %v4064
    %v4277 = vpack.c.b16 %v4069, %v4065
    %v4278 = vpack.c.b16 %v4074, %v4070
    %v4279 = vpack.c.b16 %v4075, %v4071
    %v4280 = vpack.c.b16 %v4076, %v4072
    %v4281 = vpack.c.b16 %v4077, %v4073
    %v4282 = vpack.c.b16 %v4082, %v4078
    %v4283 = vpack.c.b16 %v4083, %v4079
    %v4284 = vpack.c.b16 %v4084, %v4080
    %v4285 = vpack.c.b16 %v4085, %v4081
    %v4286 = vpack.c.b16 %v4090, %v4086
    %v4287 = vpack.c.b16 %v4091, %v4087
    %v4288 = vpack.c.b16 %v4092, %v4088
    %v4289 = vpack.c.b16 %v4093, %v4089
    %v4290 = vpack.c.b16 %v4098, %v4094
    %v4291 = vpack.c.b16 %v4099, %v4095
    %v4292 = vpack.c.b16 %v4100, %v4096
    %v4293 = vpack.c.b16 %v4101, %v4097
    %4486 = vmatprep.subr.bf16.mxu0 %v4103
    %4487 = vmatpush1.bf16.msra.mxu0 %v4102
    %4488 = vmatprep.subr.bf16.mxu0 %v4107
    %4489 = vmatpush1.bf16.msra.mxu0 %v4106
    %4490 = vmatprep.subr.bf16.mxu0 %v4111
    %4491 = vmatpush1.bf16.msra.mxu0 %v4110
    %4492 = vmatprep.subr.bf16.mxu0 %v4115
    %4493 = vmatpush1.bf16.msra.mxu0 %v4114
    %4494 = vmatprep.subr.bf16.mxu0 %v4119
    %4495 = vmatpush1.bf16.msra.mxu0 %v4118
    %4496 = vmatprep.subr.bf16.mxu0 %v4123
    %4497 = vmatpush1.bf16.msra.mxu0 %v4122
    %4498 = vmatprep.subr.bf16.mxu0 %v4127
    %4499 = vmatpush1.bf16.msra.mxu0 %v4126
    %4500 = vmatprep.subr.bf16.mxu0 %v4131
    %4501 = vmatpush1.bf16.msra.mxu0 %v4130
    %4502 = vmatprep.subr.bf16.mxu0 %v4135
    %4503 = vmatpush1.bf16.msra.mxu0 %v4134
    %4504 = vmatprep.subr.bf16.mxu0 %v4139
    %4505 = vmatpush1.bf16.msra.mxu0 %v4138
    %4506 = vmatprep.subr.bf16.mxu0 %v4143
    %4507 = vmatpush1.bf16.msra.mxu0 %v4142
    %4508 = vmatprep.subr.bf16.mxu0 %v4147
    %4509 = vmatpush1.bf16.msra.mxu0 %v4146
    %4510 = vmatprep.subr.bf16.mxu0 %v4151
    %4511 = vmatpush1.bf16.msra.mxu0 %v4150
    %4512 = vmatprep.subr.bf16.mxu0 %v4155
    %4513 = vmatpush1.bf16.msra.mxu0 %v4154
    %4514 = vmatprep.subr.bf16.mxu0 %v4159
    %4515 = vmatpush1.bf16.msra.mxu0 %v4158
    %4516 = vmatprep.subr.bf16.mxu0 %v4163
    %4517 = vmatpush1.bf16.msra.mxu0 %v4162
    %4518 = vmatprep.mubr.bf16.mxu0 %v3307
    %4519 = vmatmul.mubr.bf16.gmra.mrb[0].mxu0 %v3306
    %v4520 = vpop.f32.mrb[0].mxu0
    %v4521 = vadd.f32 %v3509, %v4520
    %v4522 = vpop.f32.mrb[0].mxu0
    %v4523 = vadd.f32 %v3513, %v4522
    %v4524 = vpop.f32.mrb[0].mxu0
    %v4525 = vpop.f32.mrb[0].mxu0
    %4526 = vdwg.mxu0
    %4527 = vmatprep.subr.bf16.mxu0 %v4167
    %4528 = vmatpush1.bf16.msra.mxu0 %v4166
    %4529 = vmatprep.subr.bf16.mxu0 %v4171
    %4530 = vmatpush1.bf16.msra.mxu0 %v4170
    %4531 = vmatprep.subr.bf16.mxu0 %v4175
    %4532 = vmatpush1.bf16.msra.mxu0 %v4174
    %4533 = vmatprep.subr.bf16.mxu0 %v4179
    %4534 = vmatpush1.bf16.msra.mxu0 %v4178
    %4535 = vmatprep.subr.bf16.mxu0 %v4183
    %4536 = vmatpush1.bf16.msra.mxu0 %v4182
    %4537 = vmatprep.subr.bf16.mxu0 %v4187
    %4538 = vmatpush1.bf16.msra.mxu0 %v4186
    %4539 = vmatprep.subr.bf16.mxu0 %v4191
    %4540 = vmatpush1.bf16.msra.mxu0 %v4190
    %4541 = vmatprep.subr.bf16.mxu0 %v4195
    %4542 = vmatpush1.bf16.msra.mxu0 %v4194
    %4543 = vmatprep.subr.bf16.mxu0 %v4199
    %4544 = vmatpush1.bf16.msra.mxu0 %v4198
    %4545 = vmatprep.subr.bf16.mxu0 %v4203
    %4546 = vmatpush1.bf16.msra.mxu0 %v4202
    %4547 = vmatprep.subr.bf16.mxu0 %v4207
    %4548 = vmatpush1.bf16.msra.mxu0 %v4206
    %4549 = vmatprep.subr.bf16.mxu0 %v4211
    %4550 = vmatpush1.bf16.msra.mxu0 %v4210
    %4551 = vmatprep.subr.bf16.mxu0 %v4215
    %4552 = vmatpush1.bf16.msra.mxu0 %v4214
    %4553 = vmatprep.subr.bf16.mxu0 %v4219
    %4554 = vmatpush1.bf16.msra.mxu0 %v4218
    %4555 = vmatprep.subr.bf16.mxu0 %v4223
    %4556 = vmatpush1.bf16.msra.mxu0 %v4222
    %4557 = vmatprep.subr.bf16.mxu0 %v4227
    %4558 = vmatpush1.bf16.msra.mxu0 %v4226
    %4559 = vmatprep.mubr.bf16.mxu0 %v3309
    %4560 = vmatmul.mubr.bf16.gmra.mrb[0].mxu0 %v3308
    %v4561 = vpop.f32.mrb[0].mxu0
    %v4562 = vadd.f32 %v4521, %v4561
    %v4563 = vpop.f32.mrb[0].mxu0
    %v4564 = vadd.f32 %v4523, %v4563
    %v4565 = vpop.f32.mrb[0].mxu0
    %v4566 = vpop.f32.mrb[0].mxu0
    %4567 = vdwg.mxu0
    %4568 = vmatprep.subr.bf16.mxu0 %v4231
    %4569 = vmatpush1.bf16.msra.mxu0 %v4230
    %4570 = vmatprep.subr.bf16.mxu0 %v4235
    %4571 = vmatpush1.bf16.msra.mxu0 %v4234
    %4572 = vmatprep.subr.bf16.mxu0 %v4239
    %4573 = vmatpush1.bf16.msra.mxu0 %v4238
    %4574 = vmatprep.subr.bf16.mxu0 %v4243
    %4575 = vmatpush1.bf16.msra.mxu0 %v4242
    %4576 = vmatprep.subr.bf16.mxu0 %v4247
    %4577 = vmatpush1.bf16.msra.mxu0 %v4246
    %4578 = vmatprep.subr.bf16.mxu0 %v4251
    %4579 = vmatpush1.bf16.msra.mxu0 %v4250
    %4580 = vmatprep.subr.bf16.mxu0 %v4255
    %4581 = vmatpush1.bf16.msra.mxu0 %v4254
    %4582 = vmatprep.subr.bf16.mxu0 %v4259
    %4583 = vmatpush1.bf16.msra.mxu0 %v4258
    %4584 = vmatprep.subr.bf16.mxu0 %v4263
    %4585 = vmatpush1.bf16.msra.mxu0 %v4262
    %4586 = vmatprep.subr.bf16.mxu0 %v4267
    %4587 = vmatpush1.bf16.msra.mxu0 %v4266
    %4588 = vmatprep.subr.bf16.mxu0 %v4271
    %4589 = vmatpush1.bf16.msra.mxu0 %v4270
    %4590 = vmatprep.subr.bf16.mxu0 %v4275
    %4591 = vmatpush1.bf16.msra.mxu0 %v4274
    %4592 = vmatprep.subr.bf16.mxu0 %v4279
    %4593 = vmatpush1.bf16.msra.mxu0 %v4278
    %4594 = vmatprep.subr.bf16.mxu0 %v4283
    %4595 = vmatpush1.bf16.msra.mxu0 %v4282
    %4596 = vmatprep.subr.bf16.mxu0 %v4287
    %4597 = vmatpush1.bf16.msra.mxu0 %v4286
    %4598 = vmatprep.subr.bf16.mxu0 %v4291
    %4599 = vmatpush1.bf16.msra.mxu0 %v4290
    %4600 = vmatprep.mubr.bf16.mxu0 %v3311
    %4601 = vmatmul.mubr.bf16.gmra.mrb[0].mxu0 %v3310
    %v4602 = vpop.f32.mrb[0].mxu0
    %v4603 = vadd.f32 %v4562, %v4602
    %v4604 = vpop.f32.mrb[0].mxu0
    %v4605 = vadd.f32 %v4564, %v4604
    %v4606 = vpop.f32.mrb[0].mxu0
    %v4607 = vpop.f32.mrb[0].mxu0
    %4608 = vdwg.mxu0
    %4609 = vmatprep.subr.bf16.mxu0 %v4105
    %4610 = vmatpush1.bf16.msra.mxu0 %v4104
    %4611 = vmatprep.subr.bf16.mxu0 %v4109
    %4612 = vmatpush1.bf16.msra.mxu0 %v4108
    %4613 = vmatprep.subr.bf16.mxu0 %v4113
    %4614 = vmatpush1.bf16.msra.mxu0 %v4112
    %4615 = vmatprep.subr.bf16.mxu0 %v4117
    %4616 = vmatpush1.bf16.msra.mxu0 %v4116
    %4617 = vmatprep.subr.bf16.mxu0 %v4121
    %4618 = vmatpush1.bf16.msra.mxu0 %v4120
    %4619 = vmatprep.subr.bf16.mxu0 %v4125
    %4620 = vmatpush1.bf16.msra.mxu0 %v4124
    %4621 = vmatprep.subr.bf16.mxu0 %v4129
    %4622 = vmatpush1.bf16.msra.mxu0 %v4128
    %4623 = vmatprep.subr.bf16.mxu0 %v4133
    %4624 = vmatpush1.bf16.msra.mxu0 %v4132
    %4625 = vmatprep.subr.bf16.mxu0 %v4137
    %4626 = vmatpush1.bf16.msra.mxu0 %v4136
    %4627 = vmatprep.subr.bf16.mxu0 %v4141
    %4628 = vmatpush1.bf16.msra.mxu0 %v4140
    %4629 = vmatprep.subr.bf16.mxu0 %v4145
    %4630 = vmatpush1.bf16.msra.mxu0 %v4144
    %4631 = vmatprep.subr.bf16.mxu0 %v4149
    %4632 = vmatpush1.bf16.msra.mxu0 %v4148
    %4633 = vmatprep.subr.bf16.mxu0 %v4153
    %4634 = vmatpush1.bf16.msra.mxu0 %v4152
    %4635 = vmatprep.subr.bf16.mxu0 %v4157
    %4636 = vmatpush1.bf16.msra.mxu0 %v4156
    %4637 = vmatprep.subr.bf16.mxu0 %v4161
    %4638 = vmatpush1.bf16.msra.mxu0 %v4160
    %4639 = vmatprep.subr.bf16.mxu0 %v4165
    %4640 = vmatpush1.bf16.msra.mxu0 %v4164
    %4641 = vmatprep.mubr.bf16.mxu0 %v3307
    %4642 = vmatmul.mubr.bf16.gmra.mrb[0].mxu0 %v3306
    %v4643 = vpop.f32.mrb[0].mxu0
    %v4644 = vadd.f32 %v3517, %v4643
    %v4645 = vpop.f32.mrb[0].mxu0
    %v4646 = vadd.f32 %v3521, %v4645
    %v4647 = vpop.f32.mrb[0].mxu0
    %v4648 = vpop.f32.mrb[0].mxu0
    %4649 = vdwg.mxu0
    %4650 = vmatprep.subr.bf16.mxu0 %v4169
    %4651 = vmatpush1.bf16.msra.mxu0 %v4168
    %4652 = vmatprep.subr.bf16.mxu0 %v4173
    %4653 = vmatpush1.bf16.msra.mxu0 %v4172
    %4654 = vmatprep.subr.bf16.mxu0 %v4177
    %4655 = vmatpush1.bf16.msra.mxu0 %v4176
    %4656 = vmatprep.subr.bf16.mxu0 %v4181
    %4657 = vmatpush1.bf16.msra.mxu0 %v4180
    %4658 = vmatprep.subr.bf16.mxu0 %v4185
    %4659 = vmatpush1.bf16.msra.mxu0 %v4184
    %4660 = vmatprep.subr.bf16.mxu0 %v4189
    %4661 = vmatpush1.bf16.msra.mxu0 %v4188
    %4662 = vmatprep.subr.bf16.mxu0 %v4193
    %4663 = vmatpush1.bf16.msra.mxu0 %v4192
    %4664 = vmatprep.subr.bf16.mxu0 %v4197
    %4665 = vmatpush1.bf16.msra.mxu0 %v4196
    %4666 = vmatprep.subr.bf16.mxu0 %v4201
    %4667 = vmatpush1.bf16.msra.mxu0 %v4200
    %4668 = vmatprep.subr.bf16.mxu0 %v4205
    %4669 = vmatpush1.bf16.msra.mxu0 %v4204
    %4670 = vmatprep.subr.bf16.mxu0 %v4209
    %4671 = vmatpush1.bf16.msra.mxu0 %v4208
    %4672 = vmatprep.subr.bf16.mxu0 %v4213
    %4673 = vmatpush1.bf16.msra.mxu0 %v4212
    %4674 = vmatprep.subr.bf16.mxu0 %v4217
    %4675 = vmatpush1.bf16.msra.mxu0 %v4216
    %4676 = vmatprep.subr.bf16.mxu0 %v4221
    %4677 = vmatpush1.bf16.msra.mxu0 %v4220
    %4678 = vmatprep.subr.bf16.mxu0 %v4225
    %4679 = vmatpush1.bf16.msra.mxu0 %v4224
    %4680 = vmatprep.subr.bf16.mxu0 %v4229
    %4681 = vmatpush1.bf16.msra.mxu0 %v4228
    %4682 = vmatprep.mubr.bf16.mxu0 %v3309
    %4683 = vmatmul.mubr.bf16.gmra.mrb[0].mxu0 %v3308
    %v4684 = vpop.f32.mrb[0].mxu0
    %v4685 = vadd.f32 %v4644, %v4684
    %v4686 = vpop.f32.mrb[0].mxu0
    %v4687 = vadd.f32 %v4646, %v4686
    %v4688 = vpop.f32.mrb[0].mxu0
    %v4689 = vpop.f32.mrb[0].mxu0
    %4690 = vdwg.mxu0
    %4691 = vmatprep.subr.bf16.mxu0 %v4233
    %4692 = vmatpush1.bf16.msra.mxu0 %v4232
    %4693 = vmatprep.subr.bf16.mxu0 %v4237
    %4694 = vmatpush1.bf16.msra.mxu0 %v4236
    %4695 = vmatprep.subr.bf16.mxu0 %v4241
    %4696 = vmatpush1.bf16.msra.mxu0 %v4240
    %4697 = vmatprep.subr.bf16.mxu0 %v4245
    %4698 = vmatpush1.bf16.msra.mxu0 %v4244
    %4699 = vmatprep.subr.bf16.mxu0 %v4249
    %4700 = vmatpush1.bf16.msra.mxu0 %v4248
    %4701 = vmatprep.subr.bf16.mxu0 %v4253
    %4702 = vmatpush1.bf16.msra.mxu0 %v4252
    %4703 = vmatprep.subr.bf16.mxu0 %v4257
    %4704 = vmatpush1.bf16.msra.mxu0 %v4256
    %4705 = vmatprep.subr.bf16.mxu0 %v4261
    %4706 = vmatpush1.bf16.msra.mxu0 %v4260
    %4707 = vmatprep.subr.bf16.mxu0 %v4265
    %4708 = vmatpush1.bf16.msra.mxu0 %v4264
    %4709 = vmatprep.subr.bf16.mxu0 %v4269
    %4710 = vmatpush1.bf16.msra.mxu0 %v4268
    %4711 = vmatprep.subr.bf16.mxu0 %v4273
    %4712 = vmatpush1.bf16.msra.mxu0 %v4272
    %4713 = vmatprep.subr.bf16.mxu0 %v4277
    %4714 = vmatpush1.bf16.msra.mxu0 %v4276
    %4715 = vmatprep.subr.bf16.mxu0 %v4281
    %4716 = vmatpush1.bf16.msra.mxu0 %v4280
    %4717 = vmatprep.subr.bf16.mxu0 %v4285
    %4718 = vmatpush1.bf16.msra.mxu0 %v4284
    %4719 = vmatprep.subr.bf16.mxu0 %v4289
    %4720 = vmatpush1.bf16.msra.mxu0 %v4288
    %4721 = vmatprep.subr.bf16.mxu0 %v4293
    %4722 = vmatpush1.bf16.msra.mxu0 %v4292
    %4723 = vmatprep.mubr.bf16.mxu0 %v3311
    %4724 = vmatmul.mubr.bf16.gmra.mrb[0].mxu0 %v3310
    %v4725 = vpop.f32.mrb[0].mxu0
    %v4726 = vadd.f32 %v4685, %v4725
    %v4727 = vpop.f32.mrb[0].mxu0
    %v4728 = vadd.f32 %v4687, %v4727
    %v4729 = vpop.f32.mrb[0].mxu0
    %v4730 = vpop.f32.mrb[0].mxu0
    %4731 = vdwg.mxu0
    %v4732 = vmax.f32 %v4603, 0.0
    %v4733 = vmax.f32 %v4605, 0.0
    %v4734 = vmax.f32 %v4726, 0.0
    %v4735 = vmax.f32 %v4728, 0.0
    %v4736 = vpack.c.bf16 %v4732, %v4732
    %v4737 = vpack.c.bf16 %v4733, %v4733
    %v4738 = vpack.c.bf16 %v4734, %v4734
    %v4739 = vpack.c.bf16 %v4735, %v4735
    %v4740 = vld [vmem:[#allocation14] sm:$0xf]
    %v4741 = vld [vmem:[#allocation14 + $0x4] sm:$0xf]
    %v4742 = vld [vmem:[#allocation14 + $0x8] sm:$0xf]
    %v4743 = vld [vmem:[#allocation14 + $0xc] sm:$0xf]
    %v4744 = vld [vmem:[#allocation14 + $0x10] sm:$0xf]
    %v4745 = vld [vmem:[#allocation14 + $0x14] sm:$0xf]
    %v4746 = vld [vmem:[#allocation14 + $0x18] sm:$0xf]
    %v4747 = vld [vmem:[#allocation14 + $0x1c] sm:$0xf]
    %v4748 = vld [vmem:[#allocation14 + $0x20] sm:$0xf]
    %v4749 = vld [vmem:[#allocation14 + $0x24] sm:$0xf]
    %v4750 = vld [vmem:[#allocation14 + $0x28] sm:$0xf]
    %v4751 = vld [vmem:[#allocation14 + $0x2c] sm:$0xf]
    %v4752 = vld [vmem:[#allocation14 + $0x30] sm:$0xf]
    %v4753 = vld [vmem:[#allocation14 + $0x34] sm:$0xf]
    %v4754 = vld [vmem:[#allocation14 + $0x38] sm:$0xf]
    %v4755 = vld [vmem:[#allocation14 + $0x3c] sm:$0xf]
    %v4756 = vld [vmem:[#allocation14 + $0x40] sm:$0xf]
    %v4757 = vld [vmem:[#allocation14 + $0x44] sm:$0xf]
    %v4758 = vld [vmem:[#allocation14 + $0x48] sm:$0xf]
    %v4759 = vld [vmem:[#allocation14 + $0x4c] sm:$0xf]
    %v4760 = vld [vmem:[#allocation14 + $0x50] sm:$0xf]
    %v4761 = vld [vmem:[#allocation14 + $0x54] sm:$0xf]
    %v4762 = vld [vmem:[#allocation14 + $0x58] sm:$0xf]
    %v4763 = vld [vmem:[#allocation14 + $0x5c] sm:$0xf]
    %v4764 = vld [vmem:[#allocation14 + $0x60] sm:$0xf]
    %v4765 = vld [vmem:[#allocation14 + $0x64] sm:$0xf]
    %v4766 = vld [vmem:[#allocation14 + $0x68] sm:$0xf]
    %v4767 = vld [vmem:[#allocation14 + $0x6c] sm:$0xf]
    %v4768 = vld [vmem:[#allocation14 + $0x70] sm:$0xf]
    %v4769 = vld [vmem:[#allocation14 + $0x74] sm:$0xf]
    %v4770 = vld [vmem:[#allocation14 + $0x78] sm:$0xf]
    %v4771 = vld [vmem:[#allocation14 + $0x7c] sm:$0xf]
    %v4772 = vld [vmem:[#allocation14 + $0x80] sm:$0xf]
    %v4773 = vld [vmem:[#allocation14 + $0x84] sm:$0xf]
    %v4774 = vld [vmem:[#allocation14 + $0x88] sm:$0xf]
    %v4775 = vld [vmem:[#allocation14 + $0x8c] sm:$0xf]
    %v4776 = vld [vmem:[#allocation14 + $0x90] sm:$0xf]
    %v4777 = vld [vmem:[#allocation14 + $0x94] sm:$0xf]
    %v4778 = vld [vmem:[#allocation14 + $0x98] sm:$0xf]
    %v4779 = vld [vmem:[#allocation14 + $0x9c] sm:$0xf]
    %v4780 = vld [vmem:[#allocation14 + $0xa0] sm:$0xf]
    %v4781 = vld [vmem:[#allocation14 + $0xa4] sm:$0xf]
    %v4782 = vld [vmem:[#allocation14 + $0xa8] sm:$0xf]
    %v4783 = vld [vmem:[#allocation14 + $0xac] sm:$0xf]
    %v4784 = vld [vmem:[#allocation14 + $0xb0] sm:$0xf]
    %v4785 = vld [vmem:[#allocation14 + $0xb4] sm:$0xf]
    %v4786 = vld [vmem:[#allocation14 + $0xb8] sm:$0xf]
    %v4787 = vld [vmem:[#allocation14 + $0xbc] sm:$0xf]
    %v4788 = vld [vmem:[#allocation14 + $0xc0] sm:$0xf]
    %v4789 = vld [vmem:[#allocation14 + $0xc4] sm:$0xf]
    %v4790 = vld [vmem:[#allocation14 + $0xc8] sm:$0xf]
    %v4791 = vld [vmem:[#allocation14 + $0xcc] sm:$0xf]
    %v4792 = vld [vmem:[#allocation14 + $0xd0] sm:$0xf]
    %v4793 = vld [vmem:[#allocation14 + $0xd4] sm:$0xf]
    %v4794 = vld [vmem:[#allocation14 + $0xd8] sm:$0xf]
    %v4795 = vld [vmem:[#allocation14 + $0xdc] sm:$0xf]
    %v4796 = vld [vmem:[#allocation14 + $0xe0] sm:$0xf]
    %v4797 = vld [vmem:[#allocation14 + $0xe4] sm:$0xf]
    %v4798 = vld [vmem:[#allocation14 + $0xe8] sm:$0xf]
    %v4799 = vld [vmem:[#allocation14 + $0xec] sm:$0xf]
    %v4800 = vld [vmem:[#allocation14 + $0xf0] sm:$0xf]
    %v4801 = vld [vmem:[#allocation14 + $0xf4] sm:$0xf]
    %v4802 = vld [vmem:[#allocation14 + $0xf8] sm:$0xf]
    %v4803 = vld [vmem:[#allocation14 + $0xfc] sm:$0xf]
    %v4804 = vld [vmem:[#allocation16] sm:$0x1]
    %v4806 = vlaneseq
    %v4807 = vshrl.u32 %v4806, 7
    %v4808 = vsub.s32 0, %v4807
    %v4809 = vrot.slane %v4804, %v4808
    %v4875 = vunpack.c.l.b16 %v4740
    %v4876 = vunpack.c.l.b16 %v4741
    %v4877 = vunpack.c.l.b16 %v4742
    %v4878 = vunpack.c.l.b16 %v4743
    %v4879 = vunpack.c.l.b16 %v4744
    %v4880 = vunpack.c.l.b16 %v4745
    %v4881 = vunpack.c.l.b16 %v4746
    %v4882 = vunpack.c.l.b16 %v4747
    %v4883 = vunpack.c.l.b16 %v4748
    %v4884 = vunpack.c.l.b16 %v4749
    %v4885 = vunpack.c.l.b16 %v4750
    %v4886 = vunpack.c.l.b16 %v4751
    %v4887 = vunpack.c.l.b16 %v4752
    %v4888 = vunpack.c.l.b16 %v4753
    %v4889 = vunpack.c.l.b16 %v4754
    %v4890 = vunpack.c.l.b16 %v4755
    %v4891 = vunpack.c.l.b16 %v4756
    %v4892 = vunpack.c.l.b16 %v4757
    %v4893 = vunpack.c.l.b16 %v4758
    %v4894 = vunpack.c.l.b16 %v4759
    %v4895 = vunpack.c.l.b16 %v4760
    %v4896 = vunpack.c.l.b16 %v4761
    %v4897 = vunpack.c.l.b16 %v4762
    %v4898 = vunpack.c.l.b16 %v4763
    %v4899 = vunpack.c.l.b16 %v4764
    %v4900 = vunpack.c.l.b16 %v4765
    %v4901 = vunpack.c.l.b16 %v4766
    %v4902 = vunpack.c.l.b16 %v4767
    %v4903 = vunpack.c.l.b16 %v4768
    %v4904 = vunpack.c.l.b16 %v4769
    %v4905 = vunpack.c.l.b16 %v4770
    %v4906 = vunpack.c.l.b16 %v4771
    %v4907 = vunpack.c.l.b16 %v4772
    %v4908 = vunpack.c.l.b16 %v4773
    %v4909 = vunpack.c.l.b16 %v4774
    %v4910 = vunpack.c.l.b16 %v4775
    %v4911 = vunpack.c.l.b16 %v4776
    %v4912 = vunpack.c.l.b16 %v4777
    %v4913 = vunpack.c.l.b16 %v4778
    %v4914 = vunpack.c.l.b16 %v4779
    %v4915 = vunpack.c.l.b16 %v4780
    %v4916 = vunpack.c.l.b16 %v4781
    %v4917 = vunpack.c.l.b16 %v4782
    %v4918 = vunpack.c.l.b16 %v4783
    %v4919 = vunpack.c.l.b16 %v4784
    %v4920 = vunpack.c.l.b16 %v4785
    %v4921 = vunpack.c.l.b16 %v4786
    %v4922 = vunpack.c.l.b16 %v4787
    %v4923 = vunpack.c.l.b16 %v4788
    %v4924 = vunpack.c.l.b16 %v4789
    %v4925 = vunpack.c.l.b16 %v4790
    %v4926 = vunpack.c.l.b16 %v4791
    %v4927 = vunpack.c.l.b16 %v4792
    %v4928 = vunpack.c.l.b16 %v4793
    %v4929 = vunpack.c.l.b16 %v4794
    %v4930 = vunpack.c.l.b16 %v4795
    %v4931 = vunpack.c.l.b16 %v4796
    %v4932 = vunpack.c.l.b16 %v4797
    %v4933 = vunpack.c.l.b16 %v4798
    %v4934 = vunpack.c.l.b16 %v4799
    %v4935 = vunpack.c.l.b16 %v4800
    %v4936 = vunpack.c.l.b16 %v4801
    %v4937 = vunpack.c.l.b16 %v4802
    %v4938 = vunpack.c.l.b16 %v4803
    %v4939 = vpack.c.b16 %v4876, %v4875
    %v4940 = vpack.c.b16 %v4878, %v4877
    %v4941 = vpack.c.b16 %v4880, %v4879
    %v4942 = vpack.c.b16 %v4882, %v4881
    %v4943 = vpack.c.b16 %v4884, %v4883
    %v4944 = vpack.c.b16 %v4886, %v4885
    %v4945 = vpack.c.b16 %v4888, %v4887
    %v4946 = vpack.c.b16 %v4890, %v4889
    %v4947 = vpack.c.b16 %v4892, %v4891
    %v4948 = vpack.c.b16 %v4894, %v4893
    %v4949 = vpack.c.b16 %v4896, %v4895
    %v4950 = vpack.c.b16 %v4898, %v4897
    %v4951 = vpack.c.b16 %v4900, %v4899
    %v4952 = vpack.c.b16 %v4902, %v4901
    %v4953 = vpack.c.b16 %v4904, %v4903
    %v4954 = vpack.c.b16 %v4906, %v4905
    %v4955 = vpack.c.b16 %v4908, %v4907
    %v4956 = vpack.c.b16 %v4910, %v4909
    %v4957 = vpack.c.b16 %v4912, %v4911
    %v4958 = vpack.c.b16 %v4914, %v4913
    %v4959 = vpack.c.b16 %v4916, %v4915
    %v4960 = vpack.c.b16 %v4918, %v4917
    %v4961 = vpack.c.b16 %v4920, %v4919
    %v4962 = vpack.c.b16 %v4922, %v4921
    %v4963 = vpack.c.b16 %v4924, %v4923
    %v4964 = vpack.c.b16 %v4926, %v4925
    %v4965 = vpack.c.b16 %v4928, %v4927
    %v4966 = vpack.c.b16 %v4930, %v4929
    %v4967 = vpack.c.b16 %v4932, %v4931
    %v4968 = vpack.c.b16 %v4934, %v4933
    %v4969 = vpack.c.b16 %v4936, %v4935
    %v4970 = vpack.c.b16 %v4938, %v4937
    %5003 = vmatprep.subr.bf16.mxu0 0
    %5004 = vmatpush1.bf16.msra.mxu0 %v4939
    %5005 = vmatprep.subr.bf16.mxu0 0
    %5006 = vmatpush1.bf16.msra.mxu0 %v4940
    %5007 = vmatprep.subr.bf16.mxu0 0
    %5008 = vmatpush1.bf16.msra.mxu0 %v4941
    %5009 = vmatprep.subr.bf16.mxu0 0
    %5010 = vmatpush1.bf16.msra.mxu0 %v4942
    %5011 = vmatprep.subr.bf16.mxu0 0
    %5012 = vmatpush1.bf16.msra.mxu0 %v4943
    %5013 = vmatprep.subr.bf16.mxu0 0
    %5014 = vmatpush1.bf16.msra.mxu0 %v4944
    %5015 = vmatprep.subr.bf16.mxu0 0
    %5016 = vmatpush1.bf16.msra.mxu0 %v4945
    %5017 = vmatprep.subr.bf16.mxu0 0
    %5018 = vmatpush1.bf16.msra.mxu0 %v4946
    %5019 = vmatprep.subr.bf16.mxu0 0
    %5020 = vmatpush1.bf16.msra.mxu0 %v4947
    %5021 = vmatprep.subr.bf16.mxu0 0
    %5022 = vmatpush1.bf16.msra.mxu0 %v4948
    %5023 = vmatprep.subr.bf16.mxu0 0
    %5024 = vmatpush1.bf16.msra.mxu0 %v4949
    %5025 = vmatprep.subr.bf16.mxu0 0
    %5026 = vmatpush1.bf16.msra.mxu0 %v4950
    %5027 = vmatprep.subr.bf16.mxu0 0
    %5028 = vmatpush1.bf16.msra.mxu0 %v4951
    %5029 = vmatprep.subr.bf16.mxu0 0
    %5030 = vmatpush1.bf16.msra.mxu0 %v4952
    %5031 = vmatprep.subr.bf16.mxu0 0
    %5032 = vmatpush1.bf16.msra.mxu0 %v4953
    %5033 = vmatprep.subr.bf16.mxu0 0
    %5034 = vmatpush1.bf16.msra.mxu0 %v4954
    %5035 = vmatprep.mubr.bf16.mxu0 %v4737
    %5036 = vmatmul.mubr.bf16.gmra.mrb[0].mxu0 %v4736
    %v5037 = vpop.f32.mrb[0].mxu0
    %v5038 = vadd.f32 %v4809, %v5037
    %v5039 = vpop.f32.mrb[0].mxu0
    %v5040 = vpop.f32.mrb[0].mxu0
    %v5041 = vpop.f32.mrb[0].mxu0
    %5042 = vdwg.mxu0
    %5043 = vmatprep.subr.bf16.mxu0 0
    %5044 = vmatpush1.bf16.msra.mxu0 %v4955
    %5045 = vmatprep.subr.bf16.mxu0 0
    %5046 = vmatpush1.bf16.msra.mxu0 %v4956
    %5047 = vmatprep.subr.bf16.mxu0 0
    %5048 = vmatpush1.bf16.msra.mxu0 %v4957
    %5049 = vmatprep.subr.bf16.mxu0 0
    %5050 = vmatpush1.bf16.msra.mxu0 %v4958
    %5051 = vmatprep.subr.bf16.mxu0 0
    %5052 = vmatpush1.bf16.msra.mxu0 %v4959
    %5053 = vmatprep.subr.bf16.mxu0 0
    %5054 = vmatpush1.bf16.msra.mxu0 %v4960
    %5055 = vmatprep.subr.bf16.mxu0 0
    %5056 = vmatpush1.bf16.msra.mxu0 %v4961
    %5057 = vmatprep.subr.bf16.mxu0 0
    %5058 = vmatpush1.bf16.msra.mxu0 %v4962
    %5059 = vmatprep.subr.bf16.mxu0 0
    %5060 = vmatpush1.bf16.msra.mxu0 %v4963
    %5061 = vmatprep.subr.bf16.mxu0 0
    %5062 = vmatpush1.bf16.msra.mxu0 %v4964
    %5063 = vmatprep.subr.bf16.mxu0 0
    %5064 = vmatpush1.bf16.msra.mxu0 %v4965
    %5065 = vmatprep.subr.bf16.mxu0 0
    %5066 = vmatpush1.bf16.msra.mxu0 %v4966
    %5067 = vmatprep.subr.bf16.mxu0 0
    %5068 = vmatpush1.bf16.msra.mxu0 %v4967
    %5069 = vmatprep.subr.bf16.mxu0 0
    %5070 = vmatpush1.bf16.msra.mxu0 %v4968
    %5071 = vmatprep.subr.bf16.mxu0 0
    %5072 = vmatpush1.bf16.msra.mxu0 %v4969
    %5073 = vmatprep.subr.bf16.mxu0 0
    %5074 = vmatpush1.bf16.msra.mxu0 %v4970
    %5075 = vmatprep.mubr.bf16.mxu0 %v4739
    %5076 = vmatmul.mubr.bf16.gmra.mrb[0].mxu0 %v4738
    %v5077 = vpop.f32.mrb[0].mxu0
    %v5078 = vadd.f32 %v5038, %v5077
    %v5079 = vpop.f32.mrb[0].mxu0
    %v5080 = vpop.f32.mrb[0].mxu0
    %v5081 = vpop.f32.mrb[0].mxu0
    %5082 = vdwg.mxu0
    %5083 = vst [vmem:[#allocation17] sm:$0xff] %v5078
    // Predicated region
    $region74: #{tpu_custom_call.1} parent=1 // pred_check
      _
    $region75: #{tpu_custom_call.1} parent=1 // pred_check_branch
      %5085 = sbr.rel (0) target = $region77
    $region76: #{tpu_custom_call.1} parent=1 // pred_region
      %s5087 = ssub.s32 128, 32
      %5088 = vsyncadd [#allocation4], %s5087
      %s5089 = sshll.u32 [#allocation17], 4
      %s5090 = int_to_ptr.vmem [resolvable:$true] %s5089
      %5095 = dma.vmem_to_hbm [thread:$0]  %s5090, 32, %s9, [#allocation4], 32, 32, 2
    $region77: #{tpu_custom_call.1} parent=1 // pred_fallthru
      _
    // Predicated region
    $region78: #{tpu_custom_call.1} parent=1 // pred_check
      _
    $region79: #{tpu_custom_call.1} parent=1 // pred_check_branch
      %5097 = sbr.rel (0) target = $region81
    $region80: #{tpu_custom_call.1} parent=1 // pred_region
      %5098 = dma.done [#allocation4], 128
    $region81: #{tpu_custom_call.1} parent=1 // pred_fallthru
      _
    %5099 = vsyncpa [#allocation3], 1
    %5100 = vsyncpa [#allocation6], 1
    %5101 = vsyncpa [#allocation9], 1
    %5102 = vsyncpa [#allocation12], 1
    %5103 = vsyncpa [#allocation15], 1
    %5104 = vsyncpa [#allocation4], 1

</llo_original>
